<compile_context>
chip_gen: v6e
topology: v6e:2x2x1
jax: 0.10.0
libtpu: 0.0.40
codegen_flags: <defaults>
</compile_context>

<pallas_src>
import functools
import math

import jax
import jax.numpy as jnp
from jax import lax
from jax.experimental import pallas as pl
from jax.experimental.pallas import tpu as pltpu


_COMPILER_PARAMS = pltpu.CompilerParams(
    dimension_semantics=("parallel",),
    vmem_limit_bytes=32 * 1024 * 1024,
)


# ----------------------------------------------------------------------------
# Pallas kernels
# ----------------------------------------------------------------------------

def _matmul_bias_relu_kernel(p_ref, w_ref, b_ref, o_ref):
    """One conv layer after im2col (row-packed):  o = relu(p @ w + b).

    p_ref: [tile/r, r*K] bf16, w_ref: [r*K, 128] bf16 (block-diagonal),
    b_ref: [1, 128] f32, o_ref: [tile/r, 128] bf16 (lane-dense store).
    """
    acc = jnp.dot(p_ref[...], w_ref[...], preferred_element_type=jnp.float32)
    o_ref[...] = jnp.maximum(acc + b_ref[...], 0.0).astype(o_ref.dtype)


def _conv3_head_kernel(x_ref, w3_ref, b3_ref, w1_ref, b1_ref, w2_ref, b2_ref,
                       o_ref, *, oh2, ow2, cin):
    """Fused conv3 (3x3, stride 1) + Linear->ReLU->Linear head.

    x_ref : [tile_b, OH2*OW2*Cin]  bf16  (NHWC conv2 output, flattened)
    w3_ref: [9*Cin, C3]            bf16  ((kh, kw, Cin) row order)
    w1_ref: [OH3*OW3*C3, 512]      bf16  ((p3, c) row order = NHWC flatten)
    w2_ref: [512, 128]             bf16  (A lane-padded to 128)
    o_ref : [tile_b, 128]          f32
    """
    oh3, ow3 = oh2 - 2, ow2 - 2          # 3x3 kernel, stride 1, no padding
    tb = o_ref.shape[0]
    cout3 = w3_ref.shape[-1]
    nh = w1_ref.shape[-1]

    z1 = jnp.zeros((tb, nh), jnp.float32)
    for i3 in range(oh3):
        for j3 in range(ow3):
            acc = jnp.zeros((tb, cout3), jnp.float32)
            for dh in range(3):
                for dw in range(3):
                    q = (i3 + dh) * ow2 + (j3 + dw)
                    xi = x_ref[:, q * cin:(q + 1) * cin]              # [tb, Cin]
                    kidx = dh * 3 + dw
                    wk = w3_ref[kidx * cin:(kidx + 1) * cin, :]       # [Cin, C3]
                    acc = acc + jnp.dot(xi, wk,
                                        preferred_element_type=jnp.float32)
            h = jnp.maximum(acc + b3_ref[...], 0.0).astype(jnp.bfloat16)
            p3 = i3 * ow3 + j3
            w1p = w1_ref[p3 * cout3:(p3 + 1) * cout3, :]              # [C3, 512]
            z1 = z1 + jnp.dot(h, w1p, preferred_element_type=jnp.float32)

    z = jnp.maximum(z1 + b1_ref[...], 0.0).astype(jnp.bfloat16)
    o_ref[...] = (jnp.dot(z, w2_ref[...], preferred_element_type=jnp.float32)
                  + b2_ref[...])


# ----------------------------------------------------------------------------
# Tiling helpers
# ----------------------------------------------------------------------------

def _round_up(n, m):
    return ((n + m - 1) // m) * m


def _pick_tile(rows, unit, max_tile):
    """Pick a row tile (multiple of `unit`) aiming for >= 2 grid steps when
    the row count allows it (v7x dual-TC sharding / v5e DMA-compute overlap)."""
    max_units = max(1, max_tile // unit)
    total_units = -(-rows // unit)
    if total_units >= 2:
        tile_units = min(max_units, -(-total_units // 2))
    else:
        tile_units = 1
    grid = -(-total_units // tile_units)
    tile = tile_units * unit
    return tile, grid * tile, grid


# ----------------------------------------------------------------------------
# pallas_call wrappers
# ----------------------------------------------------------------------------

def _conv_layer_pallas(x, w_bd, b_row, *, k, s, max_tile):
    """NHWC conv (VALID, stride s) as an im2col matmul with lane-dense output.

    x: [B, H, W, Cin] bf16.  w_bd: [r*K, r*Cout] bf16 block-diagonal,
    b_row: [1, r*Cout] f32.  Returns [B, OH, OW, Cout] bf16.
    """
    B = x.shape[0]
    patches, OH, OW = _im2col_nhwc(x, k, s)      # [rows, K] bf16
    rows, K = patches.shape
    r = w_bd.shape[0] // K
    N = w_bd.shape[1]
    cout = N // r

    unit = 16 * r                                 # packed tile sublane-aligned (bf16)
    tile, rows_pad, grid = _pick_tile(rows, unit, max_tile)
    if rows_pad != rows:
        patches = jnp.pad(patches, ((0, rows_pad - rows), (0, 0)))
    packed = patches.reshape(rows_pad // r, r * K)   # free row-major reshape

    out = pl.pallas_call(
        _matmul_bias_relu_kernel,
        grid=(grid,),
        in_specs=[
            pl.BlockSpec((tile // r, r * K), lambda i: (i, 0)),
            pl.BlockSpec((r * K, N), lambda i: (0, 0)),
            pl.BlockSpec((1, N), lambda i: (0, 0)),
        ],
        out_specs=pl.BlockSpec((tile // r, N), lambda i: (i, 0)),
        out_shape=jax.ShapeDtypeStruct((rows_pad // r, N), jnp.bfloat16),
        compiler_params=_COMPILER_PARAMS,
    )(packed, w_bd, b_row)

    out = out.reshape(rows_pad, cout)[:rows]      # free unpack + strip padding
    return out.reshape(B, OH, OW, cout)


def _conv3_head_pallas(h2, prep, *, max_tile):
    """Fused conv3 + MLP head, gridded over batch tiles. Returns [B, 128] f32."""
    B, OH2, OW2, C2 = h2.shape
    feat = h2.reshape(B, OH2 * OW2 * C2)          # free NHWC flatten
    tile_b, B_pad, grid = _pick_tile(B, 16, max_tile)
    if B_pad != B:
        feat = jnp.pad(feat, ((0, B_pad - B), (0, 0)))

    w3, b3 = prep["c3_w"], prep["c3_b"]
    w1, b1 = prep["fc1_w"], prep["fc1_b"]
    w2, b2 = prep["fc2_w"], prep["fc2_b"]
    A_pad = w2.shape[1]

    kern = functools.partial(_conv3_head_kernel, oh2=OH2, ow2=OW2, cin=C2)
    out = pl.pallas_call(
        kern,
        grid=(grid,),
        in_specs=[
            pl.BlockSpec((tile_b, OH2 * OW2 * C2), lambda i: (i, 0)),
            pl.BlockSpec(w3.shape, lambda i: (0, 0)),
            pl.BlockSpec(b3.shape, lambda i: (0, 0)),
            pl.BlockSpec(w1.shape, lambda i: (0, 0)),
            pl.BlockSpec(b1.shape, lambda i: (0, 0)),
            pl.BlockSpec(w2.shape, lambda i: (0, 0)),
            pl.BlockSpec(b2.shape, lambda i: (0, 0)),
        ],
        out_specs=pl.BlockSpec((tile_b, A_pad), lambda i: (i, 0)),
        out_shape=jax.ShapeDtypeStruct((B_pad, A_pad), jnp.float32),
        compiler_params=_COMPILER_PARAMS,
    )(feat, w3, b3, w1, b1, w2, b2)
    return out[:B]


# ----------------------------------------------------------------------------
# im2col in NHWC (wrapper-side layout plumbing, no FLOPs)
# ----------------------------------------------------------------------------

def _im2col_nhwc(x, k, s):
    """x: [B, H, W, C] -> ([B*OH*OW, k*k*C], OH, OW), flatten order (kh, kw, C)."""
    B, H, W, C = x.shape
    OH = (H - k) // s + 1
    OW = (W - k) // s + 1
    cols = []
    for dh in range(k):
        for dw in range(k):
            cols.append(x[:, dh: dh + s * OH: s, dw: dw + s * OW: s, :])
    p = jnp.stack(cols, axis=3)                   # [B, OH, OW, k*k, C]
    return p.reshape(B * OH * OW, k * k * C), OH, OW


# ----------------------------------------------------------------------------
# One-time parameter preparation (hoisted out of the jitted forward)
# ----------------------------------------------------------------------------

def _block_diag(w, r):
    K, N = w.shape
    out = jnp.zeros((r * K, r * N), w.dtype)
    for i in range(r):
        out = out.at[i * K:(i + 1) * K, i * N:(i + 1) * N].set(w)
    return out


def prepare_params(params, S):
    """Re-layout PyTorch-format params for the NHWC/bf16 Pallas forward."""
    C, H, W = S

    def osz(n, k, s):
        return (n - k) // s + 1

    H1, W1 = osz(H, 8, 4), osz(W, 8, 4)
    H2, W2 = osz(H1, 4, 2), osz(W1, 4, 2)
    H3, W3 = osz(H2, 3, 1), osz(W2, 3, 1)

    def conv_mat(w):                              # [Cout,Cin,kh,kw] -> [kh*kw*Cin, Cout]
        co, ci, kh, kw = w.shape
        return w.transpose(2, 3, 1, 0).reshape(kh * kw * ci, co)

    prep = {}
    # conv1 / conv2: block-diagonal packing so the output slab is 128-lane dense.
    for name in ("c1", "c2"):
        wm = conv_mat(params[f"{name}_w"])
        cout = wm.shape[1]
        r = max(1, 128 // cout)
        prep[f"{name}_w"] = _block_diag(wm, r).astype(jnp.bfloat16)
        prep[f"{name}_b"] = jnp.tile(
            params[f"{name}_b"].reshape(1, cout), (1, r)).astype(jnp.float32)

    # conv3: per-kernel-position rows, (kh, kw, Cin) order.
    c3_out = params["c3_w"].shape[0]
    prep["c3_w"] = conv_mat(params["c3_w"]).astype(jnp.bfloat16)       # [9*Cin, C3]
    prep["c3_b"] = params["c3_b"].reshape(1, -1).astype(jnp.float32)

    # fc1: PyTorch flatten(1) on NCHW orders columns as (c, h3, w3); permute to
    # (p3, c) so it consumes the NHWC conv3 output directly.
    nh = params["fc1_w"].shape[0]
    w1 = params["fc1_w"].reshape(nh, c3_out, H3 * W3)
    w1 = w1.transpose(2, 1, 0).reshape(H3 * W3 * c3_out, nh)
    prep["fc1_w"] = w1.astype(jnp.bfloat16)
    prep["fc1_b"] = params["fc1_b"].reshape(1, -1).astype(jnp.float32)

    # fc2: lane-pad A to a multiple of 128 for an unmasked 128-wide store.
    A = params["fc2_w"].shape[0]
    A_pad = _round_up(max(A, 1), 128)
    w2p = jnp.zeros((nh, A_pad), jnp.float32).at[:, :A].set(params["fc2_w"].T)
    b2p = jnp.zeros((1, A_pad), jnp.float32).at[0, :A].set(params["fc2_b"])
    prep["fc2_w"] = w2p.astype(jnp.bfloat16)
    prep["fc2_b"] = b2p
    return prep


# ----------------------------------------------------------------------------
# Forward pass
# ----------------------------------------------------------------------------

@functools.partial(jax.jit, static_argnames=("num_actions", "row_tile", "batch_tile"))
def discrete_cnn_critic_forward(x, prep, *, num_actions, row_tile=512, batch_tile=256):
    """DiscreteCNNCritic.forward.  x: [B, C, H, W] (NCHW).  Returns logits [B, A]."""
    h = x.transpose(0, 2, 3, 1).astype(jnp.bfloat16)     # NCHW -> NHWC once, bf16
    h = _conv_layer_pallas(h, prep["c1_w"], prep["c1_b"], k=8, s=4, max_tile=row_tile)
    h = _conv_layer_pallas(h, prep["c2_w"], prep["c2_b"], k=4, s=2, max_tile=row_tile)
    logits_pad = _conv3_head_pallas(h, prep, max_tile=batch_tile)      # [B, 128] f32
    return logits_pad[:, :num_actions]


# ----------------------------------------------------------------------------
# Parameter init (PyTorch layouts, U(-1/sqrt(fan_in), 1/sqrt(fan_in)))
# ----------------------------------------------------------------------------

def init_params(key, S, A, hidden_size=64):
    C, H, W = S

    def osz(n, k, s):
        return (n - k) // s + 1

    H1, W1 = osz(H, 8, 4), osz(W, 8, 4)
    H2, W2 = osz(H1, 4, 2), osz(W1, 4, 2)
    H3, W3 = osz(H2, 3, 1), osz(W2, 3, 1)
    F = 64 * H3 * W3

    def uniform(k, shape, fan_in):
        bound = 1.0 / math.sqrt(fan_in)
        return jax.random.uniform(k, shape, jnp.float32, -bound, bound)

    keys = jax.random.split(key, 10)
    p = {}
    p["c1_w"] = uniform(keys[0], (32, C, 8, 8), C * 8 * 8)
    p["c1_b"] = uniform(keys[1], (32,), C * 8 * 8)
    p["c2_w"] = uniform(keys[2], (64, 32, 4, 4), 32 * 4 * 4)
    p["c2_b"] = uniform(keys[3], (64,), 32 * 4 * 4)
    p["c3_w"] = uniform(keys[4], (64, 64, 3, 3), 64 * 3 * 3)
    p["c3_b"] = uniform(keys[5], (64,), 64 * 3 * 3)
    p["fc1_w"] = uniform(keys[6], (512, F), F)
    p["fc1_b"] = uniform(keys[7], (512,), F)
    p["fc2_w"] = uniform(keys[8], (A, 512), 512)
    p["fc2_b"] = uniform(keys[9], (A,), 512)
    return p


# ----------------------------------------------------------------------------
# Pure-JAX reference (mirrors the module with the same bf16-input / f32-accum
# precision policy used by the kernels)
# ----------------------------------------------------------------------------

def _reference_forward(x, params):
    bf = jnp.bfloat16

    def conv(h, w, b, stride):
        y = lax.conv_general_dilated(
            h.astype(bf), w.astype(bf), window_strides=(stride, stride),
            padding="VALID", dimension_numbers=("NCHW", "OIHW", "NCHW"),
            preferred_element_type=jnp.float32)
        return jnp.maximum(y + b[None, :, None, None], 0.0)

    h = conv(x, params["c1_w"], params["c1_b"], 4)
    h = conv(h, params["c2_w"], params["c2_b"], 2)
    h = conv(h, params["c3_w"], params["c3_b"], 1)
    feat = h.reshape(h.shape[0], -1)
    z = jnp.maximum(
        jnp.dot(feat.astype(bf), params["fc1_w"].T.astype(bf),
                preferred_element_type=jnp.float32) + params["fc1_b"], 0.0)
    return (jnp.dot(z.astype(bf), params["fc2_w"].T.astype(bf),
                    preferred_element_type=jnp.float32) + params["fc2_b"])


if __name__ == "__main__":
    # Small but CNN-valid shapes: B=2, S=(4, 44, 44), A=6.
    #   8x8/s4 -> 10x10, 4x4/s2 -> 4x4, 3x3/s1 -> 2x2, flatten F = 64*2*2 = 256.
    B, S, A = 2, (4, 44, 44), 6
    key = jax.random.PRNGKey(0)
    kx, kp = jax.random.split(key)
    x = jax.random.normal(kx, (B, *S), jnp.float32)
    params = init_params(kp, S, A)
    prep = prepare_params(params, S)              # one-time parameter re-layout

    logits = discrete_cnn_critic_forward(x, prep, num_actions=A)
    jax.block_until_ready(logits)

    ref = _reference_forward(x, params)
    assert logits.shape == (B, A)
    assert jnp.allclose(logits, ref, atol=2e-2, rtol=2e-2), (
        "max abs err = %g" % float(jnp.max(jnp.abs(logits - ref))))

    print("KERNEL_OK")
</pallas_src>

<mosaic_0001>
module attributes {stable_mosaic.version = 11 : i64} {
  func.func @_matmul_bias_relu_kernel(%arg0: i32, %arg1: memref<32x1024xbf16, #tpu.memory_space<vmem>>, %arg2: memref<1024x128xbf16, #tpu.memory_space<vmem>>, %arg3: memref<1x128xf32, #tpu.memory_space<vmem>>, %arg4: memref<32x128xbf16, #tpu.memory_space<vmem>>) attributes {dimension_semantics = [#tpu.dimension_semantics<parallel>], iteration_bounds = array<i64: 2>, scalar_prefetch = 0 : i64, scratch_operands = 0 : i64, tpu.core_type = #tpu.core_type<tc>, window_params = [{transform_indices = @transform_0, window_bounds = array<i64: 32, 1024>}, {pipeline_mode = #tpu.pipeline_mode<synchronous>, transform_indices = @transform_1, window_bounds = array<i64: 1024, 128>}, {pipeline_mode = #tpu.pipeline_mode<synchronous>, transform_indices = @transform_2, window_bounds = array<i64: 1, 128>}, {transform_indices = @transform_3, window_bounds = array<i64: 32, 128>}]} {
    %c0 = arith.constant 0 : index
    %c0_0 = arith.constant 0 : index
    %0 = vector.load %arg1[%c0, %c0_0] : memref<32x1024xbf16, #tpu.memory_space<vmem>>, vector<32x1024xbf16>
    %c0_1 = arith.constant 0 : index
    %c0_2 = arith.constant 0 : index
    %1 = vector.load %arg2[%c0_1, %c0_2] : memref<1024x128xbf16, #tpu.memory_space<vmem>>, vector<1024x128xbf16>
    %cst = arith.constant dense<0.000000e+00> : vector<32x128xf32>
    %2 = tpu.matmul %0, %1, %cst {dimension_numbers = #tpu.dot_dimension_numbers<[1], [0], [0], [1], [0, 0, 1, 1], [], []>} : vector<32x1024xbf16>, vector<1024x128xbf16>, vector<32x128xf32> -> vector<32x128xf32>
    %c0_3 = arith.constant 0 : index
    %c0_4 = arith.constant 0 : index
    %3 = vector.load %arg3[%c0_3, %c0_4] : memref<1x128xf32, #tpu.memory_space<vmem>>, vector<1x128xf32>
    %4 = vector.broadcast %3 : vector<1x128xf32> to vector<32x128xf32>
    %5 = arith.addf %2, %4 : vector<32x128xf32>
    %cst_5 = arith.constant 0.000000e+00 : f32
    %6 = vector.broadcast %cst_5 : f32 to vector<32x128xf32>
    %7 = arith.maximumf %5, %6 : vector<32x128xf32>
    %8 = arith.truncf %7 : vector<32x128xf32> to vector<32x128xbf16>
    %c0_6 = arith.constant 0 : index
    %c0_7 = arith.constant 0 : index
    %9 = vector.load %arg4[%c0_6, %c0_7] : memref<32x128xbf16, #tpu.memory_space<vmem>>, vector<32x128xbf16>
    tpu.vector_store %arg4[%c0_6, %c0_7], %8 {strides = array<i32>} : memref<32x128xbf16, #tpu.memory_space<vmem>>, vector<32x128xbf16>,
    return
  }
  func.func @transform_0(%arg0: i32) -> (i32, i32) {
    %c0_i32 = arith.constant 0 : i32
    %c0_i32_0 = arith.constant 0 : i32
    return %arg0, %c0_i32 : i32, i32
  }
  func.func @transform_1(%arg0: i32) -> (i32, i32) {
    %c0_i32 = arith.constant 0 : i32
    %c0_i32_0 = arith.constant 0 : i32
    %c0_i32_1 = arith.constant 0 : i32
    return %c0_i32, %c0_i32_0 : i32, i32
  }
  func.func @transform_2(%arg0: i32) -> (i32, i32) {
    %c0_i32 = arith.constant 0 : i32
    %c0_i32_0 = arith.constant 0 : i32
    %c0_i32_1 = arith.constant 0 : i32
    return %c0_i32, %c0_i32_0 : i32, i32
  }
  func.func @transform_3(%arg0: i32) -> (i32, i32) {
    %c0_i32 = arith.constant 0 : i32
    %c0_i32_0 = arith.constant 0 : i32
    return %arg0, %c0_i32 : i32, i32
  }
}

module attributes {stable_mosaic.version = 11 : i64} {
  func.func @_matmul_bias_relu_kernel(%arg0: i32, %arg1: memref<16x1024xbf16, #tpu.memory_space<vmem>>, %arg2: memref<1024x128xbf16, #tpu.memory_space<vmem>>, %arg3: memref<1x128xf32, #tpu.memory_space<vmem>>, %arg4: memref<16x128xbf16, #tpu.memory_space<vmem>>) attributes {dimension_semantics = [#tpu.dimension_semantics<parallel>], iteration_bounds = array<i64: 1>, scalar_prefetch = 0 : i64, scratch_operands = 0 : i64, tpu.core_type = #tpu.core_type<tc>, window_params = [{transform_indices = @transform_0, window_bounds = array<i64: 16, 1024>}, {pipeline_mode = #tpu.pipeline_mode<synchronous>, transform_indices = @transform_1, window_bounds = array<i64: 1024, 128>}, {pipeline_mode = #tpu.pipeline_mode<synchronous>, transform_indices = @transform_2, window_bounds = array<i64: 1, 128>}, {transform_indices = @transform_3, window_bounds = array<i64: 16, 128>}]} {
    %c0 = arith.constant 0 : index
    %c0_0 = arith.constant 0 : index
    %0 = vector.load %arg1[%c0, %c0_0] : memref<16x1024xbf16, #tpu.memory_space<vmem>>, vector<16x1024xbf16>
    %c0_1 = arith.constant 0 : index
    %c0_2 = arith.constant 0 : index
    %1 = vector.load %arg2[%c0_1, %c0_2] : memref<1024x128xbf16, #tpu.memory_space<vmem>>, vector<1024x128xbf16>
    %cst = arith.constant dense<0.000000e+00> : vector<16x128xf32>
    %2 = tpu.matmul %0, %1, %cst {dimension_numbers = #tpu.dot_dimension_numbers<[1], [0], [0], [1], [0, 0, 1, 1], [], []>} : vector<16x1024xbf16>, vector<1024x128xbf16>, vector<16x128xf32> -> vector<16x128xf32>
    %c0_3 = arith.constant 0 : index
    %c0_4 = arith.constant 0 : index
    %3 = vector.load %arg3[%c0_3, %c0_4] : memref<1x128xf32, #tpu.memory_space<vmem>>, vector<1x128xf32>
    %4 = vector.broadcast %3 : vector<1x128xf32> to vector<16x128xf32>
    %5 = arith.addf %2, %4 : vector<16x128xf32>
    %cst_5 = arith.constant 0.000000e+00 : f32
    %6 = vector.broadcast %cst_5 : f32 to vector<16x128xf32>
    %7 = arith.maximumf %5, %6 : vector<16x128xf32>
    %8 = arith.truncf %7 : vector<16x128xf32> to vector<16x128xbf16>
    %c0_6 = arith.constant 0 : index
    %c0_7 = arith.constant 0 : index
    %9 = vector.load %arg4[%c0_6, %c0_7] : memref<16x128xbf16, #tpu.memory_space<vmem>>, vector<16x128xbf16>
    tpu.vector_store %arg4[%c0_6, %c0_7], %8 {strides = array<i32>} : memref<16x128xbf16, #tpu.memory_space<vmem>>, vector<16x128xbf16>,
    return
  }
  func.func @transform_0(%arg0: i32) -> (i32, i32) {
    %c0_i32 = arith.constant 0 : i32
    %c0_i32_0 = arith.constant 0 : i32
    return %arg0, %c0_i32 : i32, i32
  }
  func.func @transform_1(%arg0: i32) -> (i32, i32) {
    %c0_i32 = arith.constant 0 : i32
    %c0_i32_0 = arith.constant 0 : i32
    %c0_i32_1 = arith.constant 0 : i32
    return %c0_i32, %c0_i32_0 : i32, i32
  }
  func.func @transform_2(%arg0: i32) -> (i32, i32) {
    %c0_i32 = arith.constant 0 : i32
    %c0_i32_0 = arith.constant 0 : i32
    %c0_i32_1 = arith.constant 0 : i32
    return %c0_i32, %c0_i32_0 : i32, i32
  }
  func.func @transform_3(%arg0: i32) -> (i32, i32) {
    %c0_i32 = arith.constant 0 : i32
    %c0_i32_0 = arith.constant 0 : i32
    return %arg0, %c0_i32 : i32, i32
  }
}

module attributes {stable_mosaic.version = 11 : i64} {
  func.func @_conv3_head_kernel(%arg0: i32, %arg1: memref<16x1024xbf16, #tpu.memory_space<vmem>>, %arg2: memref<576x64xbf16, #tpu.memory_space<vmem>>, %arg3: memref<1x64xf32, #tpu.memory_space<vmem>>, %arg4: memref<256x512xbf16, #tpu.memory_space<vmem>>, %arg5: memref<1x512xf32, #tpu.memory_space<vmem>>, %arg6: memref<512x128xbf16, #tpu.memory_space<vmem>>, %arg7: memref<1x128xf32, #tpu.memory_space<vmem>>, %arg8: memref<16x128xf32, #tpu.memory_space<vmem>>) attributes {dimension_semantics = [#tpu.dimension_semantics<parallel>], iteration_bounds = array<i64: 1>, scalar_prefetch = 0 : i64, scratch_operands = 0 : i64, tpu.core_type = #tpu.core_type<tc>, window_params = [{transform_indices = @transform_0, window_bounds = array<i64: 16, 1024>}, {pipeline_mode = #tpu.pipeline_mode<synchronous>, transform_indices = @transform_1, window_bounds = array<i64: 576, 64>}, {pipeline_mode = #tpu.pipeline_mode<synchronous>, transform_indices = @transform_2, window_bounds = array<i64: 1, 64>}, {pipeline_mode = #tpu.pipeline_mode<synchronous>, transform_indices = @transform_3, window_bounds = array<i64: 256, 512>}, {pipeline_mode = #tpu.pipeline_mode<synchronous>, transform_indices = @transform_4, window_bounds = array<i64: 1, 512>}, {pipeline_mode = #tpu.pipeline_mode<synchronous>, transform_indices = @transform_5, window_bounds = array<i64: 512, 128>}, {pipeline_mode = #tpu.pipeline_mode<synchronous>, transform_indices = @transform_6, window_bounds = array<i64: 1, 128>}, {transform_indices = @transform_7, window_bounds = array<i64: 16, 128>}]} {
    %cst = arith.constant 0.000000e+00 : f32
    %0 = vector.broadcast %cst : f32 to vector<16x512xf32>
    %cst_0 = arith.constant 0.000000e+00 : f32
    %1 = vector.broadcast %cst_0 : f32 to vector<16x64xf32>
    %c0 = arith.constant 0 : index
    %c0_1 = arith.constant 0 : index
    %2 = vector.load %arg1[%c0, %c0_1] : memref<16x1024xbf16, #tpu.memory_space<vmem>>, vector<16x64xbf16>
    %c0_2 = arith.constant 0 : index
    %c0_3 = arith.constant 0 : index
    %3 = vector.load %arg2[%c0_2, %c0_3] : memref<576x64xbf16, #tpu.memory_space<vmem>>, vector<64x64xbf16>
    %cst_4 = arith.constant dense<0.000000e+00> : vector<16x64xf32>
    %4 = tpu.matmul %2, %3, %cst_4 {dimension_numbers = #tpu.dot_dimension_numbers<[1], [0], [0], [1], [0, 0, 1, 1], [], []>} : vector<16x64xbf16>, vector<64x64xbf16>, vector<16x64xf32> -> vector<16x64xf32>
    %5 = arith.addf %1, %4 : vector<16x64xf32>
    %c0_5 = arith.constant 0 : index
    %c64 = arith.constant 64 : index
    %6 = vector.load %arg1[%c0_5, %c64] : memref<16x1024xbf16, #tpu.memory_space<vmem>>, vector<16x64xbf16>
    %c64_6 = arith.constant 64 : index
    %c0_7 = arith.constant 0 : index
    %7 = vector.load %arg2[%c64_6, %c0_7] : memref<576x64xbf16, #tpu.memory_space<vmem>>, vector<64x64xbf16>
    %cst_8 = arith.constant dense<0.000000e+00> : vector<16x64xf32>
    %8 = tpu.matmul %6, %7, %cst_8 {dimension_numbers = #tpu.dot_dimension_numbers<[1], [0], [0], [1], [0, 0, 1, 1], [], []>} : vector<16x64xbf16>, vector<64x64xbf16>, vector<16x64xf32> -> vector<16x64xf32>
    %9 = arith.addf %5, %8 : vector<16x64xf32>
    %c0_9 = arith.constant 0 : index
    %c128 = arith.constant 128 : index
    %10 = vector.load %arg1[%c0_9, %c128] : memref<16x1024xbf16, #tpu.memory_space<vmem>>, vector<16x64xbf16>
    %c128_10 = arith.constant 128 : index
    %c0_11 = arith.constant 0 : index
    %11 = vector.load %arg2[%c128_10, %c0_11] : memref<576x64xbf16, #tpu.memory_space<vmem>>, vector<64x64xbf16>
    %cst_12 = arith.constant dense<0.000000e+00> : vector<16x64xf32>
    %12 = tpu.matmul %10, %11, %cst_12 {dimension_numbers = #tpu.dot_dimension_numbers<[1], [0], [0], [1], [0, 0, 1, 1], [], []>} : vector<16x64xbf16>, vector<64x64xbf16>, vector<16x64xf32> -> vector<16x64xf32>
    %13 = arith.addf %9, %12 : vector<16x64xf32>
    %c0_13 = arith.constant 0 : index
    %c256 = arith.constant 256 : index
    %14 = vector.load %arg1[%c0_13, %c256] : memref<16x1024xbf16, #tpu.memory_space<vmem>>, vector<16x64xbf16>
    %c192 = arith.constant 192 : index
    %c0_14 = arith.constant 0 : index
    %15 = vector.load %arg2[%c192, %c0_14] : memref<576x64xbf16, #tpu.memory_space<vmem>>, vector<64x64xbf16>
    %cst_15 = arith.constant dense<0.000000e+00> : vector<16x64xf32>
    %16 = tpu.matmul %14, %15, %cst_15 {dimension_numbers = #tpu.dot_dimension_numbers<[1], [0], [0], [1], [0, 0, 1, 1], [], []>} : vector<16x64xbf16>, vector<64x64xbf16>, vector<16x64xf32> -> vector<16x64xf32>
    %17 = arith.addf %13, %16 : vector<16x64xf32>
    %c0_16 = arith.constant 0 : index
    %c320 = arith.constant 320 : index
    %18 = vector.load %arg1[%c0_16, %c320] : memref<16x1024xbf16, #tpu.memory_space<vmem>>, vector<16x64xbf16>
    %c256_17 = arith.constant 256 : index
    %c0_18 = arith.constant 0 : index
    %19 = vector.load %arg2[%c256_17, %c0_18] : memref<576x64xbf16, #tpu.memory_space<vmem>>, vector<64x64xbf16>
    %cst_19 = arith.constant dense<0.000000e+00> : vector<16x64xf32>
    %20 = tpu.matmul %18, %19, %cst_19 {dimension_numbers = #tpu.dot_dimension_numbers<[1], [0], [0], [1], [0, 0, 1, 1], [], []>} : vector<16x64xbf16>, vector<64x64xbf16>, vector<16x64xf32> -> vector<16x64xf32>
    %21 = arith.addf %17, %20 : vector<16x64xf32>
    %c0_20 = arith.constant 0 : index
    %c384 = arith.constant 384 : index
    %22 = vector.load %arg1[%c0_20, %c384] : memref<16x1024xbf16, #tpu.memory_space<vmem>>, vector<16x64xbf16>
    %c320_21 = arith.constant 320 : index
    %c0_22 = arith.constant 0 : index
    %23 = vector.load %arg2[%c320_21, %c0_22] : memref<576x64xbf16, #tpu.memory_space<vmem>>, vector<64x64xbf16>
    %cst_23 = arith.constant dense<0.000000e+00> : vector<16x64xf32>
    %24 = tpu.matmul %22, %23, %cst_23 {dimension_numbers = #tpu.dot_dimension_numbers<[1], [0], [0], [1], [0, 0, 1, 1], [], []>} : vector<16x64xbf16>, vector<64x64xbf16>, vector<16x64xf32> -> vector<16x64xf32>
    %25 = arith.addf %21, %24 : vector<16x64xf32>
    %c0_24 = arith.constant 0 : index
    %c512 = arith.constant 512 : index
    %26 = vector.load %arg1[%c0_24, %c512] : memref<16x1024xbf16, #tpu.memory_space<vmem>>, vector<16x64xbf16>
    %c384_25 = arith.constant 384 : index
    %c0_26 = arith.constant 0 : index
    %27 = vector.load %arg2[%c384_25, %c0_26] : memref<576x64xbf16, #tpu.memory_space<vmem>>, vector<64x64xbf16>
    %cst_27 = arith.constant dense<0.000000e+00> : vector<16x64xf32>
    %28 = tpu.matmul %26, %27, %cst_27 {dimension_numbers = #tpu.dot_dimension_numbers<[1], [0], [0], [1], [0, 0, 1, 1], [], []>} : vector<16x64xbf16>, vector<64x64xbf16>, vector<16x64xf32> -> vector<16x64xf32>
    %29 = arith.addf %25, %28 : vector<16x64xf32>
    %c0_28 = arith.constant 0 : index
    %c576 = arith.constant 576 : index
    %30 = vector.load %arg1[%c0_28, %c576] : memref<16x1024xbf16, #tpu.memory_space<vmem>>, vector<16x64xbf16>
    %c448 = arith.constant 448 : index
    %c0_29 = arith.constant 0 : index
    %31 = vector.load %arg2[%c448, %c0_29] : memref<576x64xbf16, #tpu.memory_space<vmem>>, vector<64x64xbf16>
    %cst_30 = arith.constant dense<0.000000e+00> : vector<16x64xf32>
    %32 = tpu.matmul %30, %31, %cst_30 {dimension_numbers = #tpu.dot_dimension_numbers<[1], [0], [0], [1], [0, 0, 1, 1], [], []>} : vector<16x64xbf16>, vector<64x64xbf16>, vector<16x64xf32> -> vector<16x64xf32>
    %33 = arith.addf %29, %32 : vector<16x64xf32>
    %c0_31 = arith.constant 0 : index
    %c640 = arith.constant 640 : index
    %34 = vector.load %arg1[%c0_31, %c640] : memref<16x1024xbf16, #tpu.memory_space<vmem>>, vector<16x64xbf16>
    %c512_32 = arith.constant 512 : index
    %c0_33 = arith.constant 0 : index
    %35 = vector.load %arg2[%c512_32, %c0_33] : memref<576x64xbf16, #tpu.memory_space<vmem>>, vector<64x64xbf16>
    %cst_34 = arith.constant dense<0.000000e+00> : vector<16x64xf32>
    %36 = tpu.matmul %34, %35, %cst_34 {dimension_numbers = #tpu.dot_dimension_numbers<[1], [0], [0], [1], [0, 0, 1, 1], [], []>} : vector<16x64xbf16>, vector<64x64xbf16>, vector<16x64xf32> -> vector<16x64xf32>
    %37 = arith.addf %33, %36 : vector<16x64xf32>
    %c0_35 = arith.constant 0 : index
    %c0_36 = arith.constant 0 : index
    %38 = vector.load %arg3[%c0_35, %c0_36] : memref<1x64xf32, #tpu.memory_space<vmem>>, vector<1x64xf32>
    %39 = vector.broadcast %38 : vector<1x64xf32> to vector<16x64xf32>
    %40 = arith.addf %37, %39 : vector<16x64xf32>
    %cst_37 = arith.constant 0.000000e+00 : f32
    %41 = vector.broadcast %cst_37 : f32 to vector<16x64xf32>
    %42 = arith.maximumf %40, %41 : vector<16x64xf32>
    %43 = arith.truncf %42 : vector<16x64xf32> to vector<16x64xbf16>
    %c0_38 = arith.constant 0 : index
    %c0_39 = arith.constant 0 : index
    %44 = vector.load %arg4[%c0_38, %c0_39] : memref<256x512xbf16, #tpu.memory_space<vmem>>, vector<64x512xbf16>
    %cst_40 = arith.constant dense<0.000000e+00> : vector<16x512xf32>
    %45 = tpu.matmul %43, %44, %cst_40 {dimension_numbers = #tpu.dot_dimension_numbers<[1], [0], [0], [1], [0, 0, 1, 1], [], []>} : vector<16x64xbf16>, vector<64x512xbf16>, vector<16x512xf32> -> vector<16x512xf32>
    %46 = arith.addf %0, %45 : vector<16x512xf32>
    %cst_41 = arith.constant 0.000000e+00 : f32
    %47 = vector.broadcast %cst_41 : f32 to vector<16x64xf32>
    %c0_42 = arith.constant 0 : index
    %c64_43 = arith.constant 64 : index
    %48 = vector.load %arg1[%c0_42, %c64_43] : memref<16x1024xbf16, #tpu.memory_space<vmem>>, vector<16x64xbf16>
    %c0_44 = arith.constant 0 : index
    %c0_45 = arith.constant 0 : index
    %49 = vector.load %arg2[%c0_44, %c0_45] : memref<576x64xbf16, #tpu.memory_space<vmem>>, vector<64x64xbf16>
    %cst_46 = arith.constant dense<0.000000e+00> : vector<16x64xf32>
    %50 = tpu.matmul %48, %49, %cst_46 {dimension_numbers = #tpu.dot_dimension_numbers<[1], [0], [0], [1], [0, 0, 1, 1], [], []>} : vector<16x64xbf16>, vector<64x64xbf16>, vector<16x64xf32> -> vector<16x64xf32>
    %51 = arith.addf %47, %50 : vector<16x64xf32>
    %c0_47 = arith.constant 0 : index
    %c128_48 = arith.constant 128 : index
    %52 = vector.load %arg1[%c0_47, %c128_48] : memref<16x1024xbf16, #tpu.memory_space<vmem>>, vector<16x64xbf16>
    %c64_49 = arith.constant 64 : index
    %c0_50 = arith.constant 0 : index
    %53 = vector.load %arg2[%c64_49, %c0_50] : memref<576x64xbf16, #tpu.memory_space<vmem>>, vector<64x64xbf16>
    %cst_51 = arith.constant dense<0.000000e+00> : vector<16x64xf32>
    %54 = tpu.matmul %52, %53, %cst_51 {dimension_numbers = #tpu.dot_dimension_numbers<[1], [0], [0], [1], [0, 0, 1, 1], [], []>} : vector<16x64xbf16>, vector<64x64xbf16>, vector<16x64xf32> -> vector<16x64xf32>
    %55 = arith.addf %51, %54 : vector<16x64xf32>
    %c0_52 = arith.constant 0 : index
    %c192_53 = arith.constant 192 : index
    %56 = vector.load %arg1[%c0_52, %c192_53] : memref<16x1024xbf16, #tpu.memory_space<vmem>>, vector<16x64xbf16>
    %c128_54 = arith.constant 128 : index
    %c0_55 = arith.constant 0 : index
    %57 = vector.load %arg2[%c128_54, %c0_55] : memref<576x64xbf16, #tpu.memory_space<vmem>>, vector<64x64xbf16>
    %cst_56 = arith.constant dense<0.000000e+00> : vector<16x64xf32>
    %58 = tpu.matmul %56, %57, %cst_56 {dimension_numbers = #tpu.dot_dimension_numbers<[1], [0], [0], [1], [0, 0, 1, 1], [], []>} : vector<16x64xbf16>, vector<64x64xbf16>, vector<16x64xf32> -> vector<16x64xf32>
    %59 = arith.addf %55, %58 : vector<16x64xf32>
    %c0_57 = arith.constant 0 : index
    %c320_58 = arith.constant 320 : index
    %60 = vector.load %arg1[%c0_57, %c320_58] : memref<16x1024xbf16, #tpu.memory_space<vmem>>, vector<16x64xbf16>
    %c192_59 = arith.constant 192 : index
    %c0_60 = arith.constant 0 : index
    %61 = vector.load %arg2[%c192_59, %c0_60] : memref<576x64xbf16, #tpu.memory_space<vmem>>, vector<64x64xbf16>
    %cst_61 = arith.constant dense<0.000000e+00> : vector<16x64xf32>
    %62 = tpu.matmul %60, %61, %cst_61 {dimension_numbers = #tpu.dot_dimension_numbers<[1], [0], [0], [1], [0, 0, 1, 1], [], []>} : vector<16x64xbf16>, vector<64x64xbf16>, vector<16x64xf32> -> vector<16x64xf32>
    %63 = arith.addf %59, %62 : vector<16x64xf32>
    %c0_62 = arith.constant 0 : index
    %c384_63 = arith.constant 384 : index
    %64 = vector.load %arg1[%c0_62, %c384_63] : memref<16x1024xbf16, #tpu.memory_space<vmem>>, vector<16x64xbf16>
    %c256_64 = arith.constant 256 : index
    %c0_65 = arith.constant 0 : index
    %65 = vector.load %arg2[%c256_64, %c0_65] : memref<576x64xbf16, #tpu.memory_space<vmem>>, vector<64x64xbf16>
    %cst_66 = arith.constant dense<0.000000e+00> : vector<16x64xf32>
    %66 = tpu.matmul %64, %65, %cst_66 {dimension_numbers = #tpu.dot_dimension_numbers<[1], [0], [0], [1], [0, 0, 1, 1], [], []>} : vector<16x64xbf16>, vector<64x64xbf16>, vector<16x64xf32> -> vector<16x64xf32>
    %67 = arith.addf %63, %66 : vector<16x64xf32>
    %c0_67 = arith.constant 0 : index
    %c448_68 = arith.constant 448 : index
    %68 = vector.load %arg1[%c0_67, %c448_68] : memref<16x1024xbf16, #tpu.memory_space<vmem>>, vector<16x64xbf16>
    %c320_69 = arith.constant 320 : index
    %c0_70 = arith.constant 0 : index
    %69 = vector.load %arg2[%c320_69, %c0_70] : memref<576x64xbf16, #tpu.memory_space<vmem>>, vector<64x64xbf16>
    %cst_71 = arith.constant dense<0.000000e+00> : vector<16x64xf32>
    %70 = tpu.matmul %68, %69, %cst_71 {dimension_numbers = #tpu.dot_dimension_numbers<[1], [0], [0], [1], [0, 0, 1, 1], [], []>} : vector<16x64xbf16>, vector<64x64xbf16>, vector<16x64xf32> -> vector<16x64xf32>
    %71 = arith.addf %67, %70 : vector<16x64xf32>
    %c0_72 = arith.constant 0 : index
    %c576_73 = arith.constant 576 : index
    %72 = vector.load %arg1[%c0_72, %c576_73] : memref<16x1024xbf16, #tpu.memory_space<vmem>>, vector<16x64xbf16>
    %c384_74 = arith.constant 384 : index
    %c0_75 = arith.constant 0 : index
    %73 = vector.load %arg2[%c384_74, %c0_75] : memref<576x64xbf16, #tpu.memory_space<vmem>>, vector<64x64xbf16>
    %cst_76 = arith.constant dense<0.000000e+00> : vector<16x64xf32>
    %74 = tpu.matmul %72, %73, %cst_76 {dimension_numbers = #tpu.dot_dimension_numbers<[1], [0], [0], [1], [0, 0, 1, 1], [], []>} : vector<16x64xbf16>, vector<64x64xbf16>, vector<16x64xf32> -> vector<16x64xf32>
    %75 = arith.addf %71, %74 : vector<16x64xf32>
    %c0_77 = arith.constant 0 : index
    %c640_78 = arith.constant 640 : index
    %76 = vector.load %arg1[%c0_77, %c640_78] : memref<16x1024xbf16, #tpu.memory_space<vmem>>, vector<16x64xbf16>
    %c448_79 = arith.constant 448 : index
    %c0_80 = arith.constant 0 : index
    %77 = vector.load %arg2[%c448_79, %c0_80] : memref<576x64xbf16, #tpu.memory_space<vmem>>, vector<64x64xbf16>
    %cst_81 = arith.constant dense<0.000000e+00> : vector<16x64xf32>
    %78 = tpu.matmul %76, %77, %cst_81 {dimension_numbers = #tpu.dot_dimension_numbers<[1], [0], [0], [1], [0, 0, 1, 1], [], []>} : vector<16x64xbf16>, vector<64x64xbf16>, vector<16x64xf32> -> vector<16x64xf32>
    %79 = arith.addf %75, %78 : vector<16x64xf32>
    %c0_82 = arith.constant 0 : index
    %c704 = arith.constant 704 : index
    %80 = vector.load %arg1[%c0_82, %c704] : memref<16x1024xbf16, #tpu.memory_space<vmem>>, vector<16x64xbf16>
    %c512_83 = arith.constant 512 : index
    %c0_84 = arith.constant 0 : index
    %81 = vector.load %arg2[%c512_83, %c0_84] : memref<576x64xbf16, #tpu.memory_space<vmem>>, vector<64x64xbf16>
    %cst_85 = arith.constant dense<0.000000e+00> : vector<16x64xf32>
    %82 = tpu.matmul %80, %81, %cst_85 {dimension_numbers = #tpu.dot_dimension_numbers<[1], [0], [0], [1], [0, 0, 1, 1], [], []>} : vector<16x64xbf16>, vector<64x64xbf16>, vector<16x64xf32> -> vector<16x64xf32>
    %83 = arith.addf %79, %82 : vector<16x64xf32>
    %c0_86 = arith.constant 0 : index
    %c0_87 = arith.constant 0 : index
    %84 = vector.load %arg3[%c0_86, %c0_87] : memref<1x64xf32, #tpu.memory_space<vmem>>, vector<1x64xf32>
    %85 = vector.broadcast %84 : vector<1x64xf32> to vector<16x64xf32>
    %86 = arith.addf %83, %85 : vector<16x64xf32>
    %cst_88 = arith.constant 0.000000e+00 : f32
    %87 = vector.broadcast %cst_88 : f32 to vector<16x64xf32>
    %88 = arith.maximumf %86, %87 : vector<16x64xf32>
    %89 = arith.truncf %88 : vector<16x64xf32> to vector<16x64xbf16>
    %c64_89 = arith.constant 64 : index
    %c0_90 = arith.constant 0 : index
    %90 = vector.load %arg4[%c64_89, %c0_90] : memref<256x512xbf16, #tpu.memory_space<vmem>>, vector<64x512xbf16>
    %cst_91 = arith.constant dense<0.000000e+00> : vector<16x512xf32>
    %91 = tpu.matmul %89, %90, %cst_91 {dimension_numbers = #tpu.dot_dimension_numbers<[1], [0], [0], [1], [0, 0, 1, 1], [], []>} : vector<16x64xbf16>, vector<64x512xbf16>, vector<16x512xf32> -> vector<16x512xf32>
    %92 = arith.addf %46, %91 : vector<16x512xf32>
    %cst_92 = arith.constant 0.000000e+00 : f32
    %93 = vector.broadcast %cst_92 : f32 to vector<16x64xf32>
    %c0_93 = arith.constant 0 : index
    %c256_94 = arith.constant 256 : index
    %94 = vector.load %arg1[%c0_93, %c256_94] : memref<16x1024xbf16, #tpu.memory_space<vmem>>, vector<16x64xbf16>
    %c0_95 = arith.constant 0 : index
    %c0_96 = arith.constant 0 : index
    %95 = vector.load %arg2[%c0_95, %c0_96] : memref<576x64xbf16, #tpu.memory_space<vmem>>, vector<64x64xbf16>
    %cst_97 = arith.constant dense<0.000000e+00> : vector<16x64xf32>
    %96 = tpu.matmul %94, %95, %cst_97 {dimension_numbers = #tpu.dot_dimension_numbers<[1], [0], [0], [1], [0, 0, 1, 1], [], []>} : vector<16x64xbf16>, vector<64x64xbf16>, vector<16x64xf32> -> vector<16x64xf32>
    %97 = arith.addf %93, %96 : vector<16x64xf32>
    %c0_98 = arith.constant 0 : index
    %c320_99 = arith.constant 320 : index
    %98 = vector.load %arg1[%c0_98, %c320_99] : memref<16x1024xbf16, #tpu.memory_space<vmem>>, vector<16x64xbf16>
    %c64_100 = arith.constant 64 : index
    %c0_101 = arith.constant 0 : index
    %99 = vector.load %arg2[%c64_100, %c0_101] : memref<576x64xbf16, #tpu.memory_space<vmem>>, vector<64x64xbf16>
    %cst_102 = arith.constant dense<0.000000e+00> : vector<16x64xf32>
    %100 = tpu.matmul %98, %99, %cst_102 {dimension_numbers = #tpu.dot_dimension_numbers<[1], [0], [0], [1], [0, 0, 1, 1], [], []>} : vector<16x64xbf16>, vector<64x64xbf16>, vector<16x64xf32> -> vector<16x64xf32>
    %101 = arith.addf %97, %100 : vector<16x64xf32>
    %c0_103 = arith.constant 0 : index
    %c384_104 = arith.constant 384 : index
    %102 = vector.load %arg1[%c0_103, %c384_104] : memref<16x1024xbf16, #tpu.memory_space<vmem>>, vector<16x64xbf16>
    %c128_105 = arith.constant 128 : index
    %c0_106 = arith.constant 0 : index
    %103 = vector.load %arg2[%c128_105, %c0_106] : memref<576x64xbf16, #tpu.memory_space<vmem>>, vector<64x64xbf16>
    %cst_107 = arith.constant dense<0.000000e+00> : vector<16x64xf32>
    %104 = tpu.matmul %102, %103, %cst_107 {dimension_numbers = #tpu.dot_dimension_numbers<[1], [0], [0], [1], [0, 0, 1, 1], [], []>} : vector<16x64xbf16>, vector<64x64xbf16>, vector<16x64xf32> -> vector<16x64xf32>
    %105 = arith.addf %101, %104 : vector<16x64xf32>
    %c0_108 = arith.constant 0 : index
    %c512_109 = arith.constant 512 : index
    %106 = vector.load %arg1[%c0_108, %c512_109] : memref<16x1024xbf16, #tpu.memory_space<vmem>>, vector<16x64xbf16>
    %c192_110 = arith.constant 192 : index
    %c0_111 = arith.constant 0 : index
    %107 = vector.load %arg2[%c192_110, %c0_111] : memref<576x64xbf16, #tpu.memory_space<vmem>>, vector<64x64xbf16>
    %cst_112 = arith.constant dense<0.000000e+00> : vector<16x64xf32>
    %108 = tpu.matmul %106, %107, %cst_112 {dimension_numbers = #tpu.dot_dimension_numbers<[1], [0], [0], [1], [0, 0, 1, 1], [], []>} : vector<16x64xbf16>, vector<64x64xbf16>, vector<16x64xf32> -> vector<16x64xf32>
    %109 = arith.addf %105, %108 : vector<16x64xf32>
    %c0_113 = arith.constant 0 : index
    %c576_114 = arith.constant 576 : index
    %110 = vector.load %arg1[%c0_113, %c576_114] : memref<16x1024xbf16, #tpu.memory_space<vmem>>, vector<16x64xbf16>
    %c256_115 = arith.constant 256 : index
    %c0_116 = arith.constant 0 : index
    %111 = vector.load %arg2[%c256_115, %c0_116] : memref<576x64xbf16, #tpu.memory_space<vmem>>, vector<64x64xbf16>
    %cst_117 = arith.constant dense<0.000000e+00> : vector<16x64xf32>
    %112 = tpu.matmul %110, %111, %cst_117 {dimension_numbers = #tpu.dot_dimension_numbers<[1], [0], [0], [1], [0, 0, 1, 1], [], []>} : vector<16x64xbf16>, vector<64x64xbf16>, vector<16x64xf32> -> vector<16x64xf32>
    %113 = arith.addf %109, %112 : vector<16x64xf32>
    %c0_118 = arith.constant 0 : index
    %c640_119 = arith.constant 640 : index
    %114 = vector.load %arg1[%c0_118, %c640_119] : memref<16x1024xbf16, #tpu.memory_space<vmem>>, vector<16x64xbf16>
    %c320_120 = arith.constant 320 : index
    %c0_121 = arith.constant 0 : index
    %115 = vector.load %arg2[%c320_120, %c0_121] : memref<576x64xbf16, #tpu.memory_space<vmem>>, vector<64x64xbf16>
    %cst_122 = arith.constant dense<0.000000e+00> : vector<16x64xf32>
    %116 = tpu.matmul %114, %115, %cst_122 {dimension_numbers = #tpu.dot_dimension_numbers<[1], [0], [0], [1], [0, 0, 1, 1], [], []>} : vector<16x64xbf16>, vector<64x64xbf16>, vector<16x64xf32> -> vector<16x64xf32>
    %117 = arith.addf %113, %116 : vector<16x64xf32>
    %c0_123 = arith.constant 0 : index
    %c768 = arith.constant 768 : index
    %118 = vector.load %arg1[%c0_123, %c768] : memref<16x1024xbf16, #tpu.memory_space<vmem>>, vector<16x64xbf16>
    %c384_124 = arith.constant 384 : index
    %c0_125 = arith.constant 0 : index
    %119 = vector.load %arg2[%c384_124, %c0_125] : memref<576x64xbf16, #tpu.memory_space<vmem>>, vector<64x64xbf16>
    %cst_126 = arith.constant dense<0.000000e+00> : vector<16x64xf32>
    %120 = tpu.matmul %118, %119, %cst_126 {dimension_numbers = #tpu.dot_dimension_numbers<[1], [0], [0], [1], [0, 0, 1, 1], [], []>} : vector<16x64xbf16>, vector<64x64xbf16>, vector<16x64xf32> -> vector<16x64xf32>
    %121 = arith.addf %117, %120 : vector<16x64xf32>
    %c0_127 = arith.constant 0 : index
    %c832 = arith.constant 832 : index
    %122 = vector.load %arg1[%c0_127, %c832] : memref<16x1024xbf16, #tpu.memory_space<vmem>>, vector<16x64xbf16>
    %c448_128 = arith.constant 448 : index
    %c0_129 = arith.constant 0 : index
    %123 = vector.load %arg2[%c448_128, %c0_129] : memref<576x64xbf16, #tpu.memory_space<vmem>>, vector<64x64xbf16>
    %cst_130 = arith.constant dense<0.000000e+00> : vector<16x64xf32>
    %124 = tpu.matmul %122, %123, %cst_130 {dimension_numbers = #tpu.dot_dimension_numbers<[1], [0], [0], [1], [0, 0, 1, 1], [], []>} : vector<16x64xbf16>, vector<64x64xbf16>, vector<16x64xf32> -> vector<16x64xf32>
    %125 = arith.addf %121, %124 : vector<16x64xf32>
    %c0_131 = arith.constant 0 : index
    %c896 = arith.constant 896 : index
    %126 = vector.load %arg1[%c0_131, %c896] : memref<16x1024xbf16, #tpu.memory_space<vmem>>, vector<16x64xbf16>
    %c512_132 = arith.constant 512 : index
    %c0_133 = arith.constant 0 : index
    %127 = vector.load %arg2[%c512_132, %c0_133] : memref<576x64xbf16, #tpu.memory_space<vmem>>, vector<64x64xbf16>
    %cst_134 = arith.constant dense<0.000000e+00> : vector<16x64xf32>
    %128 = tpu.matmul %126, %127, %cst_134 {dimension_numbers = #tpu.dot_dimension_numbers<[1], [0], [0], [1], [0, 0, 1, 1], [], []>} : vector<16x64xbf16>, vector<64x64xbf16>, vector<16x64xf32> -> vector<16x64xf32>
    %129 = arith.addf %125, %128 : vector<16x64xf32>
    %c0_135 = arith.constant 0 : index
    %c0_136 = arith.constant 0 : index
    %130 = vector.load %arg3[%c0_135, %c0_136] : memref<1x64xf32, #tpu.memory_space<vmem>>, vector<1x64xf32>
    %131 = vector.broadcast %130 : vector<1x64xf32> to vector<16x64xf32>
    %132 = arith.addf %129, %131 : vector<16x64xf32>
    %cst_137 = arith.constant 0.000000e+00 : f32
    %133 = vector.broadcast %cst_137 : f32 to vector<16x64xf32>
    %134 = arith.maximumf %132, %133 : vector<16x64xf32>
    %135 = arith.truncf %134 : vector<16x64xf32> to vector<16x64xbf16>
    %c128_138 = arith.constant 128 : index
    %c0_139 = arith.constant 0 : index
    %136 = vector.load %arg4[%c128_138, %c0_139] : memref<256x512xbf16, #tpu.memory_space<vmem>>, vector<64x512xbf16>
    %cst_140 = arith.constant dense<0.000000e+00> : vector<16x512xf32>
    %137 = tpu.matmul %135, %136, %cst_140 {dimension_numbers = #tpu.dot_dimension_numbers<[1], [0], [0], [1], [0, 0, 1, 1], [], []>} : vector<16x64xbf16>, vector<64x512xbf16>, vector<16x512xf32> -> vector<16x512xf32>
    %138 = arith.addf %92, %137 : vector<16x512xf32>
    %cst_141 = arith.constant 0.000000e+00 : f32
    %139 = vector.broadcast %cst_141 : f32 to vector<16x64xf32>
    %c0_142 = arith.constant 0 : index
    %c320_143 = arith.constant 320 : index
    %140 = vector.load %arg1[%c0_142, %c320_143] : memref<16x1024xbf16, #tpu.memory_space<vmem>>, vector<16x64xbf16>
    %c0_144 = arith.constant 0 : index
    %c0_145 = arith.constant 0 : index
    %141 = vector.load %arg2[%c0_144, %c0_145] : memref<576x64xbf16, #tpu.memory_space<vmem>>, vector<64x64xbf16>
    %cst_146 = arith.constant dense<0.000000e+00> : vector<16x64xf32>
    %142 = tpu.matmul %140, %141, %cst_146 {dimension_numbers = #tpu.dot_dimension_numbers<[1], [0], [0], [1], [0, 0, 1, 1], [], []>} : vector<16x64xbf16>, vector<64x64xbf16>, vector<16x64xf32> -> vector<16x64xf32>
    %143 = arith.addf %139, %142 : vector<16x64xf32>
    %c0_147 = arith.constant 0 : index
    %c384_148 = arith.constant 384 : index
    %144 = vector.load %arg1[%c0_147, %c384_148] : memref<16x1024xbf16, #tpu.memory_space<vmem>>, vector<16x64xbf16>
    %c64_149 = arith.constant 64 : index
    %c0_150 = arith.constant 0 : index
    %145 = vector.load %arg2[%c64_149, %c0_150] : memref<576x64xbf16, #tpu.memory_space<vmem>>, vector<64x64xbf16>
    %cst_151 = arith.constant dense<0.000000e+00> : vector<16x64xf32>
    %146 = tpu.matmul %144, %145, %cst_151 {dimension_numbers = #tpu.dot_dimension_numbers<[1], [0], [0], [1], [0, 0, 1, 1], [], []>} : vector<16x64xbf16>, vector<64x64xbf16>, vector<16x64xf32> -> vector<16x64xf32>
    %147 = arith.addf %143, %146 : vector<16x64xf32>
    %c0_152 = arith.constant 0 : index
    %c448_153 = arith.constant 448 : index
    %148 = vector.load %arg1[%c0_152, %c448_153] : memref<16x1024xbf16, #tpu.memory_space<vmem>>, vector<16x64xbf16>
    %c128_154 = arith.constant 128 : index
    %c0_155 = arith.constant 0 : index
    %149 = vector.load %arg2[%c128_154, %c0_155] : memref<576x64xbf16, #tpu.memory_space<vmem>>, vector<64x64xbf16>
    %cst_156 = arith.constant dense<0.000000e+00> : vector<16x64xf32>
    %150 = tpu.matmul %148, %149, %cst_156 {dimension_numbers = #tpu.dot_dimension_numbers<[1], [0], [0], [1], [0, 0, 1, 1], [], []>} : vector<16x64xbf16>, vector<64x64xbf16>, vector<16x64xf32> -> vector<16x64xf32>
    %151 = arith.addf %147, %150 : vector<16x64xf32>
    %c0_157 = arith.constant 0 : index
    %c576_158 = arith.constant 576 : index
    %152 = vector.load %arg1[%c0_157, %c576_158] : memref<16x1024xbf16, #tpu.memory_space<vmem>>, vector<16x64xbf16>
    %c192_159 = arith.constant 192 : index
    %c0_160 = arith.constant 0 : index
    %153 = vector.load %arg2[%c192_159, %c0_160] : memref<576x64xbf16, #tpu.memory_space<vmem>>, vector<64x64xbf16>
    %cst_161 = arith.constant dense<0.000000e+00> : vector<16x64xf32>
    %154 = tpu.matmul %152, %153, %cst_161 {dimension_numbers = #tpu.dot_dimension_numbers<[1], [0], [0], [1], [0, 0, 1, 1], [], []>} : vector<16x64xbf16>, vector<64x64xbf16>, vector<16x64xf32> -> vector<16x64xf32>
    %155 = arith.addf %151, %154 : vector<16x64xf32>
    %c0_162 = arith.constant 0 : index
    %c640_163 = arith.constant 640 : index
    %156 = vector.load %arg1[%c0_162, %c640_163] : memref<16x1024xbf16, #tpu.memory_space<vmem>>, vector<16x64xbf16>
    %c256_164 = arith.constant 256 : index
    %c0_165 = arith.constant 0 : index
    %157 = vector.load %arg2[%c256_164, %c0_165] : memref<576x64xbf16, #tpu.memory_space<vmem>>, vector<64x64xbf16>
    %cst_166 = arith.constant dense<0.000000e+00> : vector<16x64xf32>
    %158 = tpu.matmul %156, %157, %cst_166 {dimension_numbers = #tpu.dot_dimension_numbers<[1], [0], [0], [1], [0, 0, 1, 1], [], []>} : vector<16x64xbf16>, vector<64x64xbf16>, vector<16x64xf32> -> vector<16x64xf32>
    %159 = arith.addf %155, %158 : vector<16x64xf32>
    %c0_167 = arith.constant 0 : index
    %c704_168 = arith.constant 704 : index
    %160 = vector.load %arg1[%c0_167, %c704_168] : memref<16x1024xbf16, #tpu.memory_space<vmem>>, vector<16x64xbf16>
    %c320_169 = arith.constant 320 : index
    %c0_170 = arith.constant 0 : index
    %161 = vector.load %arg2[%c320_169, %c0_170] : memref<576x64xbf16, #tpu.memory_space<vmem>>, vector<64x64xbf16>
    %cst_171 = arith.constant dense<0.000000e+00> : vector<16x64xf32>
    %162 = tpu.matmul %160, %161, %cst_171 {dimension_numbers = #tpu.dot_dimension_numbers<[1], [0], [0], [1], [0, 0, 1, 1], [], []>} : vector<16x64xbf16>, vector<64x64xbf16>, vector<16x64xf32> -> vector<16x64xf32>
    %163 = arith.addf %159, %162 : vector<16x64xf32>
    %c0_172 = arith.constant 0 : index
    %c832_173 = arith.constant 832 : index
    %164 = vector.load %arg1[%c0_172, %c832_173] : memref<16x1024xbf16, #tpu.memory_space<vmem>>, vector<16x64xbf16>
    %c384_174 = arith.constant 384 : index
    %c0_175 = arith.constant 0 : index
    %165 = vector.load %arg2[%c384_174, %c0_175] : memref<576x64xbf16, #tpu.memory_space<vmem>>, vector<64x64xbf16>
    %cst_176 = arith.constant dense<0.000000e+00> : vector<16x64xf32>
    %166 = tpu.matmul %164, %165, %cst_176 {dimension_numbers = #tpu.dot_dimension_numbers<[1], [0], [0], [1], [0, 0, 1, 1], [], []>} : vector<16x64xbf16>, vector<64x64xbf16>, vector<16x64xf32> -> vector<16x64xf32>
    %167 = arith.addf %163, %166 : vector<16x64xf32>
    %c0_177 = arith.constant 0 : index
    %c896_178 = arith.constant 896 : index
    %168 = vector.load %arg1[%c0_177, %c896_178] : memref<16x1024xbf16, #tpu.memory_space<vmem>>, vector<16x64xbf16>
    %c448_179 = arith.constant 448 : index
    %c0_180 = arith.constant 0 : index
    %169 = vector.load %arg2[%c448_179, %c0_180] : memref<576x64xbf16, #tpu.memory_space<vmem>>, vector<64x64xbf16>
    %cst_181 = arith.constant dense<0.000000e+00> : vector<16x64xf32>
    %170 = tpu.matmul %168, %169, %cst_181 {dimension_numbers = #tpu.dot_dimension_numbers<[1], [0], [0], [1], [0, 0, 1, 1], [], []>} : vector<16x64xbf16>, vector<64x64xbf16>, vector<16x64xf32> -> vector<16x64xf32>
    %171 = arith.addf %167, %170 : vector<16x64xf32>
    %c0_182 = arith.constant 0 : index
    %c960 = arith.constant 960 : index
    %172 = vector.load %arg1[%c0_182, %c960] : memref<16x1024xbf16, #tpu.memory_space<vmem>>, vector<16x64xbf16>
    %c512_183 = arith.constant 512 : index
    %c0_184 = arith.constant 0 : index
    %173 = vector.load %arg2[%c512_183, %c0_184] : memref<576x64xbf16, #tpu.memory_space<vmem>>, vector<64x64xbf16>
    %cst_185 = arith.constant dense<0.000000e+00> : vector<16x64xf32>
    %174 = tpu.matmul %172, %173, %cst_185 {dimension_numbers = #tpu.dot_dimension_numbers<[1], [0], [0], [1], [0, 0, 1, 1], [], []>} : vector<16x64xbf16>, vector<64x64xbf16>, vector<16x64xf32> -> vector<16x64xf32>
    %175 = arith.addf %171, %174 : vector<16x64xf32>
    %c0_186 = arith.constant 0 : index
    %c0_187 = arith.constant 0 : index
    %176 = vector.load %arg3[%c0_186, %c0_187] : memref<1x64xf32, #tpu.memory_space<vmem>>, vector<1x64xf32>
    %177 = vector.broadcast %176 : vector<1x64xf32> to vector<16x64xf32>
    %178 = arith.addf %175, %177 : vector<16x64xf32>
    %cst_188 = arith.constant 0.000000e+00 : f32
    %179 = vector.broadcast %cst_188 : f32 to vector<16x64xf32>
    %180 = arith.maximumf %178, %179 : vector<16x64xf32>
    %181 = arith.truncf %180 : vector<16x64xf32> to vector<16x64xbf16>
    %c192_189 = arith.constant 192 : index
    %c0_190 = arith.constant 0 : index
    %182 = vector.load %arg4[%c192_189, %c0_190] : memref<256x512xbf16, #tpu.memory_space<vmem>>, vector<64x512xbf16>
    %cst_191 = arith.constant dense<0.000000e+00> : vector<16x512xf32>
    %183 = tpu.matmul %181, %182, %cst_191 {dimension_numbers = #tpu.dot_dimension_numbers<[1], [0], [0], [1], [0, 0, 1, 1], [], []>} : vector<16x64xbf16>, vector<64x512xbf16>, vector<16x512xf32> -> vector<16x512xf32>
    %184 = arith.addf %138, %183 : vector<16x512xf32>
    %c0_192 = arith.constant 0 : index
    %c0_193 = arith.constant 0 : index
    %185 = vector.load %arg5[%c0_192, %c0_193] : memref<1x512xf32, #tpu.memory_space<vmem>>, vector<1x512xf32>
    %186 = vector.broadcast %185 : vector<1x512xf32> to vector<16x512xf32>
    %187 = arith.addf %184, %186 : vector<16x512xf32>
    %cst_194 = arith.constant 0.000000e+00 : f32
    %188 = vector.broadcast %cst_194 : f32 to vector<16x512xf32>
    %189 = arith.maximumf %187, %188 : vector<16x512xf32>
    %190 = arith.truncf %189 : vector<16x512xf32> to vector<16x512xbf16>
    %c0_195 = arith.constant 0 : index
    %c0_196 = arith.constant 0 : index
    %191 = vector.load %arg6[%c0_195, %c0_196] : memref<512x128xbf16, #tpu.memory_space<vmem>>, vector<512x128xbf16>
    %cst_197 = arith.constant dense<0.000000e+00> : vector<16x128xf32>
    %192 = tpu.matmul %190, %191, %cst_197 {dimension_numbers = #tpu.dot_dimension_numbers<[1], [0], [0], [1], [0, 0, 1, 1], [], []>} : vector<16x512xbf16>, vector<512x128xbf16>, vector<16x128xf32> -> vector<16x128xf32>
    %c0_198 = arith.constant 0 : index
    %c0_199 = arith.constant 0 : index
    %193 = vector.load %arg7[%c0_198, %c0_199] : memref<1x128xf32, #tpu.memory_space<vmem>>, vector<1x128xf32>
    %194 = vector.broadcast %193 : vector<1x128xf32> to vector<16x128xf32>
    %195 = arith.addf %192, %194 : vector<16x128xf32>
    %c0_200 = arith.constant 0 : index
    %c0_201 = arith.constant 0 : index
    %196 = vector.load %arg8[%c0_200, %c0_201] : memref<16x128xf32, #tpu.memory_space<vmem>>, vector<16x128xf32>
    tpu.vector_store %arg8[%c0_200, %c0_201], %195 {strides = array<i32>} : memref<16x128xf32, #tpu.memory_space<vmem>>, vector<16x128xf32>,
    return
  }
  func.func @transform_0(%arg0: i32) -> (i32, i32) {
    %c0_i32 = arith.constant 0 : i32
    %c0_i32_0 = arith.constant 0 : i32
    return %arg0, %c0_i32 : i32, i32
  }
  func.func @transform_1(%arg0: i32) -> (i32, i32) {
    %c0_i32 = arith.constant 0 : i32
    %c0_i32_0 = arith.constant 0 : i32
    %c0_i32_1 = arith.constant 0 : i32
    return %c0_i32, %c0_i32_0 : i32, i32
  }
  func.func @transform_2(%arg0: i32) -> (i32, i32) {
    %c0_i32 = arith.constant 0 : i32
    %c0_i32_0 = arith.constant 0 : i32
    %c0_i32_1 = arith.constant 0 : i32
    return %c0_i32, %c0_i32_0 : i32, i32
  }
  func.func @transform_3(%arg0: i32) -> (i32, i32) {
    %c0_i32 = arith.constant 0 : i32
    %c0_i32_0 = arith.constant 0 : i32
    %c0_i32_1 = arith.constant 0 : i32
    return %c0_i32, %c0_i32_0 : i32, i32
  }
  func.func @transform_4(%arg0: i32) -> (i32, i32) {
    %c0_i32 = arith.constant 0 : i32
    %c0_i32_0 = arith.constant 0 : i32
    %c0_i32_1 = arith.constant 0 : i32
    return %c0_i32, %c0_i32_0 : i32, i32
  }
  func.func @transform_5(%arg0: i32) -> (i32, i32) {
    %c0_i32 = arith.constant 0 : i32
    %c0_i32_0 = arith.constant 0 : i32
    %c0_i32_1 = arith.constant 0 : i32
    return %c0_i32, %c0_i32_0 : i32, i32
  }
  func.func @transform_6(%arg0: i32) -> (i32, i32) {
    %c0_i32 = arith.constant 0 : i32
    %c0_i32_0 = arith.constant 0 : i32
    %c0_i32_1 = arith.constant 0 : i32
    return %c0_i32, %c0_i32_0 : i32, i32
  }
  func.func @transform_7(%arg0: i32) -> (i32, i32) {
    %c0_i32 = arith.constant 0 : i32
    %c0_i32_0 = arith.constant 0 : i32
    return %arg0, %c0_i32 : i32, i32
  }
}

</mosaic_0001>

<llo_original>
// kernel: discrete_cnn_critic_forward.3
$region0: #{discrete_cnn_critic_forward.3}
  #allocation0 [shape = 'u32[]', space=smem, size = 0x4, offset = 0x4, fixed_abs, tag = 'smem constant byte address 0x4 - core index']
  #allocation1 [shape = 'u32[144,128]{1,0:T(1,128)}', space=vmem, size = 0x12000, scoped, tag = 'internal scratch']
  %s0 = inlined_call_operand.vmem [shape: bf16[64,1024], index: 0, kind: input, shape index: {}]
  %s1 = inlined_call_operand.vmem [shape: bf16[1024,128], index: 1, kind: input, shape index: {}]
  %s2 = inlined_call_operand.vmem [shape: f32[1,128], index: 2, kind: input, shape index: {}]
  %s3 = inlined_call_operand.vmem [shape: bf16[64,128], index: 3, kind: output, shape index: {}]
  %s4 = sld [smem:[#allocation0]]
  $region45: #{discrete_cnn_critic_forward.3} parent=0
    _
  %s6 = ssub.s32 1, %s4
  %s7 = scalar_select 0, %s6, %s4
  loop: start=0, step=1, limit=4
  $region2: #{discrete_cnn_critic_forward.3} parent=0 // loop_pre_header
    _
  $region3: #{discrete_cnn_critic_forward.3} parent=0 // loop_header
    %s9 = sphi 0, %s13
    %p10 = scmp.ge.s32.totalorder %s9, 4
    %s19 = sphi 0, %s21
    %s22 = sphi 0, %s19
    %s23 = sphi 0, %s22
    %s39 = sphi 0, %s23
    %s43 = sphi 0, %s43
    %s45 = sphi 0, %s43
    %s46 = sphi 0, %s45
    %s60 = sphi 0, %s46
    %s64 = sphi 0, %s64
    %s66 = sphi 0, %s64
    %s67 = sphi 0, %s66
    %s81 = sphi 0, %s67
    %s87 = sphi 0, %s89
    %s90 = sphi 0, %s87
    %s91 = sphi 0, %s90
    %s107 = sphi 0, %s91
  $region4: #{discrete_cnn_critic_forward.3} parent=0 // loop_header_branch
    %12 = sbr.rel (%p10) target = $region8
  $region5: #{discrete_cnn_critic_forward.3} parent=0 // loop_body
    %s14 = ssub.s32 %s9, 1
    %s15 = ssub.s32 %s9, 2
    %s16 = sadd.s32 %s9, 1
    %s17 = ssub.s32 %s9, %s16
    %p18 = scmp.eq.s32.totalorder %s17, 0
    %s20 = sadd.s32 %s19, 1
    %s21 = scalar_select %p18, %s19, %s20
    %p24 = pneg %p18
    %p25 = scmp.eq.s32.totalorder %s9, 1
    %p26 = por %p24, %p25
    %p27 = scmp.ne.s32.totalorder %s19, %s22
    %p28 = scmp.eq.s32.totalorder %s9, 0
    %p29 = por %p27, %p28
    %p30 = scmp.ne.s32.totalorder %s19, %s22
    %p31 = scmp.eq.s32.totalorder %s14, 1
    %p32 = por %p30, %p31
    %p33 = scmp.ne.s32.totalorder %s22, %s23
    %p34 = scmp.eq.s32.totalorder %s14, 0
    %p35 = por %p33, %p34
    %p36 = scmp.ne.s32.totalorder %s22, %s23
    %p37 = scmp.eq.s32.totalorder %s15, 1
    %p38 = por %p36, %p37
    %p40 = scmp.ne.s32.totalorder %s23, %s39
    %p41 = scmp.eq.s32.totalorder %s15, 0
    %p42 = por %p40, %p41
    %s44 = sadd.s32 %s43, 1
    %p47 = scmp.eq.s32.totalorder %s9, 1
    %p48 = scmp.ne.s32.totalorder %s43, %s45
    %p49 = scmp.eq.s32.totalorder %s9, 0
    %p50 = por %p48, %p49
    %p51 = scmp.ne.s32.totalorder %s43, %s45
    %p52 = scmp.eq.s32.totalorder %s14, 1
    %p53 = por %p51, %p52
    %p54 = scmp.ne.s32.totalorder %s45, %s46
    %p55 = scmp.eq.s32.totalorder %s14, 0
    %p56 = por %p54, %p55
    %p57 = scmp.ne.s32.totalorder %s45, %s46
    %p58 = scmp.eq.s32.totalorder %s15, 1
    %p59 = por %p57, %p58
    %p61 = scmp.ne.s32.totalorder %s46, %s60
    %p62 = scmp.eq.s32.totalorder %s15, 0
    %p63 = por %p61, %p62
    %s65 = sadd.s32 %s64, 1
    %p68 = scmp.eq.s32.totalorder %s9, 1
    %p69 = scmp.ne.s32.totalorder %s64, %s66
    %p70 = scmp.eq.s32.totalorder %s9, 0
    %p71 = por %p69, %p70
    %p72 = scmp.ne.s32.totalorder %s64, %s66
    %p73 = scmp.eq.s32.totalorder %s14, 1
    %p74 = por %p72, %p73
    %p75 = scmp.ne.s32.totalorder %s66, %s67
    %p76 = scmp.eq.s32.totalorder %s14, 0
    %p77 = por %p75, %p76
    %p78 = scmp.ne.s32.totalorder %s66, %s67
    %p79 = scmp.eq.s32.totalorder %s15, 1
    %p80 = por %p78, %p79
    %p82 = scmp.ne.s32.totalorder %s67, %s81
    %p83 = scmp.eq.s32.totalorder %s15, 0
    %p84 = por %p82, %p83
    %s85 = ssub.s32 %s9, %s16
    %p86 = scmp.eq.s32.totalorder %s85, 0
    %s88 = sadd.s32 %s87, 1
    %s89 = scalar_select %p86, %s87, %s88
    %p92 = pneg %p86
    %p93 = scmp.eq.s32.totalorder %s9, 1
    %p94 = por %p92, %p93
    %p95 = scmp.ne.s32.totalorder %s87, %s90
    %p96 = scmp.eq.s32.totalorder %s9, 0
    %p97 = por %p95, %p96
    %p98 = scmp.ne.s32.totalorder %s87, %s90
    %p99 = scmp.eq.s32.totalorder %s14, 1
    %p100 = por %p98, %p99
    %p101 = scmp.ne.s32.totalorder %s90, %s91
    %p102 = scmp.eq.s32.totalorder %s14, 0
    %p103 = por %p101, %p102
    %p104 = scmp.ne.s32.totalorder %s90, %s91
    %p105 = scmp.eq.s32.totalorder %s15, 1
    %p106 = por %p104, %p105
    %p108 = scmp.ne.s32.totalorder %s91, %s107
    %p109 = scmp.eq.s32.totalorder %s15, 0
    %p110 = por %p108, %p109
    %p111 = scmp.le.s32.totalorder 1, %s9
    %p112 = scmp.lt.s32.totalorder %s9, 3
    %p113 = pnand %p111, %p112
    %p114 = pneg %p113
    // Predicated region
    $region9: #{discrete_cnn_critic_forward.3} parent=5 // pred_check
      _
    $region10: #{discrete_cnn_critic_forward.3} parent=5 // pred_check_branch
      %116 = sbr.rel (%p113) target = $region12
    $region11: #{discrete_cnn_critic_forward.3} parent=5 // pred_region
      %s117 = ssub.s32 %s9, 1
      // Predicated region
      $region13: #{discrete_cnn_critic_forward.3} parent=11 // pred_check
        %p118 = pneg %p56
      $region14: #{discrete_cnn_critic_forward.3} parent=11 // pred_check_branch
        %120 = sbr.rel (%p118) target = $region16
      $region15: #{discrete_cnn_critic_forward.3} parent=11 // pred_region
        _
      $region16: #{discrete_cnn_critic_forward.3} parent=11 // pred_fallthru
        _
      // Predicated region
      $region17: #{discrete_cnn_critic_forward.3} parent=11 // pred_check
        %p121 = pneg %p77
      $region18: #{discrete_cnn_critic_forward.3} parent=11 // pred_check_branch
        %123 = sbr.rel (%p121) target = $region20
      $region19: #{discrete_cnn_critic_forward.3} parent=11 // pred_region
        _
      $region20: #{discrete_cnn_critic_forward.3} parent=11 // pred_fallthru
        _
    $region12: #{discrete_cnn_critic_forward.3} parent=5 // pred_fallthru
      _
    %p124 = scmp.lt.s32.totalorder %s9, 2
    // Predicated region
    $region21: #{discrete_cnn_critic_forward.3} parent=5 // pred_check
      %p125 = pneg %p124
    $region22: #{discrete_cnn_critic_forward.3} parent=5 // pred_check_branch
      %127 = sbr.rel (%p125) target = $region24
    $region23: #{discrete_cnn_critic_forward.3} parent=5 // pred_region
      // Predicated region
      $region25: #{discrete_cnn_critic_forward.3} parent=23 // pred_check
        %p128 = pneg %p29
      $region26: #{discrete_cnn_critic_forward.3} parent=23 // pred_check_branch
        %130 = sbr.rel (%p128) target = $region28
      $region27: #{discrete_cnn_critic_forward.3} parent=23 // pred_region
        %s131 = smul.u32 4, %s9
        %p132 = scmp.lt.s32.totalorder %s131, 7
        %s133 = scalar_select %p132, %s131, 7
        %s134 = smul.addr %s133, 8
        %s135 = smul.addr %s134, 4
        %s136 = scalar_lea.vmem %s0, %s135
        %s137 = smul.u32 4, %s9
      $region28: #{discrete_cnn_critic_forward.3} parent=23 // pred_fallthru
        _
    $region24: #{discrete_cnn_critic_forward.3} parent=5 // pred_fallthru
      _
    %p138 = scmp.le.s32.totalorder 1, %s9
    %p139 = scmp.lt.s32.totalorder %s9, 3
    %p140 = pnand %p138, %p139
    %p141 = pneg %p140
    // Predicated region
    $region29: #{discrete_cnn_critic_forward.3} parent=5 // pred_check
      _
    $region30: #{discrete_cnn_critic_forward.3} parent=5 // pred_check_branch
      %143 = sbr.rel (%p140) target = $region32
    $region31: #{discrete_cnn_critic_forward.3} parent=5 // pred_region
      %s144 = ssub.s32 %s9, 1
      %s145 = smul.u32 4, %s14
      %p146 = scmp.lt.s32.totalorder %s145, 7
      %s147 = scalar_select %p146, %s145, 7
      %s148 = smul.addr %s147, 8
      %s149 = smul.addr %s148, 4
      %s150 = scalar_lea.vmem %s0, %s149
      %p151 = pneg %p35
      %p152 = pneg %p32
      %p153 = pneg %p56
      %p154 = pneg %p53
      %p155 = pneg %p77
      %p156 = pneg %p74
      %p157 = pneg %p103
      %p158 = pneg %p100
      %s159 = smul.u32 4, %s14
      %p160 = scmp.lt.s32.totalorder %s159, 7
      %s161 = scalar_select %p160, %s159, 7
      %s162 = smul.addr %s161, 4
      %s163 = scalar_lea.vmem %s3, %s162
      %s164 = smul.u32 4, %s14
      %p165 = scmp.lt.s32.totalorder %s164, 7
      %s166 = scalar_select %p165, %s164, 7
      %s167 = smul.addr %s166, 8
      %s168 = smul.addr %s167, 4
      %s169 = scalar_lea.vmem %s0, %s168
      %s170 = smul.u32 4, %s14
      %s171 = smul.u32 4, %s14
      %p172 = scmp.lt.s32.totalorder %s171, 7
      %s173 = scalar_select %p172, %s171, 7
      %s174 = smul.addr %s173, 4
      %s175 = scalar_lea.vmem %s3, %s174
      %s176 = smul.u32 4, %s14
      %v178 = vld [vmem:[%s169] sm:$0xff]
      %v179 = vld [vmem:[%s169 + $0x8] sm:$0xff]
      %v180 = vld [vmem:[%s169 + $0x10] sm:$0xff]
      %v181 = vld [vmem:[%s169 + $0x18] sm:$0xff]
      %v182 = vld [vmem:[%s169 + $0x20] sm:$0xff]
      %v183 = vld [vmem:[%s169 + $0x28] sm:$0xff]
      %v184 = vld [vmem:[%s169 + $0x30] sm:$0xff]
      %v185 = vld [vmem:[%s169 + $0x38] sm:$0xff]
      %v186 = vld [vmem:[%s169 + $0x40] sm:$0xff]
      %v187 = vld [vmem:[%s169 + $0x48] sm:$0xff]
      %v188 = vld [vmem:[%s169 + $0x50] sm:$0xff]
      %v189 = vld [vmem:[%s169 + $0x58] sm:$0xff]
      %v190 = vld [vmem:[%s169 + $0x60] sm:$0xff]
      %v191 = vld [vmem:[%s169 + $0x68] sm:$0xff]
      %v192 = vld [vmem:[%s169 + $0x70] sm:$0xff]
      %v193 = vld [vmem:[%s169 + $0x78] sm:$0xff]
      %v194 = vld [vmem:[%s1] sm:$0xf]
      %v195 = vld [vmem:[%s1 + $0x4] sm:$0xf]
      %v196 = vld [vmem:[%s1 + $0x8] sm:$0xf]
      %v197 = vld [vmem:[%s1 + $0xc] sm:$0xf]
      %v198 = vld [vmem:[%s1 + $0x10] sm:$0xf]
      %v199 = vld [vmem:[%s1 + $0x14] sm:$0xf]
      %v200 = vld [vmem:[%s1 + $0x18] sm:$0xf]
      %v201 = vld [vmem:[%s1 + $0x1c] sm:$0xf]
      %v202 = vld [vmem:[%s1 + $0x20] sm:$0xf]
      %v203 = vld [vmem:[%s1 + $0x24] sm:$0xf]
      %v204 = vld [vmem:[%s1 + $0x28] sm:$0xf]
      %v205 = vld [vmem:[%s1 + $0x2c] sm:$0xf]
      %v206 = vld [vmem:[%s1 + $0x30] sm:$0xf]
      %v207 = vld [vmem:[%s1 + $0x34] sm:$0xf]
      %v208 = vld [vmem:[%s1 + $0x38] sm:$0xf]
      %v209 = vld [vmem:[%s1 + $0x3c] sm:$0xf]
      %v210 = vld [vmem:[%s1 + $0x40] sm:$0xf]
      %v211 = vld [vmem:[%s1 + $0x44] sm:$0xf]
      %v212 = vld [vmem:[%s1 + $0x48] sm:$0xf]
      %v213 = vld [vmem:[%s1 + $0x4c] sm:$0xf]
      %v214 = vld [vmem:[%s1 + $0x50] sm:$0xf]
      %v215 = vld [vmem:[%s1 + $0x54] sm:$0xf]
      %v216 = vld [vmem:[%s1 + $0x58] sm:$0xf]
      %v217 = vld [vmem:[%s1 + $0x5c] sm:$0xf]
      %v218 = vld [vmem:[%s1 + $0x60] sm:$0xf]
      %v219 = vld [vmem:[%s1 + $0x64] sm:$0xf]
      %v220 = vld [vmem:[%s1 + $0x68] sm:$0xf]
      %v221 = vld [vmem:[%s1 + $0x6c] sm:$0xf]
      %v222 = vld [vmem:[%s1 + $0x70] sm:$0xf]
      %v223 = vld [vmem:[%s1 + $0x74] sm:$0xf]
      %v224 = vld [vmem:[%s1 + $0x78] sm:$0xf]
      %v225 = vld [vmem:[%s1 + $0x7c] sm:$0xf]
      %v226 = vld [vmem:[%s1 + $0x80] sm:$0xf]
      %v227 = vld [vmem:[%s1 + $0x84] sm:$0xf]
      %v228 = vld [vmem:[%s1 + $0x88] sm:$0xf]
      %v229 = vld [vmem:[%s1 + $0x8c] sm:$0xf]
      %v230 = vld [vmem:[%s1 + $0x90] sm:$0xf]
      %v231 = vld [vmem:[%s1 + $0x94] sm:$0xf]
      %v232 = vld [vmem:[%s1 + $0x98] sm:$0xf]
      %v233 = vld [vmem:[%s1 + $0x9c] sm:$0xf]
      %v234 = vld [vmem:[%s1 + $0xa0] sm:$0xf]
      %v235 = vld [vmem:[%s1 + $0xa4] sm:$0xf]
      %v236 = vld [vmem:[%s1 + $0xa8] sm:$0xf]
      %v237 = vld [vmem:[%s1 + $0xac] sm:$0xf]
      %v238 = vld [vmem:[%s1 + $0xb0] sm:$0xf]
      %v239 = vld [vmem:[%s1 + $0xb4] sm:$0xf]
      %v240 = vld [vmem:[%s1 + $0xb8] sm:$0xf]
      %v241 = vld [vmem:[%s1 + $0xbc] sm:$0xf]
      %v242 = vld [vmem:[%s1 + $0xc0] sm:$0xf]
      %v243 = vld [vmem:[%s1 + $0xc4] sm:$0xf]
      %v244 = vld [vmem:[%s1 + $0xc8] sm:$0xf]
      %v245 = vld [vmem:[%s1 + $0xcc] sm:$0xf]
      %v246 = vld [vmem:[%s1 + $0xd0] sm:$0xf]
      %v247 = vld [vmem:[%s1 + $0xd4] sm:$0xf]
      %v248 = vld [vmem:[%s1 + $0xd8] sm:$0xf]
      %v249 = vld [vmem:[%s1 + $0xdc] sm:$0xf]
      %v250 = vld [vmem:[%s1 + $0xe0] sm:$0xf]
      %v251 = vld [vmem:[%s1 + $0xe4] sm:$0xf]
      %v252 = vld [vmem:[%s1 + $0xe8] sm:$0xf]
      %v253 = vld [vmem:[%s1 + $0xec] sm:$0xf]
      %v254 = vld [vmem:[%s1 + $0xf0] sm:$0xf]
      %v255 = vld [vmem:[%s1 + $0xf4] sm:$0xf]
      %v256 = vld [vmem:[%s1 + $0xf8] sm:$0xf]
      %v257 = vld [vmem:[%s1 + $0xfc] sm:$0xf]
      %v258 = vld [vmem:[%s1 + $0x100] sm:$0xf]
      %v259 = vld [vmem:[%s1 + $0x104] sm:$0xf]
      %v260 = vld [vmem:[%s1 + $0x108] sm:$0xf]
      %v261 = vld [vmem:[%s1 + $0x10c] sm:$0xf]
      %v262 = vld [vmem:[%s1 + $0x110] sm:$0xf]
      %v263 = vld [vmem:[%s1 + $0x114] sm:$0xf]
      %v264 = vld [vmem:[%s1 + $0x118] sm:$0xf]
      %v265 = vld [vmem:[%s1 + $0x11c] sm:$0xf]
      %v266 = vld [vmem:[%s1 + $0x120] sm:$0xf]
      %v267 = vld [vmem:[%s1 + $0x124] sm:$0xf]
      %v268 = vld [vmem:[%s1 + $0x128] sm:$0xf]
      %v269 = vld [vmem:[%s1 + $0x12c] sm:$0xf]
      %v270 = vld [vmem:[%s1 + $0x130] sm:$0xf]
      %v271 = vld [vmem:[%s1 + $0x134] sm:$0xf]
      %v272 = vld [vmem:[%s1 + $0x138] sm:$0xf]
      %v273 = vld [vmem:[%s1 + $0x13c] sm:$0xf]
      %v274 = vld [vmem:[%s1 + $0x140] sm:$0xf]
      %v275 = vld [vmem:[%s1 + $0x144] sm:$0xf]
      %v276 = vld [vmem:[%s1 + $0x148] sm:$0xf]
      %v277 = vld [vmem:[%s1 + $0x14c] sm:$0xf]
      %v278 = vld [vmem:[%s1 + $0x150] sm:$0xf]
      %v279 = vld [vmem:[%s1 + $0x154] sm:$0xf]
      %v280 = vld [vmem:[%s1 + $0x158] sm:$0xf]
      %v281 = vld [vmem:[%s1 + $0x15c] sm:$0xf]
      %v282 = vld [vmem:[%s1 + $0x160] sm:$0xf]
      %v283 = vld [vmem:[%s1 + $0x164] sm:$0xf]
      %v284 = vld [vmem:[%s1 + $0x168] sm:$0xf]
      %v285 = vld [vmem:[%s1 + $0x16c] sm:$0xf]
      %v286 = vld [vmem:[%s1 + $0x170] sm:$0xf]
      %v287 = vld [vmem:[%s1 + $0x174] sm:$0xf]
      %v288 = vld [vmem:[%s1 + $0x178] sm:$0xf]
      %v289 = vld [vmem:[%s1 + $0x17c] sm:$0xf]
      %v290 = vld [vmem:[%s1 + $0x180] sm:$0xf]
      %v291 = vld [vmem:[%s1 + $0x184] sm:$0xf]
      %v292 = vld [vmem:[%s1 + $0x188] sm:$0xf]
      %v293 = vld [vmem:[%s1 + $0x18c] sm:$0xf]
      %v294 = vld [vmem:[%s1 + $0x190] sm:$0xf]
      %v295 = vld [vmem:[%s1 + $0x194] sm:$0xf]
      %v296 = vld [vmem:[%s1 + $0x198] sm:$0xf]
      %v297 = vld [vmem:[%s1 + $0x19c] sm:$0xf]
      %v298 = vld [vmem:[%s1 + $0x1a0] sm:$0xf]
      %v299 = vld [vmem:[%s1 + $0x1a4] sm:$0xf]
      %v300 = vld [vmem:[%s1 + $0x1a8] sm:$0xf]
      %v301 = vld [vmem:[%s1 + $0x1ac] sm:$0xf]
      %v302 = vld [vmem:[%s1 + $0x1b0] sm:$0xf]
      %v303 = vld [vmem:[%s1 + $0x1b4] sm:$0xf]
      %v304 = vld [vmem:[%s1 + $0x1b8] sm:$0xf]
      %v305 = vld [vmem:[%s1 + $0x1bc] sm:$0xf]
      %v306 = vld [vmem:[%s1 + $0x1c0] sm:$0xf]
      %v307 = vld [vmem:[%s1 + $0x1c4] sm:$0xf]
      %v308 = vld [vmem:[%s1 + $0x1c8] sm:$0xf]
      %v309 = vld [vmem:[%s1 + $0x1cc] sm:$0xf]
      %v310 = vld [vmem:[%s1 + $0x1d0] sm:$0xf]
      %v311 = vld [vmem:[%s1 + $0x1d4] sm:$0xf]
      %v312 = vld [vmem:[%s1 + $0x1d8] sm:$0xf]
      %v313 = vld [vmem:[%s1 + $0x1dc] sm:$0xf]
      %v314 = vld [vmem:[%s1 + $0x1e0] sm:$0xf]
      %v315 = vld [vmem:[%s1 + $0x1e4] sm:$0xf]
      %v316 = vld [vmem:[%s1 + $0x1e8] sm:$0xf]
      %v317 = vld [vmem:[%s1 + $0x1ec] sm:$0xf]
      %v318 = vld [vmem:[%s1 + $0x1f0] sm:$0xf]
      %v319 = vld [vmem:[%s1 + $0x1f4] sm:$0xf]
      %v320 = vld [vmem:[%s1 + $0x1f8] sm:$0xf]
      %v321 = vld [vmem:[%s1 + $0x1fc] sm:$0xf]
      %v322 = vld [vmem:[%s2] sm:$0x1]
      %v324 = vlaneseq
      %v325 = vshrl.u32 %v324, 7
      %v326 = vsub.s32 0, %v325
      %v327 = vrot.slane %v322, %v326
      %v345 = vunpack.c.l.b16 %v178
      %v346 = vunpack.c.h.b16 %v178
      %v347 = vunpack.c.l.b16 %v179
      %v348 = vunpack.c.h.b16 %v179
      %v349 = vunpack.c.l.b16 %v180
      %v350 = vunpack.c.h.b16 %v180
      %v351 = vunpack.c.l.b16 %v181
      %v352 = vunpack.c.h.b16 %v181
      %v353 = vunpack.c.l.b16 %v182
      %v354 = vunpack.c.h.b16 %v182
      %v355 = vunpack.c.l.b16 %v183
      %v356 = vunpack.c.h.b16 %v183
      %v357 = vunpack.c.l.b16 %v184
      %v358 = vunpack.c.h.b16 %v184
      %v359 = vunpack.c.l.b16 %v185
      %v360 = vunpack.c.h.b16 %v185
      %v361 = vunpack.c.l.b16 %v186
      %v362 = vunpack.c.h.b16 %v186
      %v363 = vunpack.c.l.b16 %v187
      %v364 = vunpack.c.h.b16 %v187
      %v365 = vunpack.c.l.b16 %v188
      %v366 = vunpack.c.h.b16 %v188
      %v367 = vunpack.c.l.b16 %v189
      %v368 = vunpack.c.h.b16 %v189
      %v369 = vunpack.c.l.b16 %v190
      %v370 = vunpack.c.h.b16 %v190
      %v371 = vunpack.c.l.b16 %v191
      %v372 = vunpack.c.h.b16 %v191
      %v373 = vunpack.c.l.b16 %v192
      %v374 = vunpack.c.h.b16 %v192
      %v375 = vunpack.c.l.b16 %v193
      %v376 = vunpack.c.h.b16 %v193
      %v377 = vpack.c.b16 %v353, %v345
      %v378 = vpack.c.b16 %v354, %v346
      %v379 = vpack.c.b16 %v355, %v347
      %v380 = vpack.c.b16 %v356, %v348
      %v381 = vpack.c.b16 %v357, %v349
      %v382 = vpack.c.b16 %v358, %v350
      %v383 = vpack.c.b16 %v359, %v351
      %v384 = vpack.c.b16 %v360, %v352
      %v385 = vpack.c.b16 %v369, %v361
      %v386 = vpack.c.b16 %v370, %v362
      %v387 = vpack.c.b16 %v371, %v363
      %v388 = vpack.c.b16 %v372, %v364
      %v389 = vpack.c.b16 %v373, %v365
      %v390 = vpack.c.b16 %v374, %v366
      %v391 = vpack.c.b16 %v375, %v367
      %v392 = vpack.c.b16 %v376, %v368
      %v537 = vunpack.c.l.b16 %v194
      %v538 = vunpack.c.l.b16 %v195
      %v539 = vunpack.c.l.b16 %v196
      %v540 = vunpack.c.l.b16 %v197
      %v541 = vunpack.c.l.b16 %v198
      %v542 = vunpack.c.l.b16 %v199
      %v543 = vunpack.c.l.b16 %v200
      %v544 = vunpack.c.l.b16 %v201
      %v545 = vunpack.c.l.b16 %v202
      %v546 = vunpack.c.l.b16 %v203
      %v547 = vunpack.c.l.b16 %v204
      %v548 = vunpack.c.l.b16 %v205
      %v549 = vunpack.c.l.b16 %v206
      %v550 = vunpack.c.l.b16 %v207
      %v551 = vunpack.c.l.b16 %v208
      %v552 = vunpack.c.l.b16 %v209
      %v553 = vunpack.c.l.b16 %v210
      %v554 = vunpack.c.l.b16 %v211
      %v555 = vunpack.c.l.b16 %v212
      %v556 = vunpack.c.l.b16 %v213
      %v557 = vunpack.c.l.b16 %v214
      %v558 = vunpack.c.l.b16 %v215
      %v559 = vunpack.c.l.b16 %v216
      %v560 = vunpack.c.l.b16 %v217
      %v561 = vunpack.c.l.b16 %v218
      %v562 = vunpack.c.l.b16 %v219
      %v563 = vunpack.c.l.b16 %v220
      %v564 = vunpack.c.l.b16 %v221
      %v565 = vunpack.c.l.b16 %v222
      %v566 = vunpack.c.l.b16 %v223
      %v567 = vunpack.c.l.b16 %v224
      %v568 = vunpack.c.l.b16 %v225
      %v569 = vunpack.c.l.b16 %v226
      %v570 = vunpack.c.l.b16 %v227
      %v571 = vunpack.c.l.b16 %v228
      %v572 = vunpack.c.l.b16 %v229
      %v573 = vunpack.c.l.b16 %v230
      %v574 = vunpack.c.l.b16 %v231
      %v575 = vunpack.c.l.b16 %v232
      %v576 = vunpack.c.l.b16 %v233
      %v577 = vunpack.c.l.b16 %v234
      %v578 = vunpack.c.l.b16 %v235
      %v579 = vunpack.c.l.b16 %v236
      %v580 = vunpack.c.l.b16 %v237
      %v581 = vunpack.c.l.b16 %v238
      %v582 = vunpack.c.l.b16 %v239
      %v583 = vunpack.c.l.b16 %v240
      %v584 = vunpack.c.l.b16 %v241
      %v585 = vunpack.c.l.b16 %v242
      %v586 = vunpack.c.l.b16 %v243
      %v587 = vunpack.c.l.b16 %v244
      %v588 = vunpack.c.l.b16 %v245
      %v589 = vunpack.c.l.b16 %v246
      %v590 = vunpack.c.l.b16 %v247
      %v591 = vunpack.c.l.b16 %v248
      %v592 = vunpack.c.l.b16 %v249
      %v593 = vunpack.c.l.b16 %v250
      %v594 = vunpack.c.l.b16 %v251
      %v595 = vunpack.c.l.b16 %v252
      %v596 = vunpack.c.l.b16 %v253
      %v597 = vunpack.c.l.b16 %v254
      %v598 = vunpack.c.l.b16 %v255
      %v599 = vunpack.c.l.b16 %v256
      %v600 = vunpack.c.l.b16 %v257
      %v601 = vunpack.c.l.b16 %v258
      %v602 = vunpack.c.l.b16 %v259
      %v603 = vunpack.c.l.b16 %v260
      %v604 = vunpack.c.l.b16 %v261
      %v605 = vunpack.c.l.b16 %v262
      %v606 = vunpack.c.l.b16 %v263
      %v607 = vunpack.c.l.b16 %v264
      %v608 = vunpack.c.l.b16 %v265
      %v609 = vunpack.c.l.b16 %v266
      %v610 = vunpack.c.l.b16 %v267
      %v611 = vunpack.c.l.b16 %v268
      %v612 = vunpack.c.l.b16 %v269
      %v613 = vunpack.c.l.b16 %v270
      %v614 = vunpack.c.l.b16 %v271
      %v615 = vunpack.c.l.b16 %v272
      %v616 = vunpack.c.l.b16 %v273
      %v617 = vunpack.c.l.b16 %v274
      %v618 = vunpack.c.l.b16 %v275
      %v619 = vunpack.c.l.b16 %v276
      %v620 = vunpack.c.l.b16 %v277
      %v621 = vunpack.c.l.b16 %v278
      %v622 = vunpack.c.l.b16 %v279
      %v623 = vunpack.c.l.b16 %v280
      %v624 = vunpack.c.l.b16 %v281
      %v625 = vunpack.c.l.b16 %v282
      %v626 = vunpack.c.l.b16 %v283
      %v627 = vunpack.c.l.b16 %v284
      %v628 = vunpack.c.l.b16 %v285
      %v629 = vunpack.c.l.b16 %v286
      %v630 = vunpack.c.l.b16 %v287
      %v631 = vunpack.c.l.b16 %v288
      %v632 = vunpack.c.l.b16 %v289
      %v633 = vunpack.c.l.b16 %v290
      %v634 = vunpack.c.l.b16 %v291
      %v635 = vunpack.c.l.b16 %v292
      %v636 = vunpack.c.l.b16 %v293
      %v637 = vunpack.c.l.b16 %v294
      %v638 = vunpack.c.l.b16 %v295
      %v639 = vunpack.c.l.b16 %v296
      %v640 = vunpack.c.l.b16 %v297
      %v641 = vunpack.c.l.b16 %v298
      %v642 = vunpack.c.l.b16 %v299
      %v643 = vunpack.c.l.b16 %v300
      %v644 = vunpack.c.l.b16 %v301
      %v645 = vunpack.c.l.b16 %v302
      %v646 = vunpack.c.l.b16 %v303
      %v647 = vunpack.c.l.b16 %v304
      %v648 = vunpack.c.l.b16 %v305
      %v649 = vunpack.c.l.b16 %v306
      %v650 = vunpack.c.l.b16 %v307
      %v651 = vunpack.c.l.b16 %v308
      %v652 = vunpack.c.l.b16 %v309
      %v653 = vunpack.c.l.b16 %v310
      %v654 = vunpack.c.l.b16 %v311
      %v655 = vunpack.c.l.b16 %v312
      %v656 = vunpack.c.l.b16 %v313
      %v657 = vunpack.c.l.b16 %v314
      %v658 = vunpack.c.l.b16 %v315
      %v659 = vunpack.c.l.b16 %v316
      %v660 = vunpack.c.l.b16 %v317
      %v661 = vunpack.c.l.b16 %v318
      %v662 = vunpack.c.l.b16 %v319
      %v663 = vunpack.c.l.b16 %v320
      %v664 = vunpack.c.l.b16 %v321
      %v665 = vpack.c.b16 %v538, %v537
      %v666 = vpack.c.b16 %v540, %v539
      %v667 = vpack.c.b16 %v542, %v541
      %v668 = vpack.c.b16 %v544, %v543
      %v669 = vpack.c.b16 %v546, %v545
      %v670 = vpack.c.b16 %v548, %v547
      %v671 = vpack.c.b16 %v550, %v549
      %v672 = vpack.c.b16 %v552, %v551
      %v673 = vpack.c.b16 %v554, %v553
      %v674 = vpack.c.b16 %v556, %v555
      %v675 = vpack.c.b16 %v558, %v557
      %v676 = vpack.c.b16 %v560, %v559
      %v677 = vpack.c.b16 %v562, %v561
      %v678 = vpack.c.b16 %v564, %v563
      %v679 = vpack.c.b16 %v566, %v565
      %v680 = vpack.c.b16 %v568, %v567
      %v681 = vpack.c.b16 %v570, %v569
      %v682 = vpack.c.b16 %v572, %v571
      %v683 = vpack.c.b16 %v574, %v573
      %v684 = vpack.c.b16 %v576, %v575
      %v685 = vpack.c.b16 %v578, %v577
      %v686 = vpack.c.b16 %v580, %v579
      %v687 = vpack.c.b16 %v582, %v581
      %v688 = vpack.c.b16 %v584, %v583
      %v689 = vpack.c.b16 %v586, %v585
      %v690 = vpack.c.b16 %v588, %v587
      %v691 = vpack.c.b16 %v590, %v589
      %v692 = vpack.c.b16 %v592, %v591
      %v693 = vpack.c.b16 %v594, %v593
      %v694 = vpack.c.b16 %v596, %v595
      %v695 = vpack.c.b16 %v598, %v597
      %v696 = vpack.c.b16 %v600, %v599
      %v697 = vpack.c.b16 %v602, %v601
      %v698 = vpack.c.b16 %v604, %v603
      %v699 = vpack.c.b16 %v606, %v605
      %v700 = vpack.c.b16 %v608, %v607
      %v701 = vpack.c.b16 %v610, %v609
      %v702 = vpack.c.b16 %v612, %v611
      %v703 = vpack.c.b16 %v614, %v613
      %v704 = vpack.c.b16 %v616, %v615
      %v705 = vpack.c.b16 %v618, %v617
      %v706 = vpack.c.b16 %v620, %v619
      %v707 = vpack.c.b16 %v622, %v621
      %v708 = vpack.c.b16 %v624, %v623
      %v709 = vpack.c.b16 %v626, %v625
      %v710 = vpack.c.b16 %v628, %v627
      %v711 = vpack.c.b16 %v630, %v629
      %v712 = vpack.c.b16 %v632, %v631
      %v713 = vpack.c.b16 %v634, %v633
      %v714 = vpack.c.b16 %v636, %v635
      %v715 = vpack.c.b16 %v638, %v637
      %v716 = vpack.c.b16 %v640, %v639
      %v717 = vpack.c.b16 %v642, %v641
      %v718 = vpack.c.b16 %v644, %v643
      %v719 = vpack.c.b16 %v646, %v645
      %v720 = vpack.c.b16 %v648, %v647
      %v721 = vpack.c.b16 %v650, %v649
      %v722 = vpack.c.b16 %v652, %v651
      %v723 = vpack.c.b16 %v654, %v653
      %v724 = vpack.c.b16 %v656, %v655
      %v725 = vpack.c.b16 %v658, %v657
      %v726 = vpack.c.b16 %v660, %v659
      %v727 = vpack.c.b16 %v662, %v661
      %v728 = vpack.c.b16 %v664, %v663
      %793 = vmatprep.subr.bf16.mxu0 0
      %794 = vmatpush1.bf16.msra.mxu0 %v672
      %795 = vmatprep.subr.bf16.mxu0 0
      %796 = vmatpush1.bf16.msra.mxu0 %v671
      %797 = vmatprep.subr.bf16.mxu0 0
      %798 = vmatpush1.bf16.msra.mxu0 %v670
      %799 = vmatprep.subr.bf16.mxu0 0
      %800 = vmatpush1.bf16.msra.mxu0 %v669
      %801 = vmatprep.subr.bf16.mxu0 0
      %802 = vmatpush1.bf16.msra.mxu0 %v668
      %803 = vmatprep.subr.bf16.mxu0 0
      %804 = vmatpush1.bf16.msra.mxu0 %v667
      %805 = vmatprep.subr.bf16.mxu0 0
      %806 = vmatpush1.bf16.msra.mxu0 %v666
      %807 = vmatprep.subr.bf16.mxu0 0
      %808 = vmatpush1.bf16.msra.mxu0 %v665
      %809 = vmatprep.subr.bf16.mxu0 0
      %810 = vmatpush2.bf16.msra.mxu0 %v680
      %811 = vmatprep.subr.bf16.mxu0 0
      %812 = vmatpush2.bf16.msra.mxu0 %v679
      %813 = vmatprep.subr.bf16.mxu0 0
      %814 = vmatpush2.bf16.msra.mxu0 %v678
      %815 = vmatprep.subr.bf16.mxu0 0
      %816 = vmatpush2.bf16.msra.mxu0 %v677
      %817 = vmatprep.subr.bf16.mxu0 0
      %818 = vmatpush2.bf16.msra.mxu0 %v676
      %819 = vmatprep.subr.bf16.mxu0 0
      %820 = vmatpush2.bf16.msra.mxu0 %v675
      %821 = vmatprep.subr.bf16.mxu0 0
      %822 = vmatpush2.bf16.msra.mxu0 %v674
      %823 = vmatprep.subr.bf16.mxu0 0
      %824 = vmatpush2.bf16.msra.mxu0 %v673
      %825 = vmatprep.mubr.bf16.mxu0 %v378
      %826 = vmatmul.mubr.bf16.gmra.mxu0 %v377
      %v827 = vpop.f32.mrf.mxu0
      %v828 = vadd.f32 %v327, %v827
      %v829 = vpop.f32.mrf.mxu0
      %v830 = vpop.f32.mrf.mxu0
      %v831 = vadd.f32 %v327, %v830
      %v832 = vpop.f32.mrf.mxu0
      %833 = vmatprep.mubr.bf16.mxu0 %v386
      %834 = vmatmul.mubr.bf16.gmra.mxu0 %v385
      %v835 = vpop.f32.mrf.mxu0
      %v836 = vadd.f32 %v327, %v835
      %v837 = vpop.f32.mrf.mxu0
      %v838 = vpop.f32.mrf.mxu0
      %v839 = vadd.f32 %v327, %v838
      %v840 = vpop.f32.mrf.mxu0
      %841 = vdwg.mxu0
      %842 = vmatprep.subr.bf16.mxu0 0
      %843 = vmatpush1.bf16.msra.mxu0 %v688
      %844 = vmatprep.subr.bf16.mxu0 0
      %845 = vmatpush1.bf16.msra.mxu0 %v687
      %846 = vmatprep.subr.bf16.mxu0 0
      %847 = vmatpush1.bf16.msra.mxu0 %v686
      %848 = vmatprep.subr.bf16.mxu0 0
      %849 = vmatpush1.bf16.msra.mxu0 %v685
      %850 = vmatprep.subr.bf16.mxu0 0
      %851 = vmatpush1.bf16.msra.mxu0 %v684
      %852 = vmatprep.subr.bf16.mxu0 0
      %853 = vmatpush1.bf16.msra.mxu0 %v683
      %854 = vmatprep.subr.bf16.mxu0 0
      %855 = vmatpush1.bf16.msra.mxu0 %v682
      %856 = vmatprep.subr.bf16.mxu0 0
      %857 = vmatpush1.bf16.msra.mxu0 %v681
      %858 = vmatprep.subr.bf16.mxu0 0
      %859 = vmatpush2.bf16.msra.mxu0 %v696
      %860 = vmatprep.subr.bf16.mxu0 0
      %861 = vmatpush2.bf16.msra.mxu0 %v695
      %862 = vmatprep.subr.bf16.mxu0 0
      %863 = vmatpush2.bf16.msra.mxu0 %v694
      %864 = vmatprep.subr.bf16.mxu0 0
      %865 = vmatpush2.bf16.msra.mxu0 %v693
      %866 = vmatprep.subr.bf16.mxu0 0
      %867 = vmatpush2.bf16.msra.mxu0 %v692
      %868 = vmatprep.subr.bf16.mxu0 0
      %869 = vmatpush2.bf16.msra.mxu0 %v691
      %870 = vmatprep.subr.bf16.mxu0 0
      %871 = vmatpush2.bf16.msra.mxu0 %v690
      %872 = vmatprep.subr.bf16.mxu0 0
      %873 = vmatpush2.bf16.msra.mxu0 %v689
      %874 = vmatprep.mubr.bf16.mxu0 %v380
      %875 = vmatmul.mubr.bf16.gmra.mxu0 %v379
      %v876 = vpop.f32.mrf.mxu0
      %v877 = vadd.f32 %v828, %v876
      %v878 = vpop.f32.mrf.mxu0
      %v879 = vpop.f32.mrf.mxu0
      %v880 = vadd.f32 %v831, %v879
      %v881 = vpop.f32.mrf.mxu0
      %882 = vmatprep.mubr.bf16.mxu0 %v388
      %883 = vmatmul.mubr.bf16.gmra.mxu0 %v387
      %v884 = vpop.f32.mrf.mxu0
      %v885 = vadd.f32 %v836, %v884
      %v886 = vpop.f32.mrf.mxu0
      %v887 = vpop.f32.mrf.mxu0
      %v888 = vadd.f32 %v839, %v887
      %v889 = vpop.f32.mrf.mxu0
      %890 = vdwg.mxu0
      %891 = vmatprep.subr.bf16.mxu0 0
      %892 = vmatpush1.bf16.msra.mxu0 %v704
      %893 = vmatprep.subr.bf16.mxu0 0
      %894 = vmatpush1.bf16.msra.mxu0 %v703
      %895 = vmatprep.subr.bf16.mxu0 0
      %896 = vmatpush1.bf16.msra.mxu0 %v702
      %897 = vmatprep.subr.bf16.mxu0 0
      %898 = vmatpush1.bf16.msra.mxu0 %v701
      %899 = vmatprep.subr.bf16.mxu0 0
      %900 = vmatpush1.bf16.msra.mxu0 %v700
      %901 = vmatprep.subr.bf16.mxu0 0
      %902 = vmatpush1.bf16.msra.mxu0 %v699
      %903 = vmatprep.subr.bf16.mxu0 0
      %904 = vmatpush1.bf16.msra.mxu0 %v698
      %905 = vmatprep.subr.bf16.mxu0 0
      %906 = vmatpush1.bf16.msra.mxu0 %v697
      %907 = vmatprep.subr.bf16.mxu0 0
      %908 = vmatpush2.bf16.msra.mxu0 %v712
      %909 = vmatprep.subr.bf16.mxu0 0
      %910 = vmatpush2.bf16.msra.mxu0 %v711
      %911 = vmatprep.subr.bf16.mxu0 0
      %912 = vmatpush2.bf16.msra.mxu0 %v710
      %913 = vmatprep.subr.bf16.mxu0 0
      %914 = vmatpush2.bf16.msra.mxu0 %v709
      %915 = vmatprep.subr.bf16.mxu0 0
      %916 = vmatpush2.bf16.msra.mxu0 %v708
      %917 = vmatprep.subr.bf16.mxu0 0
      %918 = vmatpush2.bf16.msra.mxu0 %v707
      %919 = vmatprep.subr.bf16.mxu0 0
      %920 = vmatpush2.bf16.msra.mxu0 %v706
      %921 = vmatprep.subr.bf16.mxu0 0
      %922 = vmatpush2.bf16.msra.mxu0 %v705
      %923 = vmatprep.mubr.bf16.mxu0 %v382
      %924 = vmatmul.mubr.bf16.gmra.mxu0 %v381
      %v925 = vpop.f32.mrf.mxu0
      %v926 = vadd.f32 %v877, %v925
      %v927 = vpop.f32.mrf.mxu0
      %v928 = vpop.f32.mrf.mxu0
      %v929 = vadd.f32 %v880, %v928
      %v930 = vpop.f32.mrf.mxu0
      %931 = vmatprep.mubr.bf16.mxu0 %v390
      %932 = vmatmul.mubr.bf16.gmra.mxu0 %v389
      %v933 = vpop.f32.mrf.mxu0
      %v934 = vadd.f32 %v885, %v933
      %v935 = vpop.f32.mrf.mxu0
      %v936 = vpop.f32.mrf.mxu0
      %v937 = vadd.f32 %v888, %v936
      %v938 = vpop.f32.mrf.mxu0
      %939 = vdwg.mxu0
      %940 = vmatprep.subr.bf16.mxu0 0
      %941 = vmatpush1.bf16.msra.mxu0 %v720
      %942 = vmatprep.subr.bf16.mxu0 0
      %943 = vmatpush1.bf16.msra.mxu0 %v719
      %944 = vmatprep.subr.bf16.mxu0 0
      %945 = vmatpush1.bf16.msra.mxu0 %v718
      %946 = vmatprep.subr.bf16.mxu0 0
      %947 = vmatpush1.bf16.msra.mxu0 %v717
      %948 = vmatprep.subr.bf16.mxu0 0
      %949 = vmatpush1.bf16.msra.mxu0 %v716
      %950 = vmatprep.subr.bf16.mxu0 0
      %951 = vmatpush1.bf16.msra.mxu0 %v715
      %952 = vmatprep.subr.bf16.mxu0 0
      %953 = vmatpush1.bf16.msra.mxu0 %v714
      %954 = vmatprep.subr.bf16.mxu0 0
      %955 = vmatpush1.bf16.msra.mxu0 %v713
      %956 = vmatprep.subr.bf16.mxu0 0
      %957 = vmatpush2.bf16.msra.mxu0 %v728
      %958 = vmatprep.subr.bf16.mxu0 0
      %959 = vmatpush2.bf16.msra.mxu0 %v727
      %960 = vmatprep.subr.bf16.mxu0 0
      %961 = vmatpush2.bf16.msra.mxu0 %v726
      %962 = vmatprep.subr.bf16.mxu0 0
      %963 = vmatpush2.bf16.msra.mxu0 %v725
      %964 = vmatprep.subr.bf16.mxu0 0
      %965 = vmatpush2.bf16.msra.mxu0 %v724
      %966 = vmatprep.subr.bf16.mxu0 0
      %967 = vmatpush2.bf16.msra.mxu0 %v723
      %968 = vmatprep.subr.bf16.mxu0 0
      %969 = vmatpush2.bf16.msra.mxu0 %v722
      %970 = vmatprep.subr.bf16.mxu0 0
      %971 = vmatpush2.bf16.msra.mxu0 %v721
      %972 = vmatprep.mubr.bf16.mxu0 %v384
      %973 = vmatmul.mubr.bf16.gmra.mxu0 %v383
      %v974 = vpop.f32.mrf.mxu0
      %v975 = vadd.f32 %v926, %v974
      %v976 = vpop.f32.mrf.mxu0
      %v977 = vpop.f32.mrf.mxu0
      %v978 = vadd.f32 %v929, %v977
      %v979 = vpop.f32.mrf.mxu0
      %980 = vmatprep.mubr.bf16.mxu0 %v392
      %981 = vmatmul.mubr.bf16.gmra.mxu0 %v391
      %v982 = vpop.f32.mrf.mxu0
      %v983 = vadd.f32 %v934, %v982
      %v984 = vpop.f32.mrf.mxu0
      %v985 = vpop.f32.mrf.mxu0
      %v986 = vadd.f32 %v937, %v985
      %v987 = vpop.f32.mrf.mxu0
      %988 = vdwg.mxu0
      %v989 = vmax.f32 %v975, 0.0
      %v990 = vmax.f32 %v978, 0.0
      %v991 = vmax.f32 %v983, 0.0
      %v992 = vmax.f32 %v986, 0.0
      %v993 = vpack.c.bf16 %v990, %v989
      %v994 = vpack.c.bf16 %v992, %v991
      %v997 = vunpack.c.l.b16 %v993
      %v998 = vunpack.c.h.b16 %v993
      %v999 = vunpack.c.l.b16 %v994
      %v1000 = vunpack.c.h.b16 %v994
      %v1001 = vpack.c.b16 %v997, %v997
      %v1002 = vpack.c.b16 %v998, %v998
      %v1003 = vpack.c.b16 %v999, %v999
      %v1004 = vpack.c.b16 %v1000, %v1000
      %1009 = vst [vmem:[%s175] sm:$0xf] %v1001
      %1010 = vst [vmem:[%s175 + $0x4] sm:$0xf] %v1002
      %1011 = vst [vmem:[%s175 + $0x8] sm:$0xf] %v1003
      %1012 = vst [vmem:[%s175 + $0xc] sm:$0xf] %v1004
      %s1013 = smul.u32 4, %s14
      %p1014 = scmp.lt.s32.totalorder %s1013, 7
      %s1015 = scalar_select %p1014, %s1013, 7
      %s1016 = smul.addr %s1015, 4
      %s1017 = scalar_lea.vmem %s3, %s1016
      // Predicated region
      $region33: #{discrete_cnn_critic_forward.3} parent=31 // pred_check
        %p1018 = pneg %p100
      $region34: #{discrete_cnn_critic_forward.3} parent=31 // pred_check_branch
        %1020 = sbr.rel (%p1018) target = $region36
      $region35: #{discrete_cnn_critic_forward.3} parent=31 // pred_region
        %s1021 = smul.u32 4, %s14
      $region36: #{discrete_cnn_critic_forward.3} parent=31 // pred_fallthru
        _
    $region32: #{discrete_cnn_critic_forward.3} parent=5 // pred_fallthru
      _
    %p1022 = scmp.le.s32.totalorder 2, %s9
    // Predicated region
    $region37: #{discrete_cnn_critic_forward.3} parent=5 // pred_check
      %p1023 = pneg %p1022
    $region38: #{discrete_cnn_critic_forward.3} parent=5 // pred_check_branch
      %1025 = sbr.rel (%p1023) target = $region40
    $region39: #{discrete_cnn_critic_forward.3} parent=5 // pred_region
      %s1026 = ssub.s32 %s9, 2
      // Predicated region
      $region41: #{discrete_cnn_critic_forward.3} parent=39 // pred_check
        %p1027 = pneg %p106
      $region42: #{discrete_cnn_critic_forward.3} parent=39 // pred_check_branch
        %1029 = sbr.rel (%p1027) target = $region44
      $region43: #{discrete_cnn_critic_forward.3} parent=39 // pred_region
        %s1030 = smul.u32 4, %s15
        %p1031 = scmp.lt.s32.totalorder %s1030, 7
        %s1032 = scalar_select %p1031, %s1030, 7
        %s1033 = smul.addr %s1032, 4
        %s1034 = scalar_lea.vmem %s3, %s1033
      $region44: #{discrete_cnn_critic_forward.3} parent=39 // pred_fallthru
        _
    $region40: #{discrete_cnn_critic_forward.3} parent=5 // pred_fallthru
      _
  $region6: #{discrete_cnn_critic_forward.3} parent=0 // loop_footer
    %s13 = sadd.s32 1, %s9
  $region7: #{discrete_cnn_critic_forward.3} parent=0 // loop_footer_branch
    %8 = sbr.rel target = $region3
  $region8: #{discrete_cnn_critic_forward.3} parent=0 // loop_exit
    _

// kernel: discrete_cnn_critic_forward.4
$region0: #{discrete_cnn_critic_forward.4}
  #allocation0 [shape = 'u32[]', space=smem, size = 0x4, offset = 0x4, fixed_abs, tag = 'smem constant byte address 0x4 - core index']
  #allocation1 [shape = 'u32[144,128]{1,0:T(1,128)}', space=vmem, size = 0x12000, scoped, tag = 'internal scratch']
  %s0 = inlined_call_operand.vmem [shape: bf16[16,1024], index: 0, kind: input, shape index: {}]
  %s1 = inlined_call_operand.vmem [shape: bf16[1024,128], index: 1, kind: input, shape index: {}]
  %s2 = inlined_call_operand.vmem [shape: f32[1,128], index: 2, kind: input, shape index: {}]
  %s3 = inlined_call_operand.vmem [shape: bf16[16,128], index: 3, kind: output, shape index: {}]
  %s4 = sld [smem:[#allocation0]]
  $region22: #{discrete_cnn_critic_forward.4} parent=0
    _
  %s6 = ssub.s32 1, %s4
  %s7 = scalar_select 0, %s6, %s4
  // Predicated region
  $region2: #{discrete_cnn_critic_forward.4} parent=0 // pred_check
    _
  $region3: #{discrete_cnn_critic_forward.4} parent=0 // pred_check_branch
    %9 = sbr.rel (0) target = $region5
  $region4: #{discrete_cnn_critic_forward.4} parent=0 // pred_region
    _
  $region5: #{discrete_cnn_critic_forward.4} parent=0 // pred_fallthru
    _
  // Predicated region
  $region6: #{discrete_cnn_critic_forward.4} parent=0 // pred_check
    _
  $region7: #{discrete_cnn_critic_forward.4} parent=0 // pred_check_branch
    %11 = sbr.rel (0) target = $region9
  $region8: #{discrete_cnn_critic_forward.4} parent=0 // pred_region
    _
  $region9: #{discrete_cnn_critic_forward.4} parent=0 // pred_fallthru
    _
  // Predicated region
  $region10: #{discrete_cnn_critic_forward.4} parent=0 // pred_check
    _
  $region11: #{discrete_cnn_critic_forward.4} parent=0 // pred_check_branch
    %13 = sbr.rel (0) target = $region13
  $region12: #{discrete_cnn_critic_forward.4} parent=0 // pred_region
    _
  $region13: #{discrete_cnn_critic_forward.4} parent=0 // pred_fallthru
    _
  %v15 = vld [vmem:[%s0] sm:$0xff]
  %v16 = vld [vmem:[%s0 + $0x8] sm:$0xff]
  %v17 = vld [vmem:[%s0 + $0x10] sm:$0xff]
  %v18 = vld [vmem:[%s0 + $0x18] sm:$0xff]
  %v19 = vld [vmem:[%s0 + $0x20] sm:$0xff]
  %v20 = vld [vmem:[%s0 + $0x28] sm:$0xff]
  %v21 = vld [vmem:[%s0 + $0x30] sm:$0xff]
  %v22 = vld [vmem:[%s0 + $0x38] sm:$0xff]
  %v23 = vld [vmem:[%s1] sm:$0xf]
  %v24 = vld [vmem:[%s1 + $0x4] sm:$0xf]
  %v25 = vld [vmem:[%s1 + $0x8] sm:$0xf]
  %v26 = vld [vmem:[%s1 + $0xc] sm:$0xf]
  %v27 = vld [vmem:[%s1 + $0x10] sm:$0xf]
  %v28 = vld [vmem:[%s1 + $0x14] sm:$0xf]
  %v29 = vld [vmem:[%s1 + $0x18] sm:$0xf]
  %v30 = vld [vmem:[%s1 + $0x1c] sm:$0xf]
  %v31 = vld [vmem:[%s1 + $0x20] sm:$0xf]
  %v32 = vld [vmem:[%s1 + $0x24] sm:$0xf]
  %v33 = vld [vmem:[%s1 + $0x28] sm:$0xf]
  %v34 = vld [vmem:[%s1 + $0x2c] sm:$0xf]
  %v35 = vld [vmem:[%s1 + $0x30] sm:$0xf]
  %v36 = vld [vmem:[%s1 + $0x34] sm:$0xf]
  %v37 = vld [vmem:[%s1 + $0x38] sm:$0xf]
  %v38 = vld [vmem:[%s1 + $0x3c] sm:$0xf]
  %v39 = vld [vmem:[%s1 + $0x40] sm:$0xf]
  %v40 = vld [vmem:[%s1 + $0x44] sm:$0xf]
  %v41 = vld [vmem:[%s1 + $0x48] sm:$0xf]
  %v42 = vld [vmem:[%s1 + $0x4c] sm:$0xf]
  %v43 = vld [vmem:[%s1 + $0x50] sm:$0xf]
  %v44 = vld [vmem:[%s1 + $0x54] sm:$0xf]
  %v45 = vld [vmem:[%s1 + $0x58] sm:$0xf]
  %v46 = vld [vmem:[%s1 + $0x5c] sm:$0xf]
  %v47 = vld [vmem:[%s1 + $0x60] sm:$0xf]
  %v48 = vld [vmem:[%s1 + $0x64] sm:$0xf]
  %v49 = vld [vmem:[%s1 + $0x68] sm:$0xf]
  %v50 = vld [vmem:[%s1 + $0x6c] sm:$0xf]
  %v51 = vld [vmem:[%s1 + $0x70] sm:$0xf]
  %v52 = vld [vmem:[%s1 + $0x74] sm:$0xf]
  %v53 = vld [vmem:[%s1 + $0x78] sm:$0xf]
  %v54 = vld [vmem:[%s1 + $0x7c] sm:$0xf]
  %v55 = vld [vmem:[%s1 + $0x80] sm:$0xf]
  %v56 = vld [vmem:[%s1 + $0x84] sm:$0xf]
  %v57 = vld [vmem:[%s1 + $0x88] sm:$0xf]
  %v58 = vld [vmem:[%s1 + $0x8c] sm:$0xf]
  %v59 = vld [vmem:[%s1 + $0x90] sm:$0xf]
  %v60 = vld [vmem:[%s1 + $0x94] sm:$0xf]
  %v61 = vld [vmem:[%s1 + $0x98] sm:$0xf]
  %v62 = vld [vmem:[%s1 + $0x9c] sm:$0xf]
  %v63 = vld [vmem:[%s1 + $0xa0] sm:$0xf]
  %v64 = vld [vmem:[%s1 + $0xa4] sm:$0xf]
  %v65 = vld [vmem:[%s1 + $0xa8] sm:$0xf]
  %v66 = vld [vmem:[%s1 + $0xac] sm:$0xf]
  %v67 = vld [vmem:[%s1 + $0xb0] sm:$0xf]
  %v68 = vld [vmem:[%s1 + $0xb4] sm:$0xf]
  %v69 = vld [vmem:[%s1 + $0xb8] sm:$0xf]
  %v70 = vld [vmem:[%s1 + $0xbc] sm:$0xf]
  %v71 = vld [vmem:[%s1 + $0xc0] sm:$0xf]
  %v72 = vld [vmem:[%s1 + $0xc4] sm:$0xf]
  %v73 = vld [vmem:[%s1 + $0xc8] sm:$0xf]
  %v74 = vld [vmem:[%s1 + $0xcc] sm:$0xf]
  %v75 = vld [vmem:[%s1 + $0xd0] sm:$0xf]
  %v76 = vld [vmem:[%s1 + $0xd4] sm:$0xf]
  %v77 = vld [vmem:[%s1 + $0xd8] sm:$0xf]
  %v78 = vld [vmem:[%s1 + $0xdc] sm:$0xf]
  %v79 = vld [vmem:[%s1 + $0xe0] sm:$0xf]
  %v80 = vld [vmem:[%s1 + $0xe4] sm:$0xf]
  %v81 = vld [vmem:[%s1 + $0xe8] sm:$0xf]
  %v82 = vld [vmem:[%s1 + $0xec] sm:$0xf]
  %v83 = vld [vmem:[%s1 + $0xf0] sm:$0xf]
  %v84 = vld [vmem:[%s1 + $0xf4] sm:$0xf]
  %v85 = vld [vmem:[%s1 + $0xf8] sm:$0xf]
  %v86 = vld [vmem:[%s1 + $0xfc] sm:$0xf]
  %v87 = vld [vmem:[%s1 + $0x100] sm:$0xf]
  %v88 = vld [vmem:[%s1 + $0x104] sm:$0xf]
  %v89 = vld [vmem:[%s1 + $0x108] sm:$0xf]
  %v90 = vld [vmem:[%s1 + $0x10c] sm:$0xf]
  %v91 = vld [vmem:[%s1 + $0x110] sm:$0xf]
  %v92 = vld [vmem:[%s1 + $0x114] sm:$0xf]
  %v93 = vld [vmem:[%s1 + $0x118] sm:$0xf]
  %v94 = vld [vmem:[%s1 + $0x11c] sm:$0xf]
  %v95 = vld [vmem:[%s1 + $0x120] sm:$0xf]
  %v96 = vld [vmem:[%s1 + $0x124] sm:$0xf]
  %v97 = vld [vmem:[%s1 + $0x128] sm:$0xf]
  %v98 = vld [vmem:[%s1 + $0x12c] sm:$0xf]
  %v99 = vld [vmem:[%s1 + $0x130] sm:$0xf]
  %v100 = vld [vmem:[%s1 + $0x134] sm:$0xf]
  %v101 = vld [vmem:[%s1 + $0x138] sm:$0xf]
  %v102 = vld [vmem:[%s1 + $0x13c] sm:$0xf]
  %v103 = vld [vmem:[%s1 + $0x140] sm:$0xf]
  %v104 = vld [vmem:[%s1 + $0x144] sm:$0xf]
  %v105 = vld [vmem:[%s1 + $0x148] sm:$0xf]
  %v106 = vld [vmem:[%s1 + $0x14c] sm:$0xf]
  %v107 = vld [vmem:[%s1 + $0x150] sm:$0xf]
  %v108 = vld [vmem:[%s1 + $0x154] sm:$0xf]
  %v109 = vld [vmem:[%s1 + $0x158] sm:$0xf]
  %v110 = vld [vmem:[%s1 + $0x15c] sm:$0xf]
  %v111 = vld [vmem:[%s1 + $0x160] sm:$0xf]
  %v112 = vld [vmem:[%s1 + $0x164] sm:$0xf]
  %v113 = vld [vmem:[%s1 + $0x168] sm:$0xf]
  %v114 = vld [vmem:[%s1 + $0x16c] sm:$0xf]
  %v115 = vld [vmem:[%s1 + $0x170] sm:$0xf]
  %v116 = vld [vmem:[%s1 + $0x174] sm:$0xf]
  %v117 = vld [vmem:[%s1 + $0x178] sm:$0xf]
  %v118 = vld [vmem:[%s1 + $0x17c] sm:$0xf]
  %v119 = vld [vmem:[%s1 + $0x180] sm:$0xf]
  %v120 = vld [vmem:[%s1 + $0x184] sm:$0xf]
  %v121 = vld [vmem:[%s1 + $0x188] sm:$0xf]
  %v122 = vld [vmem:[%s1 + $0x18c] sm:$0xf]
  %v123 = vld [vmem:[%s1 + $0x190] sm:$0xf]
  %v124 = vld [vmem:[%s1 + $0x194] sm:$0xf]
  %v125 = vld [vmem:[%s1 + $0x198] sm:$0xf]
  %v126 = vld [vmem:[%s1 + $0x19c] sm:$0xf]
  %v127 = vld [vmem:[%s1 + $0x1a0] sm:$0xf]
  %v128 = vld [vmem:[%s1 + $0x1a4] sm:$0xf]
  %v129 = vld [vmem:[%s1 + $0x1a8] sm:$0xf]
  %v130 = vld [vmem:[%s1 + $0x1ac] sm:$0xf]
  %v131 = vld [vmem:[%s1 + $0x1b0] sm:$0xf]
  %v132 = vld [vmem:[%s1 + $0x1b4] sm:$0xf]
  %v133 = vld [vmem:[%s1 + $0x1b8] sm:$0xf]
  %v134 = vld [vmem:[%s1 + $0x1bc] sm:$0xf]
  %v135 = vld [vmem:[%s1 + $0x1c0] sm:$0xf]
  %v136 = vld [vmem:[%s1 + $0x1c4] sm:$0xf]
  %v137 = vld [vmem:[%s1 + $0x1c8] sm:$0xf]
  %v138 = vld [vmem:[%s1 + $0x1cc] sm:$0xf]
  %v139 = vld [vmem:[%s1 + $0x1d0] sm:$0xf]
  %v140 = vld [vmem:[%s1 + $0x1d4] sm:$0xf]
  %v141 = vld [vmem:[%s1 + $0x1d8] sm:$0xf]
  %v142 = vld [vmem:[%s1 + $0x1dc] sm:$0xf]
  %v143 = vld [vmem:[%s1 + $0x1e0] sm:$0xf]
  %v144 = vld [vmem:[%s1 + $0x1e4] sm:$0xf]
  %v145 = vld [vmem:[%s1 + $0x1e8] sm:$0xf]
  %v146 = vld [vmem:[%s1 + $0x1ec] sm:$0xf]
  %v147 = vld [vmem:[%s1 + $0x1f0] sm:$0xf]
  %v148 = vld [vmem:[%s1 + $0x1f4] sm:$0xf]
  %v149 = vld [vmem:[%s1 + $0x1f8] sm:$0xf]
  %v150 = vld [vmem:[%s1 + $0x1fc] sm:$0xf]
  %v151 = vld [vmem:[%s2] sm:$0x1]
  %v153 = vlaneseq
  %v154 = vshrl.u32 %v153, 7
  %v155 = vsub.s32 0, %v154
  %v156 = vrot.slane %v151, %v155
  %v166 = vunpack.c.l.b16 %v15
  %v167 = vunpack.c.h.b16 %v15
  %v168 = vunpack.c.l.b16 %v16
  %v169 = vunpack.c.h.b16 %v16
  %v170 = vunpack.c.l.b16 %v17
  %v171 = vunpack.c.h.b16 %v17
  %v172 = vunpack.c.l.b16 %v18
  %v173 = vunpack.c.h.b16 %v18
  %v174 = vunpack.c.l.b16 %v19
  %v175 = vunpack.c.h.b16 %v19
  %v176 = vunpack.c.l.b16 %v20
  %v177 = vunpack.c.h.b16 %v20
  %v178 = vunpack.c.l.b16 %v21
  %v179 = vunpack.c.h.b16 %v21
  %v180 = vunpack.c.l.b16 %v22
  %v181 = vunpack.c.h.b16 %v22
  %v182 = vpack.c.b16 %v174, %v166
  %v183 = vpack.c.b16 %v175, %v167
  %v184 = vpack.c.b16 %v176, %v168
  %v185 = vpack.c.b16 %v177, %v169
  %v186 = vpack.c.b16 %v178, %v170
  %v187 = vpack.c.b16 %v179, %v171
  %v188 = vpack.c.b16 %v180, %v172
  %v189 = vpack.c.b16 %v181, %v173
  %v326 = vunpack.c.l.b16 %v23
  %v327 = vunpack.c.l.b16 %v24
  %v328 = vunpack.c.l.b16 %v25
  %v329 = vunpack.c.l.b16 %v26
  %v330 = vunpack.c.l.b16 %v27
  %v331 = vunpack.c.l.b16 %v28
  %v332 = vunpack.c.l.b16 %v29
  %v333 = vunpack.c.l.b16 %v30
  %v334 = vunpack.c.l.b16 %v31
  %v335 = vunpack.c.l.b16 %v32
  %v336 = vunpack.c.l.b16 %v33
  %v337 = vunpack.c.l.b16 %v34
  %v338 = vunpack.c.l.b16 %v35
  %v339 = vunpack.c.l.b16 %v36
  %v340 = vunpack.c.l.b16 %v37
  %v341 = vunpack.c.l.b16 %v38
  %v342 = vunpack.c.l.b16 %v39
  %v343 = vunpack.c.l.b16 %v40
  %v344 = vunpack.c.l.b16 %v41
  %v345 = vunpack.c.l.b16 %v42
  %v346 = vunpack.c.l.b16 %v43
  %v347 = vunpack.c.l.b16 %v44
  %v348 = vunpack.c.l.b16 %v45
  %v349 = vunpack.c.l.b16 %v46
  %v350 = vunpack.c.l.b16 %v47
  %v351 = vunpack.c.l.b16 %v48
  %v352 = vunpack.c.l.b16 %v49
  %v353 = vunpack.c.l.b16 %v50
  %v354 = vunpack.c.l.b16 %v51
  %v355 = vunpack.c.l.b16 %v52
  %v356 = vunpack.c.l.b16 %v53
  %v357 = vunpack.c.l.b16 %v54
  %v358 = vunpack.c.l.b16 %v55
  %v359 = vunpack.c.l.b16 %v56
  %v360 = vunpack.c.l.b16 %v57
  %v361 = vunpack.c.l.b16 %v58
  %v362 = vunpack.c.l.b16 %v59
  %v363 = vunpack.c.l.b16 %v60
  %v364 = vunpack.c.l.b16 %v61
  %v365 = vunpack.c.l.b16 %v62
  %v366 = vunpack.c.l.b16 %v63
  %v367 = vunpack.c.l.b16 %v64
  %v368 = vunpack.c.l.b16 %v65
  %v369 = vunpack.c.l.b16 %v66
  %v370 = vunpack.c.l.b16 %v67
  %v371 = vunpack.c.l.b16 %v68
  %v372 = vunpack.c.l.b16 %v69
  %v373 = vunpack.c.l.b16 %v70
  %v374 = vunpack.c.l.b16 %v71
  %v375 = vunpack.c.l.b16 %v72
  %v376 = vunpack.c.l.b16 %v73
  %v377 = vunpack.c.l.b16 %v74
  %v378 = vunpack.c.l.b16 %v75
  %v379 = vunpack.c.l.b16 %v76
  %v380 = vunpack.c.l.b16 %v77
  %v381 = vunpack.c.l.b16 %v78
  %v382 = vunpack.c.l.b16 %v79
  %v383 = vunpack.c.l.b16 %v80
  %v384 = vunpack.c.l.b16 %v81
  %v385 = vunpack.c.l.b16 %v82
  %v386 = vunpack.c.l.b16 %v83
  %v387 = vunpack.c.l.b16 %v84
  %v388 = vunpack.c.l.b16 %v85
  %v389 = vunpack.c.l.b16 %v86
  %v390 = vunpack.c.l.b16 %v87
  %v391 = vunpack.c.l.b16 %v88
  %v392 = vunpack.c.l.b16 %v89
  %v393 = vunpack.c.l.b16 %v90
  %v394 = vunpack.c.l.b16 %v91
  %v395 = vunpack.c.l.b16 %v92
  %v396 = vunpack.c.l.b16 %v93
  %v397 = vunpack.c.l.b16 %v94
  %v398 = vunpack.c.l.b16 %v95
  %v399 = vunpack.c.l.b16 %v96
  %v400 = vunpack.c.l.b16 %v97
  %v401 = vunpack.c.l.b16 %v98
  %v402 = vunpack.c.l.b16 %v99
  %v403 = vunpack.c.l.b16 %v100
  %v404 = vunpack.c.l.b16 %v101
  %v405 = vunpack.c.l.b16 %v102
  %v406 = vunpack.c.l.b16 %v103
  %v407 = vunpack.c.l.b16 %v104
  %v408 = vunpack.c.l.b16 %v105
  %v409 = vunpack.c.l.b16 %v106
  %v410 = vunpack.c.l.b16 %v107
  %v411 = vunpack.c.l.b16 %v108
  %v412 = vunpack.c.l.b16 %v109
  %v413 = vunpack.c.l.b16 %v110
  %v414 = vunpack.c.l.b16 %v111
  %v415 = vunpack.c.l.b16 %v112
  %v416 = vunpack.c.l.b16 %v113
  %v417 = vunpack.c.l.b16 %v114
  %v418 = vunpack.c.l.b16 %v115
  %v419 = vunpack.c.l.b16 %v116
  %v420 = vunpack.c.l.b16 %v117
  %v421 = vunpack.c.l.b16 %v118
  %v422 = vunpack.c.l.b16 %v119
  %v423 = vunpack.c.l.b16 %v120
  %v424 = vunpack.c.l.b16 %v121
  %v425 = vunpack.c.l.b16 %v122
  %v426 = vunpack.c.l.b16 %v123
  %v427 = vunpack.c.l.b16 %v124
  %v428 = vunpack.c.l.b16 %v125
  %v429 = vunpack.c.l.b16 %v126
  %v430 = vunpack.c.l.b16 %v127
  %v431 = vunpack.c.l.b16 %v128
  %v432 = vunpack.c.l.b16 %v129
  %v433 = vunpack.c.l.b16 %v130
  %v434 = vunpack.c.l.b16 %v131
  %v435 = vunpack.c.l.b16 %v132
  %v436 = vunpack.c.l.b16 %v133
  %v437 = vunpack.c.l.b16 %v134
  %v438 = vunpack.c.l.b16 %v135
  %v439 = vunpack.c.l.b16 %v136
  %v440 = vunpack.c.l.b16 %v137
  %v441 = vunpack.c.l.b16 %v138
  %v442 = vunpack.c.l.b16 %v139
  %v443 = vunpack.c.l.b16 %v140
  %v444 = vunpack.c.l.b16 %v141
  %v445 = vunpack.c.l.b16 %v142
  %v446 = vunpack.c.l.b16 %v143
  %v447 = vunpack.c.l.b16 %v144
  %v448 = vunpack.c.l.b16 %v145
  %v449 = vunpack.c.l.b16 %v146
  %v450 = vunpack.c.l.b16 %v147
  %v451 = vunpack.c.l.b16 %v148
  %v452 = vunpack.c.l.b16 %v149
  %v453 = vunpack.c.l.b16 %v150
  %v454 = vpack.c.b16 %v327, %v326
  %v455 = vpack.c.b16 %v329, %v328
  %v456 = vpack.c.b16 %v331, %v330
  %v457 = vpack.c.b16 %v333, %v332
  %v458 = vpack.c.b16 %v335, %v334
  %v459 = vpack.c.b16 %v337, %v336
  %v460 = vpack.c.b16 %v339, %v338
  %v461 = vpack.c.b16 %v341, %v340
  %v462 = vpack.c.b16 %v343, %v342
  %v463 = vpack.c.b16 %v345, %v344
  %v464 = vpack.c.b16 %v347, %v346
  %v465 = vpack.c.b16 %v349, %v348
  %v466 = vpack.c.b16 %v351, %v350
  %v467 = vpack.c.b16 %v353, %v352
  %v468 = vpack.c.b16 %v355, %v354
  %v469 = vpack.c.b16 %v357, %v356
  %v470 = vpack.c.b16 %v359, %v358
  %v471 = vpack.c.b16 %v361, %v360
  %v472 = vpack.c.b16 %v363, %v362
  %v473 = vpack.c.b16 %v365, %v364
  %v474 = vpack.c.b16 %v367, %v366
  %v475 = vpack.c.b16 %v369, %v368
  %v476 = vpack.c.b16 %v371, %v370
  %v477 = vpack.c.b16 %v373, %v372
  %v478 = vpack.c.b16 %v375, %v374
  %v479 = vpack.c.b16 %v377, %v376
  %v480 = vpack.c.b16 %v379, %v378
  %v481 = vpack.c.b16 %v381, %v380
  %v482 = vpack.c.b16 %v383, %v382
  %v483 = vpack.c.b16 %v385, %v384
  %v484 = vpack.c.b16 %v387, %v386
  %v485 = vpack.c.b16 %v389, %v388
  %v486 = vpack.c.b16 %v391, %v390
  %v487 = vpack.c.b16 %v393, %v392
  %v488 = vpack.c.b16 %v395, %v394
  %v489 = vpack.c.b16 %v397, %v396
  %v490 = vpack.c.b16 %v399, %v398
  %v491 = vpack.c.b16 %v401, %v400
  %v492 = vpack.c.b16 %v403, %v402
  %v493 = vpack.c.b16 %v405, %v404
  %v494 = vpack.c.b16 %v407, %v406
  %v495 = vpack.c.b16 %v409, %v408
  %v496 = vpack.c.b16 %v411, %v410
  %v497 = vpack.c.b16 %v413, %v412
  %v498 = vpack.c.b16 %v415, %v414
  %v499 = vpack.c.b16 %v417, %v416
  %v500 = vpack.c.b16 %v419, %v418
  %v501 = vpack.c.b16 %v421, %v420
  %v502 = vpack.c.b16 %v423, %v422
  %v503 = vpack.c.b16 %v425, %v424
  %v504 = vpack.c.b16 %v427, %v426
  %v505 = vpack.c.b16 %v429, %v428
  %v506 = vpack.c.b16 %v431, %v430
  %v507 = vpack.c.b16 %v433, %v432
  %v508 = vpack.c.b16 %v435, %v434
  %v509 = vpack.c.b16 %v437, %v436
  %v510 = vpack.c.b16 %v439, %v438
  %v511 = vpack.c.b16 %v441, %v440
  %v512 = vpack.c.b16 %v443, %v442
  %v513 = vpack.c.b16 %v445, %v444
  %v514 = vpack.c.b16 %v447, %v446
  %v515 = vpack.c.b16 %v449, %v448
  %v516 = vpack.c.b16 %v451, %v450
  %v517 = vpack.c.b16 %v453, %v452
  %582 = vmatprep.subr.bf16.mxu0 0
  %583 = vmatpush1.bf16.msra.mxu0 %v461
  %584 = vmatprep.subr.bf16.mxu0 0
  %585 = vmatpush1.bf16.msra.mxu0 %v460
  %586 = vmatprep.subr.bf16.mxu0 0
  %587 = vmatpush1.bf16.msra.mxu0 %v459
  %588 = vmatprep.subr.bf16.mxu0 0
  %589 = vmatpush1.bf16.msra.mxu0 %v458
  %590 = vmatprep.subr.bf16.mxu0 0
  %591 = vmatpush1.bf16.msra.mxu0 %v457
  %592 = vmatprep.subr.bf16.mxu0 0
  %593 = vmatpush1.bf16.msra.mxu0 %v456
  %594 = vmatprep.subr.bf16.mxu0 0
  %595 = vmatpush1.bf16.msra.mxu0 %v455
  %596 = vmatprep.subr.bf16.mxu0 0
  %597 = vmatpush1.bf16.msra.mxu0 %v454
  %598 = vmatprep.subr.bf16.mxu0 0
  %599 = vmatpush2.bf16.msra.mxu0 %v469
  %600 = vmatprep.subr.bf16.mxu0 0
  %601 = vmatpush2.bf16.msra.mxu0 %v468
  %602 = vmatprep.subr.bf16.mxu0 0
  %603 = vmatpush2.bf16.msra.mxu0 %v467
  %604 = vmatprep.subr.bf16.mxu0 0
  %605 = vmatpush2.bf16.msra.mxu0 %v466
  %606 = vmatprep.subr.bf16.mxu0 0
  %607 = vmatpush2.bf16.msra.mxu0 %v465
  %608 = vmatprep.subr.bf16.mxu0 0
  %609 = vmatpush2.bf16.msra.mxu0 %v464
  %610 = vmatprep.subr.bf16.mxu0 0
  %611 = vmatpush2.bf16.msra.mxu0 %v463
  %612 = vmatprep.subr.bf16.mxu0 0
  %613 = vmatpush2.bf16.msra.mxu0 %v462
  %614 = vmatprep.mubr.bf16.mxu0 %v183
  %615 = vmatmul.mubr.bf16.gmra.mxu0 %v182
  %v616 = vpop.f32.mrf.mxu0
  %v617 = vadd.f32 %v156, %v616
  %v618 = vpop.f32.mrf.mxu0
  %v619 = vpop.f32.mrf.mxu0
  %v620 = vadd.f32 %v156, %v619
  %v621 = vpop.f32.mrf.mxu0
  %622 = vdwg.mxu0
  %623 = vmatprep.subr.bf16.mxu0 0
  %624 = vmatpush1.bf16.msra.mxu0 %v477
  %625 = vmatprep.subr.bf16.mxu0 0
  %626 = vmatpush1.bf16.msra.mxu0 %v476
  %627 = vmatprep.subr.bf16.mxu0 0
  %628 = vmatpush1.bf16.msra.mxu0 %v475
  %629 = vmatprep.subr.bf16.mxu0 0
  %630 = vmatpush1.bf16.msra.mxu0 %v474
  %631 = vmatprep.subr.bf16.mxu0 0
  %632 = vmatpush1.bf16.msra.mxu0 %v473
  %633 = vmatprep.subr.bf16.mxu0 0
  %634 = vmatpush1.bf16.msra.mxu0 %v472
  %635 = vmatprep.subr.bf16.mxu0 0
  %636 = vmatpush1.bf16.msra.mxu0 %v471
  %637 = vmatprep.subr.bf16.mxu0 0
  %638 = vmatpush1.bf16.msra.mxu0 %v470
  %639 = vmatprep.subr.bf16.mxu0 0
  %640 = vmatpush2.bf16.msra.mxu0 %v485
  %641 = vmatprep.subr.bf16.mxu0 0
  %642 = vmatpush2.bf16.msra.mxu0 %v484
  %643 = vmatprep.subr.bf16.mxu0 0
  %644 = vmatpush2.bf16.msra.mxu0 %v483
  %645 = vmatprep.subr.bf16.mxu0 0
  %646 = vmatpush2.bf16.msra.mxu0 %v482
  %647 = vmatprep.subr.bf16.mxu0 0
  %648 = vmatpush2.bf16.msra.mxu0 %v481
  %649 = vmatprep.subr.bf16.mxu0 0
  %650 = vmatpush2.bf16.msra.mxu0 %v480
  %651 = vmatprep.subr.bf16.mxu0 0
  %652 = vmatpush2.bf16.msra.mxu0 %v479
  %653 = vmatprep.subr.bf16.mxu0 0
  %654 = vmatpush2.bf16.msra.mxu0 %v478
  %655 = vmatprep.mubr.bf16.mxu0 %v185
  %656 = vmatmul.mubr.bf16.gmra.mxu0 %v184
  %v657 = vpop.f32.mrf.mxu0
  %v658 = vadd.f32 %v617, %v657
  %v659 = vpop.f32.mrf.mxu0
  %v660 = vpop.f32.mrf.mxu0
  %v661 = vadd.f32 %v620, %v660
  %v662 = vpop.f32.mrf.mxu0
  %663 = vdwg.mxu0
  %664 = vmatprep.subr.bf16.mxu0 0
  %665 = vmatpush1.bf16.msra.mxu0 %v493
  %666 = vmatprep.subr.bf16.mxu0 0
  %667 = vmatpush1.bf16.msra.mxu0 %v492
  %668 = vmatprep.subr.bf16.mxu0 0
  %669 = vmatpush1.bf16.msra.mxu0 %v491
  %670 = vmatprep.subr.bf16.mxu0 0
  %671 = vmatpush1.bf16.msra.mxu0 %v490
  %672 = vmatprep.subr.bf16.mxu0 0
  %673 = vmatpush1.bf16.msra.mxu0 %v489
  %674 = vmatprep.subr.bf16.mxu0 0
  %675 = vmatpush1.bf16.msra.mxu0 %v488
  %676 = vmatprep.subr.bf16.mxu0 0
  %677 = vmatpush1.bf16.msra.mxu0 %v487
  %678 = vmatprep.subr.bf16.mxu0 0
  %679 = vmatpush1.bf16.msra.mxu0 %v486
  %680 = vmatprep.subr.bf16.mxu0 0
  %681 = vmatpush2.bf16.msra.mxu0 %v501
  %682 = vmatprep.subr.bf16.mxu0 0
  %683 = vmatpush2.bf16.msra.mxu0 %v500
  %684 = vmatprep.subr.bf16.mxu0 0
  %685 = vmatpush2.bf16.msra.mxu0 %v499
  %686 = vmatprep.subr.bf16.mxu0 0
  %687 = vmatpush2.bf16.msra.mxu0 %v498
  %688 = vmatprep.subr.bf16.mxu0 0
  %689 = vmatpush2.bf16.msra.mxu0 %v497
  %690 = vmatprep.subr.bf16.mxu0 0
  %691 = vmatpush2.bf16.msra.mxu0 %v496
  %692 = vmatprep.subr.bf16.mxu0 0
  %693 = vmatpush2.bf16.msra.mxu0 %v495
  %694 = vmatprep.subr.bf16.mxu0 0
  %695 = vmatpush2.bf16.msra.mxu0 %v494
  %696 = vmatprep.mubr.bf16.mxu0 %v187
  %697 = vmatmul.mubr.bf16.gmra.mxu0 %v186
  %v698 = vpop.f32.mrf.mxu0
  %v699 = vadd.f32 %v658, %v698
  %v700 = vpop.f32.mrf.mxu0
  %v701 = vpop.f32.mrf.mxu0
  %v702 = vadd.f32 %v661, %v701
  %v703 = vpop.f32.mrf.mxu0
  %704 = vdwg.mxu0
  %705 = vmatprep.subr.bf16.mxu0 0
  %706 = vmatpush1.bf16.msra.mxu0 %v509
  %707 = vmatprep.subr.bf16.mxu0 0
  %708 = vmatpush1.bf16.msra.mxu0 %v508
  %709 = vmatprep.subr.bf16.mxu0 0
  %710 = vmatpush1.bf16.msra.mxu0 %v507
  %711 = vmatprep.subr.bf16.mxu0 0
  %712 = vmatpush1.bf16.msra.mxu0 %v506
  %713 = vmatprep.subr.bf16.mxu0 0
  %714 = vmatpush1.bf16.msra.mxu0 %v505
  %715 = vmatprep.subr.bf16.mxu0 0
  %716 = vmatpush1.bf16.msra.mxu0 %v504
  %717 = vmatprep.subr.bf16.mxu0 0
  %718 = vmatpush1.bf16.msra.mxu0 %v503
  %719 = vmatprep.subr.bf16.mxu0 0
  %720 = vmatpush1.bf16.msra.mxu0 %v502
  %721 = vmatprep.subr.bf16.mxu0 0
  %722 = vmatpush2.bf16.msra.mxu0 %v517
  %723 = vmatprep.subr.bf16.mxu0 0
  %724 = vmatpush2.bf16.msra.mxu0 %v516
  %725 = vmatprep.subr.bf16.mxu0 0
  %726 = vmatpush2.bf16.msra.mxu0 %v515
  %727 = vmatprep.subr.bf16.mxu0 0
  %728 = vmatpush2.bf16.msra.mxu0 %v514
  %729 = vmatprep.subr.bf16.mxu0 0
  %730 = vmatpush2.bf16.msra.mxu0 %v513
  %731 = vmatprep.subr.bf16.mxu0 0
  %732 = vmatpush2.bf16.msra.mxu0 %v512
  %733 = vmatprep.subr.bf16.mxu0 0
  %734 = vmatpush2.bf16.msra.mxu0 %v511
  %735 = vmatprep.subr.bf16.mxu0 0
  %736 = vmatpush2.bf16.msra.mxu0 %v510
  %737 = vmatprep.mubr.bf16.mxu0 %v189
  %738 = vmatmul.mubr.bf16.gmra.mxu0 %v188
  %v739 = vpop.f32.mrf.mxu0
  %v740 = vadd.f32 %v699, %v739
  %v741 = vpop.f32.mrf.mxu0
  %v742 = vpop.f32.mrf.mxu0
  %v743 = vadd.f32 %v702, %v742
  %v744 = vpop.f32.mrf.mxu0
  %745 = vdwg.mxu0
  %v746 = vmax.f32 %v740, 0.0
  %v747 = vmax.f32 %v743, 0.0
  %v748 = vpack.c.bf16 %v747, %v746
  %v750 = vunpack.c.l.b16 %v748
  %v751 = vunpack.c.h.b16 %v748
  %v752 = vpack.c.b16 %v750, %v750
  %v753 = vpack.c.b16 %v751, %v751
  %756 = vst [vmem:[%s3] sm:$0xf] %v752
  %757 = vst [vmem:[%s3 + $0x4] sm:$0xf] %v753
  // Predicated region
  $region14: #{discrete_cnn_critic_forward.4} parent=0 // pred_check
    _
  $region15: #{discrete_cnn_critic_forward.4} parent=0 // pred_check_branch
    %759 = sbr.rel (0) target = $region17
  $region16: #{discrete_cnn_critic_forward.4} parent=0 // pred_region
    _
  $region17: #{discrete_cnn_critic_forward.4} parent=0 // pred_fallthru
    _
  // Predicated region
  $region18: #{discrete_cnn_critic_forward.4} parent=0 // pred_check
    _
  $region19: #{discrete_cnn_critic_forward.4} parent=0 // pred_check_branch
    %761 = sbr.rel (0) target = $region21
  $region20: #{discrete_cnn_critic_forward.4} parent=0 // pred_region
    _
  $region21: #{discrete_cnn_critic_forward.4} parent=0 // pred_fallthru
    _

// kernel: discrete_cnn_critic_forward.5
$region0: #{discrete_cnn_critic_forward.5}
  #allocation0 [shape = 'u32[]', space=smem, size = 0x4, offset = 0x4, fixed_abs, tag = 'smem constant byte address 0x4 - core index']
  #allocation1 [shape = 'u32[144,128]{1,0:T(1,128)}', space=vmem, size = 0x12000, scoped, tag = 'internal scratch']
  %s0 = inlined_call_operand.vmem [shape: bf16[16,1024], index: 0, kind: input, shape index: {}]
  %s1 = inlined_call_operand.vmem [shape: bf16[576,64], index: 1, kind: input, shape index: {}]
  %s2 = inlined_call_operand.vmem [shape: f32[1,64], index: 2, kind: input, shape index: {}]
  %s3 = inlined_call_operand.vmem [shape: bf16[256,512], index: 3, kind: input, shape index: {}]
  %s4 = inlined_call_operand.vmem [shape: f32[1,512], index: 4, kind: input, shape index: {}]
  %s5 = inlined_call_operand.vmem [shape: bf16[512,128], index: 5, kind: input, shape index: {}]
  %s6 = inlined_call_operand.vmem [shape: f32[1,128], index: 6, kind: input, shape index: {}]
  %s7 = inlined_call_operand.vmem [shape: f32[16,128], index: 7, kind: output, shape index: {}]
  %s8 = sld [smem:[#allocation0]]
  $region38: #{discrete_cnn_critic_forward.5} parent=0
    _
  %s10 = ssub.s32 1, %s8
  %s11 = scalar_select 0, %s10, %s8
  // Predicated region
  $region2: #{discrete_cnn_critic_forward.5} parent=0 // pred_check
    _
  $region3: #{discrete_cnn_critic_forward.5} parent=0 // pred_check_branch
    %13 = sbr.rel (0) target = $region5
  $region4: #{discrete_cnn_critic_forward.5} parent=0 // pred_region
    _
  $region5: #{discrete_cnn_critic_forward.5} parent=0 // pred_fallthru
    _
  // Predicated region
  $region6: #{discrete_cnn_critic_forward.5} parent=0 // pred_check
    _
  $region7: #{discrete_cnn_critic_forward.5} parent=0 // pred_check_branch
    %15 = sbr.rel (0) target = $region9
  $region8: #{discrete_cnn_critic_forward.5} parent=0 // pred_region
    _
  $region9: #{discrete_cnn_critic_forward.5} parent=0 // pred_fallthru
    _
  // Predicated region
  $region10: #{discrete_cnn_critic_forward.5} parent=0 // pred_check
    _
  $region11: #{discrete_cnn_critic_forward.5} parent=0 // pred_check_branch
    %17 = sbr.rel (0) target = $region13
  $region12: #{discrete_cnn_critic_forward.5} parent=0 // pred_region
    _
  $region13: #{discrete_cnn_critic_forward.5} parent=0 // pred_fallthru
    _
  // Predicated region
  $region14: #{discrete_cnn_critic_forward.5} parent=0 // pred_check
    _
  $region15: #{discrete_cnn_critic_forward.5} parent=0 // pred_check_branch
    %19 = sbr.rel (0) target = $region17
  $region16: #{discrete_cnn_critic_forward.5} parent=0 // pred_region
    _
  $region17: #{discrete_cnn_critic_forward.5} parent=0 // pred_fallthru
    _
  // Predicated region
  $region18: #{discrete_cnn_critic_forward.5} parent=0 // pred_check
    _
  $region19: #{discrete_cnn_critic_forward.5} parent=0 // pred_check_branch
    %21 = sbr.rel (0) target = $region21
  $region20: #{discrete_cnn_critic_forward.5} parent=0 // pred_region
    _
  $region21: #{discrete_cnn_critic_forward.5} parent=0 // pred_fallthru
    _
  // Predicated region
  $region22: #{discrete_cnn_critic_forward.5} parent=0 // pred_check
    _
  $region23: #{discrete_cnn_critic_forward.5} parent=0 // pred_check_branch
    %23 = sbr.rel (0) target = $region25
  $region24: #{discrete_cnn_critic_forward.5} parent=0 // pred_region
    _
  $region25: #{discrete_cnn_critic_forward.5} parent=0 // pred_fallthru
    _
  // Predicated region
  $region26: #{discrete_cnn_critic_forward.5} parent=0 // pred_check
    _
  $region27: #{discrete_cnn_critic_forward.5} parent=0 // pred_check_branch
    %25 = sbr.rel (0) target = $region29
  $region28: #{discrete_cnn_critic_forward.5} parent=0 // pred_region
    _
  $region29: #{discrete_cnn_critic_forward.5} parent=0 // pred_fallthru
    _
  %v27 = vld [vmem:[%s0] sm:$0xf]
  %v28 = vld [vmem:[%s0 + $0x20] sm:$0xf]
  %v29 = vld [vmem:[%s1] sm:$0xf]
  %v30 = vld [vmem:[%s1 + $0x4] sm:$0xf]
  %v31 = vld [vmem:[%s1 + $0x8] sm:$0xf]
  %v32 = vld [vmem:[%s1 + $0xc] sm:$0xf]
  %v33 = vld [vmem:[%s1 + $0x10] sm:$0xf]
  %v34 = vld [vmem:[%s1 + $0x14] sm:$0xf]
  %v35 = vld [vmem:[%s1 + $0x18] sm:$0xf]
  %v36 = vld [vmem:[%s1 + $0x1c] sm:$0xf]
  %v37 = vld [vmem:[%s1 + $0x20] sm:$0xf]
  %v38 = vld [vmem:[%s1 + $0x24] sm:$0xf]
  %v39 = vld [vmem:[%s1 + $0x28] sm:$0xf]
  %v40 = vld [vmem:[%s1 + $0x2c] sm:$0xf]
  %v41 = vld [vmem:[%s1 + $0x30] sm:$0xf]
  %v42 = vld [vmem:[%s1 + $0x34] sm:$0xf]
  %v43 = vld [vmem:[%s1 + $0x38] sm:$0xf]
  %v44 = vld [vmem:[%s1 + $0x3c] sm:$0xf]
  %v47 = vunpack.c.l.b16 %v27
  %v48 = vunpack.c.l.b16 %v28
  %v49 = vpack.c.b16 %v48, %v47
  %50 = vrot.lane.b32.xlu0 %v49, 64
  %v51 = vpop.permute.xlu0 %50
  %v60 = vunpack.c.l.b16 %v37
  %v61 = vunpack.c.l.b16 %v38
  %v62 = vunpack.c.l.b16 %v39
  %v63 = vunpack.c.l.b16 %v40
  %v64 = vunpack.c.l.b16 %v41
  %v65 = vunpack.c.l.b16 %v42
  %v66 = vunpack.c.l.b16 %v43
  %v67 = vunpack.c.l.b16 %v44
  %v68 = vpack.c.b16 %v61, %v60
  %v69 = vpack.c.b16 %v63, %v62
  %v70 = vpack.c.b16 %v65, %v64
  %v71 = vpack.c.b16 %v67, %v66
  %vm76 = vcmask 523264
  %v78 = vsel %vm76, %v51, 0
  %80 = vmatprep.subr.bf16.mxu0 0
  %81 = vmatpush1.bf16.msra.mxu0 0
  %82 = vmatprep.subr.bf16.mxu0 0
  %83 = vmatpush1.bf16.msra.mxu0 0
  %84 = vmatprep.subr.bf16.mxu0 0
  %85 = vmatpush1.bf16.msra.mxu0 0
  %86 = vmatprep.subr.bf16.mxu0 0
  %87 = vmatpush1.bf16.msra.mxu0 0
  %88 = vmatprep.subr.bf16.mxu0 0
  %89 = vmatpush1.bf16.msra.mxu0 %v71
  %90 = vmatprep.subr.bf16.mxu0 0
  %91 = vmatpush1.bf16.msra.mxu0 %v70
  %92 = vmatprep.subr.bf16.mxu0 0
  %93 = vmatpush1.bf16.msra.mxu0 %v69
  %94 = vmatprep.subr.bf16.mxu0 0
  %95 = vmatpush1.bf16.msra.mxu0 %v68
  %96 = vmatprep.subr.bf16.mxu0 0
  %97 = vmatpush2.bf16.msra.mxu0 0
  %98 = vmatprep.subr.bf16.mxu0 0
  %99 = vmatpush2.bf16.msra.mxu0 0
  %100 = vmatprep.subr.bf16.mxu0 0
  %101 = vmatpush2.bf16.msra.mxu0 0
  %102 = vmatprep.subr.bf16.mxu0 0
  %103 = vmatpush2.bf16.msra.mxu0 0
  %104 = vmatprep.subr.bf16.mxu0 0
  %105 = vmatpush2.bf16.msra.mxu0 0
  %106 = vmatprep.subr.bf16.mxu0 0
  %107 = vmatpush2.bf16.msra.mxu0 0
  %108 = vmatprep.subr.bf16.mxu0 0
  %109 = vmatpush2.bf16.msra.mxu0 0
  %110 = vmatprep.subr.bf16.mxu0 0
  %111 = vmatpush2.bf16.msra.mxu0 0
  %112 = vmatprep.mubr.bf16.mxu0 0
  %113 = vmatmul.mubr.bf16.gmra.mxu0 %v78
  %v114 = vpop.f32.mrf.mxu0
  %v115 = vadd.f32 0.0, %v114
  %v116 = vpop.f32.mrf.mxu0
  %v117 = vpop.f32.mrf.mxu0
  %v118 = vadd.f32 0.0, %v117
  %v119 = vpop.f32.mrf.mxu0
  %120 = vdwg.mxu0
  %v129 = vunpack.c.l.b16 %v29
  %v130 = vunpack.c.l.b16 %v30
  %v131 = vunpack.c.l.b16 %v31
  %v132 = vunpack.c.l.b16 %v32
  %v133 = vunpack.c.l.b16 %v33
  %v134 = vunpack.c.l.b16 %v34
  %v135 = vunpack.c.l.b16 %v35
  %v136 = vunpack.c.l.b16 %v36
  %v137 = vpack.c.b16 %v130, %v129
  %v138 = vpack.c.b16 %v132, %v131
  %v139 = vpack.c.b16 %v134, %v133
  %v140 = vpack.c.b16 %v136, %v135
  %v146 = vsel %vm76, %v49, 0
  %148 = vmatprep.subr.bf16.mxu0 0
  %149 = vmatpush1.bf16.msra.mxu0 0
  %150 = vmatprep.subr.bf16.mxu0 0
  %151 = vmatpush1.bf16.msra.mxu0 0
  %152 = vmatprep.subr.bf16.mxu0 0
  %153 = vmatpush1.bf16.msra.mxu0 0
  %154 = vmatprep.subr.bf16.mxu0 0
  %155 = vmatpush1.bf16.msra.mxu0 0
  %156 = vmatprep.subr.bf16.mxu0 0
  %157 = vmatpush1.bf16.msra.mxu0 %v140
  %158 = vmatprep.subr.bf16.mxu0 0
  %159 = vmatpush1.bf16.msra.mxu0 %v139
  %160 = vmatprep.subr.bf16.mxu0 0
  %161 = vmatpush1.bf16.msra.mxu0 %v138
  %162 = vmatprep.subr.bf16.mxu0 0
  %163 = vmatpush1.bf16.msra.mxu0 %v137
  %164 = vmatprep.subr.bf16.mxu0 0
  %165 = vmatpush2.bf16.msra.mxu0 0
  %166 = vmatprep.subr.bf16.mxu0 0
  %167 = vmatpush2.bf16.msra.mxu0 0
  %168 = vmatprep.subr.bf16.mxu0 0
  %169 = vmatpush2.bf16.msra.mxu0 0
  %170 = vmatprep.subr.bf16.mxu0 0
  %171 = vmatpush2.bf16.msra.mxu0 0
  %172 = vmatprep.subr.bf16.mxu0 0
  %173 = vmatpush2.bf16.msra.mxu0 0
  %174 = vmatprep.subr.bf16.mxu0 0
  %175 = vmatpush2.bf16.msra.mxu0 0
  %176 = vmatprep.subr.bf16.mxu0 0
  %177 = vmatpush2.bf16.msra.mxu0 0
  %178 = vmatprep.subr.bf16.mxu0 0
  %179 = vmatpush2.bf16.msra.mxu0 0
  %180 = vmatprep.mubr.bf16.mxu0 0
  %181 = vmatmul.mubr.bf16.gmra.mxu0 %v146
  %v182 = vpop.f32.mrf.mxu0
  %v183 = vadd.f32 %v115, %v182
  %v184 = vpop.f32.mrf.mxu0
  %v185 = vpop.f32.mrf.mxu0
  %v186 = vadd.f32 %v118, %v185
  %v187 = vpop.f32.mrf.mxu0
  %188 = vdwg.mxu0
  %v189 = vld [vmem:[%s0 + $0x4] sm:$0xf]
  %v190 = vld [vmem:[%s0 + $0x24] sm:$0xf]
  %v191 = vld [vmem:[%s1 + $0x40] sm:$0xf]
  %v192 = vld [vmem:[%s1 + $0x44] sm:$0xf]
  %v193 = vld [vmem:[%s1 + $0x48] sm:$0xf]
  %v194 = vld [vmem:[%s1 + $0x4c] sm:$0xf]
  %v195 = vld [vmem:[%s1 + $0x50] sm:$0xf]
  %v196 = vld [vmem:[%s1 + $0x54] sm:$0xf]
  %v197 = vld [vmem:[%s1 + $0x58] sm:$0xf]
  %v198 = vld [vmem:[%s1 + $0x5c] sm:$0xf]
  %v201 = vunpack.c.l.b16 %v189
  %v202 = vunpack.c.l.b16 %v190
  %v203 = vpack.c.b16 %v202, %v201
  %v212 = vunpack.c.l.b16 %v191
  %v213 = vunpack.c.l.b16 %v192
  %v214 = vunpack.c.l.b16 %v193
  %v215 = vunpack.c.l.b16 %v194
  %v216 = vunpack.c.l.b16 %v195
  %v217 = vunpack.c.l.b16 %v196
  %v218 = vunpack.c.l.b16 %v197
  %v219 = vunpack.c.l.b16 %v198
  %v220 = vpack.c.b16 %v213, %v212
  %v221 = vpack.c.b16 %v215, %v214
  %v222 = vpack.c.b16 %v217, %v216
  %v223 = vpack.c.b16 %v219, %v218
  %v229 = vsel %vm76, %v203, 0
  %231 = vmatprep.subr.bf16.mxu0 0
  %232 = vmatpush1.bf16.msra.mxu0 0
  %233 = vmatprep.subr.bf16.mxu0 0
  %234 = vmatpush1.bf16.msra.mxu0 0
  %235 = vmatprep.subr.bf16.mxu0 0
  %236 = vmatpush1.bf16.msra.mxu0 0
  %237 = vmatprep.subr.bf16.mxu0 0
  %238 = vmatpush1.bf16.msra.mxu0 0
  %239 = vmatprep.subr.bf16.mxu0 0
  %240 = vmatpush1.bf16.msra.mxu0 %v223
  %241 = vmatprep.subr.bf16.mxu0 0
  %242 = vmatpush1.bf16.msra.mxu0 %v222
  %243 = vmatprep.subr.bf16.mxu0 0
  %244 = vmatpush1.bf16.msra.mxu0 %v221
  %245 = vmatprep.subr.bf16.mxu0 0
  %246 = vmatpush1.bf16.msra.mxu0 %v220
  %247 = vmatprep.subr.bf16.mxu0 0
  %248 = vmatpush2.bf16.msra.mxu0 0
  %249 = vmatprep.subr.bf16.mxu0 0
  %250 = vmatpush2.bf16.msra.mxu0 0
  %251 = vmatprep.subr.bf16.mxu0 0
  %252 = vmatpush2.bf16.msra.mxu0 0
  %253 = vmatprep.subr.bf16.mxu0 0
  %254 = vmatpush2.bf16.msra.mxu0 0
  %255 = vmatprep.subr.bf16.mxu0 0
  %256 = vmatpush2.bf16.msra.mxu0 0
  %257 = vmatprep.subr.bf16.mxu0 0
  %258 = vmatpush2.bf16.msra.mxu0 0
  %259 = vmatprep.subr.bf16.mxu0 0
  %260 = vmatpush2.bf16.msra.mxu0 0
  %261 = vmatprep.subr.bf16.mxu0 0
  %262 = vmatpush2.bf16.msra.mxu0 0
  %263 = vmatprep.mubr.bf16.mxu0 0
  %264 = vmatmul.mubr.bf16.gmra.mxu0 %v229
  %v265 = vpop.f32.mrf.mxu0
  %v266 = vadd.f32 0.0, %v265
  %v267 = vpop.f32.mrf.mxu0
  %v268 = vpop.f32.mrf.mxu0
  %v269 = vadd.f32 0.0, %v268
  %v270 = vpop.f32.mrf.mxu0
  %271 = vdwg.mxu0
  %v272 = vadd.f32 %v183, %v266
  %v273 = vadd.f32 %v186, %v269
  %v274 = vld [vmem:[%s0 + $0x8] sm:$0xf]
  %v275 = vld [vmem:[%s0 + $0x28] sm:$0xf]
  %v276 = vld [vmem:[%s1 + $0x60] sm:$0xf]
  %v277 = vld [vmem:[%s1 + $0x64] sm:$0xf]
  %v278 = vld [vmem:[%s1 + $0x68] sm:$0xf]
  %v279 = vld [vmem:[%s1 + $0x6c] sm:$0xf]
  %v280 = vld [vmem:[%s1 + $0x70] sm:$0xf]
  %v281 = vld [vmem:[%s1 + $0x74] sm:$0xf]
  %v282 = vld [vmem:[%s1 + $0x78] sm:$0xf]
  %v283 = vld [vmem:[%s1 + $0x7c] sm:$0xf]
  %v286 = vunpack.c.l.b16 %v274
  %v287 = vunpack.c.l.b16 %v275
  %v288 = vpack.c.b16 %v287, %v286
  %v297 = vunpack.c.l.b16 %v276
  %v298 = vunpack.c.l.b16 %v277
  %v299 = vunpack.c.l.b16 %v278
  %v300 = vunpack.c.l.b16 %v279
  %v301 = vunpack.c.l.b16 %v280
  %v302 = vunpack.c.l.b16 %v281
  %v303 = vunpack.c.l.b16 %v282
  %v304 = vunpack.c.l.b16 %v283
  %v305 = vpack.c.b16 %v298, %v297
  %v306 = vpack.c.b16 %v300, %v299
  %v307 = vpack.c.b16 %v302, %v301
  %v308 = vpack.c.b16 %v304, %v303
  %v314 = vsel %vm76, %v288, 0
  %316 = vmatprep.subr.bf16.mxu0 0
  %317 = vmatpush1.bf16.msra.mxu0 0
  %318 = vmatprep.subr.bf16.mxu0 0
  %319 = vmatpush1.bf16.msra.mxu0 0
  %320 = vmatprep.subr.bf16.mxu0 0
  %321 = vmatpush1.bf16.msra.mxu0 0
  %322 = vmatprep.subr.bf16.mxu0 0
  %323 = vmatpush1.bf16.msra.mxu0 0
  %324 = vmatprep.subr.bf16.mxu0 0
  %325 = vmatpush1.bf16.msra.mxu0 %v308
  %326 = vmatprep.subr.bf16.mxu0 0
  %327 = vmatpush1.bf16.msra.mxu0 %v307
  %328 = vmatprep.subr.bf16.mxu0 0
  %329 = vmatpush1.bf16.msra.mxu0 %v306
  %330 = vmatprep.subr.bf16.mxu0 0
  %331 = vmatpush1.bf16.msra.mxu0 %v305
  %332 = vmatprep.subr.bf16.mxu0 0
  %333 = vmatpush2.bf16.msra.mxu0 0
  %334 = vmatprep.subr.bf16.mxu0 0
  %335 = vmatpush2.bf16.msra.mxu0 0
  %336 = vmatprep.subr.bf16.mxu0 0
  %337 = vmatpush2.bf16.msra.mxu0 0
  %338 = vmatprep.subr.bf16.mxu0 0
  %339 = vmatpush2.bf16.msra.mxu0 0
  %340 = vmatprep.subr.bf16.mxu0 0
  %341 = vmatpush2.bf16.msra.mxu0 0
  %342 = vmatprep.subr.bf16.mxu0 0
  %343 = vmatpush2.bf16.msra.mxu0 0
  %344 = vmatprep.subr.bf16.mxu0 0
  %345 = vmatpush2.bf16.msra.mxu0 0
  %346 = vmatprep.subr.bf16.mxu0 0
  %347 = vmatpush2.bf16.msra.mxu0 0
  %348 = vmatprep.mubr.bf16.mxu0 0
  %349 = vmatmul.mubr.bf16.gmra.mxu0 %v314
  %v350 = vpop.f32.mrf.mxu0
  %v351 = vadd.f32 0.0, %v350
  %v352 = vpop.f32.mrf.mxu0
  %v353 = vpop.f32.mrf.mxu0
  %v354 = vadd.f32 0.0, %v353
  %v355 = vpop.f32.mrf.mxu0
  %356 = vdwg.mxu0
  %v357 = vadd.f32 %v272, %v351
  %v358 = vadd.f32 %v273, %v354
  %v359 = vld [vmem:[%s1 + $0x80] sm:$0xf]
  %v360 = vld [vmem:[%s1 + $0x84] sm:$0xf]
  %v361 = vld [vmem:[%s1 + $0x88] sm:$0xf]
  %v362 = vld [vmem:[%s1 + $0x8c] sm:$0xf]
  %v363 = vld [vmem:[%s1 + $0x90] sm:$0xf]
  %v364 = vld [vmem:[%s1 + $0x94] sm:$0xf]
  %v365 = vld [vmem:[%s1 + $0x98] sm:$0xf]
  %v366 = vld [vmem:[%s1 + $0x9c] sm:$0xf]
  %367 = vrot.lane.b32.xlu0 %v288, 64
  %v368 = vpop.permute.xlu0 %367
  %v377 = vunpack.c.l.b16 %v359
  %v378 = vunpack.c.l.b16 %v360
  %v379 = vunpack.c.l.b16 %v361
  %v380 = vunpack.c.l.b16 %v362
  %v381 = vunpack.c.l.b16 %v363
  %v382 = vunpack.c.l.b16 %v364
  %v383 = vunpack.c.l.b16 %v365
  %v384 = vunpack.c.l.b16 %v366
  %v385 = vpack.c.b16 %v378, %v377
  %v386 = vpack.c.b16 %v380, %v379
  %v387 = vpack.c.b16 %v382, %v381
  %v388 = vpack.c.b16 %v384, %v383
  %v394 = vsel %vm76, %v368, 0
  %396 = vmatprep.subr.bf16.mxu0 0
  %397 = vmatpush1.bf16.msra.mxu0 0
  %398 = vmatprep.subr.bf16.mxu0 0
  %399 = vmatpush1.bf16.msra.mxu0 0
  %400 = vmatprep.subr.bf16.mxu0 0
  %401 = vmatpush1.bf16.msra.mxu0 0
  %402 = vmatprep.subr.bf16.mxu0 0
  %403 = vmatpush1.bf16.msra.mxu0 0
  %404 = vmatprep.subr.bf16.mxu0 0
  %405 = vmatpush1.bf16.msra.mxu0 %v388
  %406 = vmatprep.subr.bf16.mxu0 0
  %407 = vmatpush1.bf16.msra.mxu0 %v387
  %408 = vmatprep.subr.bf16.mxu0 0
  %409 = vmatpush1.bf16.msra.mxu0 %v386
  %410 = vmatprep.subr.bf16.mxu0 0
  %411 = vmatpush1.bf16.msra.mxu0 %v385
  %412 = vmatprep.subr.bf16.mxu0 0
  %413 = vmatpush2.bf16.msra.mxu0 0
  %414 = vmatprep.subr.bf16.mxu0 0
  %415 = vmatpush2.bf16.msra.mxu0 0
  %416 = vmatprep.subr.bf16.mxu0 0
  %417 = vmatpush2.bf16.msra.mxu0 0
  %418 = vmatprep.subr.bf16.mxu0 0
  %419 = vmatpush2.bf16.msra.mxu0 0
  %420 = vmatprep.subr.bf16.mxu0 0
  %421 = vmatpush2.bf16.msra.mxu0 0
  %422 = vmatprep.subr.bf16.mxu0 0
  %423 = vmatpush2.bf16.msra.mxu0 0
  %424 = vmatprep.subr.bf16.mxu0 0
  %425 = vmatpush2.bf16.msra.mxu0 0
  %426 = vmatprep.subr.bf16.mxu0 0
  %427 = vmatpush2.bf16.msra.mxu0 0
  %428 = vmatprep.mubr.bf16.mxu0 0
  %429 = vmatmul.mubr.bf16.gmra.mxu0 %v394
  %v430 = vpop.f32.mrf.mxu0
  %v431 = vadd.f32 0.0, %v430
  %v432 = vpop.f32.mrf.mxu0
  %v433 = vpop.f32.mrf.mxu0
  %v434 = vadd.f32 0.0, %v433
  %v435 = vpop.f32.mrf.mxu0
  %436 = vdwg.mxu0
  %v437 = vadd.f32 %v357, %v431
  %v438 = vadd.f32 %v358, %v434
  %v439 = vld [vmem:[%s0 + $0xc] sm:$0xf]
  %v440 = vld [vmem:[%s0 + $0x2c] sm:$0xf]
  %v441 = vld [vmem:[%s1 + $0xa0] sm:$0xf]
  %v442 = vld [vmem:[%s1 + $0xa4] sm:$0xf]
  %v443 = vld [vmem:[%s1 + $0xa8] sm:$0xf]
  %v444 = vld [vmem:[%s1 + $0xac] sm:$0xf]
  %v445 = vld [vmem:[%s1 + $0xb0] sm:$0xf]
  %v446 = vld [vmem:[%s1 + $0xb4] sm:$0xf]
  %v447 = vld [vmem:[%s1 + $0xb8] sm:$0xf]
  %v448 = vld [vmem:[%s1 + $0xbc] sm:$0xf]
  %v451 = vunpack.c.l.b16 %v439
  %v452 = vunpack.c.l.b16 %v440
  %v453 = vpack.c.b16 %v452, %v451
  %v462 = vunpack.c.l.b16 %v441
  %v463 = vunpack.c.l.b16 %v442
  %v464 = vunpack.c.l.b16 %v443
  %v465 = vunpack.c.l.b16 %v444
  %v466 = vunpack.c.l.b16 %v445
  %v467 = vunpack.c.l.b16 %v446
  %v468 = vunpack.c.l.b16 %v447
  %v469 = vunpack.c.l.b16 %v448
  %v470 = vpack.c.b16 %v463, %v462
  %v471 = vpack.c.b16 %v465, %v464
  %v472 = vpack.c.b16 %v467, %v466
  %v473 = vpack.c.b16 %v469, %v468
  %v479 = vsel %vm76, %v453, 0
  %481 = vmatprep.subr.bf16.mxu0 0
  %482 = vmatpush1.bf16.msra.mxu0 0
  %483 = vmatprep.subr.bf16.mxu0 0
  %484 = vmatpush1.bf16.msra.mxu0 0
  %485 = vmatprep.subr.bf16.mxu0 0
  %486 = vmatpush1.bf16.msra.mxu0 0
  %487 = vmatprep.subr.bf16.mxu0 0
  %488 = vmatpush1.bf16.msra.mxu0 0
  %489 = vmatprep.subr.bf16.mxu0 0
  %490 = vmatpush1.bf16.msra.mxu0 %v473
  %491 = vmatprep.subr.bf16.mxu0 0
  %492 = vmatpush1.bf16.msra.mxu0 %v472
  %493 = vmatprep.subr.bf16.mxu0 0
  %494 = vmatpush1.bf16.msra.mxu0 %v471
  %495 = vmatprep.subr.bf16.mxu0 0
  %496 = vmatpush1.bf16.msra.mxu0 %v470
  %497 = vmatprep.subr.bf16.mxu0 0
  %498 = vmatpush2.bf16.msra.mxu0 0
  %499 = vmatprep.subr.bf16.mxu0 0
  %500 = vmatpush2.bf16.msra.mxu0 0
  %501 = vmatprep.subr.bf16.mxu0 0
  %502 = vmatpush2.bf16.msra.mxu0 0
  %503 = vmatprep.subr.bf16.mxu0 0
  %504 = vmatpush2.bf16.msra.mxu0 0
  %505 = vmatprep.subr.bf16.mxu0 0
  %506 = vmatpush2.bf16.msra.mxu0 0
  %507 = vmatprep.subr.bf16.mxu0 0
  %508 = vmatpush2.bf16.msra.mxu0 0
  %509 = vmatprep.subr.bf16.mxu0 0
  %510 = vmatpush2.bf16.msra.mxu0 0
  %511 = vmatprep.subr.bf16.mxu0 0
  %512 = vmatpush2.bf16.msra.mxu0 0
  %513 = vmatprep.mubr.bf16.mxu0 0
  %514 = vmatmul.mubr.bf16.gmra.mxu0 %v479
  %v515 = vpop.f32.mrf.mxu0
  %v516 = vadd.f32 0.0, %v515
  %v517 = vpop.f32.mrf.mxu0
  %v518 = vpop.f32.mrf.mxu0
  %v519 = vadd.f32 0.0, %v518
  %v520 = vpop.f32.mrf.mxu0
  %521 = vdwg.mxu0
  %v522 = vadd.f32 %v437, %v516
  %v523 = vadd.f32 %v438, %v519
  %v524 = vld [vmem:[%s0 + $0x10] sm:$0xf]
  %v525 = vld [vmem:[%s0 + $0x30] sm:$0xf]
  %v526 = vld [vmem:[%s1 + $0xc0] sm:$0xf]
  %v527 = vld [vmem:[%s1 + $0xc4] sm:$0xf]
  %v528 = vld [vmem:[%s1 + $0xc8] sm:$0xf]
  %v529 = vld [vmem:[%s1 + $0xcc] sm:$0xf]
  %v530 = vld [vmem:[%s1 + $0xd0] sm:$0xf]
  %v531 = vld [vmem:[%s1 + $0xd4] sm:$0xf]
  %v532 = vld [vmem:[%s1 + $0xd8] sm:$0xf]
  %v533 = vld [vmem:[%s1 + $0xdc] sm:$0xf]
  %v536 = vunpack.c.l.b16 %v524
  %v537 = vunpack.c.l.b16 %v525
  %v538 = vpack.c.b16 %v537, %v536
  %v547 = vunpack.c.l.b16 %v526
  %v548 = vunpack.c.l.b16 %v527
  %v549 = vunpack.c.l.b16 %v528
  %v550 = vunpack.c.l.b16 %v529
  %v551 = vunpack.c.l.b16 %v530
  %v552 = vunpack.c.l.b16 %v531
  %v553 = vunpack.c.l.b16 %v532
  %v554 = vunpack.c.l.b16 %v533
  %v555 = vpack.c.b16 %v548, %v547
  %v556 = vpack.c.b16 %v550, %v549
  %v557 = vpack.c.b16 %v552, %v551
  %v558 = vpack.c.b16 %v554, %v553
  %v564 = vsel %vm76, %v538, 0
  %566 = vmatprep.subr.bf16.mxu0 0
  %567 = vmatpush1.bf16.msra.mxu0 0
  %568 = vmatprep.subr.bf16.mxu0 0
  %569 = vmatpush1.bf16.msra.mxu0 0
  %570 = vmatprep.subr.bf16.mxu0 0
  %571 = vmatpush1.bf16.msra.mxu0 0
  %572 = vmatprep.subr.bf16.mxu0 0
  %573 = vmatpush1.bf16.msra.mxu0 0
  %574 = vmatprep.subr.bf16.mxu0 0
  %575 = vmatpush1.bf16.msra.mxu0 %v558
  %576 = vmatprep.subr.bf16.mxu0 0
  %577 = vmatpush1.bf16.msra.mxu0 %v557
  %578 = vmatprep.subr.bf16.mxu0 0
  %579 = vmatpush1.bf16.msra.mxu0 %v556
  %580 = vmatprep.subr.bf16.mxu0 0
  %581 = vmatpush1.bf16.msra.mxu0 %v555
  %582 = vmatprep.subr.bf16.mxu0 0
  %583 = vmatpush2.bf16.msra.mxu0 0
  %584 = vmatprep.subr.bf16.mxu0 0
  %585 = vmatpush2.bf16.msra.mxu0 0
  %586 = vmatprep.subr.bf16.mxu0 0
  %587 = vmatpush2.bf16.msra.mxu0 0
  %588 = vmatprep.subr.bf16.mxu0 0
  %589 = vmatpush2.bf16.msra.mxu0 0
  %590 = vmatprep.subr.bf16.mxu0 0
  %591 = vmatpush2.bf16.msra.mxu0 0
  %592 = vmatprep.subr.bf16.mxu0 0
  %593 = vmatpush2.bf16.msra.mxu0 0
  %594 = vmatprep.subr.bf16.mxu0 0
  %595 = vmatpush2.bf16.msra.mxu0 0
  %596 = vmatprep.subr.bf16.mxu0 0
  %597 = vmatpush2.bf16.msra.mxu0 0
  %598 = vmatprep.mubr.bf16.mxu0 0
  %599 = vmatmul.mubr.bf16.gmra.mxu0 %v564
  %v600 = vpop.f32.mrf.mxu0
  %v601 = vadd.f32 0.0, %v600
  %v602 = vpop.f32.mrf.mxu0
  %v603 = vpop.f32.mrf.mxu0
  %v604 = vadd.f32 0.0, %v603
  %v605 = vpop.f32.mrf.mxu0
  %606 = vdwg.mxu0
  %v607 = vadd.f32 %v522, %v601
  %v608 = vadd.f32 %v523, %v604
  %v609 = vld [vmem:[%s1 + $0xe0] sm:$0xf]
  %v610 = vld [vmem:[%s1 + $0xe4] sm:$0xf]
  %v611 = vld [vmem:[%s1 + $0xe8] sm:$0xf]
  %v612 = vld [vmem:[%s1 + $0xec] sm:$0xf]
  %v613 = vld [vmem:[%s1 + $0xf0] sm:$0xf]
  %v614 = vld [vmem:[%s1 + $0xf4] sm:$0xf]
  %v615 = vld [vmem:[%s1 + $0xf8] sm:$0xf]
  %v616 = vld [vmem:[%s1 + $0xfc] sm:$0xf]
  %617 = vrot.lane.b32.xlu0 %v538, 64
  %v618 = vpop.permute.xlu0 %617
  %v627 = vunpack.c.l.b16 %v609
  %v628 = vunpack.c.l.b16 %v610
  %v629 = vunpack.c.l.b16 %v611
  %v630 = vunpack.c.l.b16 %v612
  %v631 = vunpack.c.l.b16 %v613
  %v632 = vunpack.c.l.b16 %v614
  %v633 = vunpack.c.l.b16 %v615
  %v634 = vunpack.c.l.b16 %v616
  %v635 = vpack.c.b16 %v628, %v627
  %v636 = vpack.c.b16 %v630, %v629
  %v637 = vpack.c.b16 %v632, %v631
  %v638 = vpack.c.b16 %v634, %v633
  %v644 = vsel %vm76, %v618, 0
  %646 = vmatprep.subr.bf16.mxu0 0
  %647 = vmatpush1.bf16.msra.mxu0 0
  %648 = vmatprep.subr.bf16.mxu0 0
  %649 = vmatpush1.bf16.msra.mxu0 0
  %650 = vmatprep.subr.bf16.mxu0 0
  %651 = vmatpush1.bf16.msra.mxu0 0
  %652 = vmatprep.subr.bf16.mxu0 0
  %653 = vmatpush1.bf16.msra.mxu0 0
  %654 = vmatprep.subr.bf16.mxu0 0
  %655 = vmatpush1.bf16.msra.mxu0 %v638
  %656 = vmatprep.subr.bf16.mxu0 0
  %657 = vmatpush1.bf16.msra.mxu0 %v637
  %658 = vmatprep.subr.bf16.mxu0 0
  %659 = vmatpush1.bf16.msra.mxu0 %v636
  %660 = vmatprep.subr.bf16.mxu0 0
  %661 = vmatpush1.bf16.msra.mxu0 %v635
  %662 = vmatprep.subr.bf16.mxu0 0
  %663 = vmatpush2.bf16.msra.mxu0 0
  %664 = vmatprep.subr.bf16.mxu0 0
  %665 = vmatpush2.bf16.msra.mxu0 0
  %666 = vmatprep.subr.bf16.mxu0 0
  %667 = vmatpush2.bf16.msra.mxu0 0
  %668 = vmatprep.subr.bf16.mxu0 0
  %669 = vmatpush2.bf16.msra.mxu0 0
  %670 = vmatprep.subr.bf16.mxu0 0
  %671 = vmatpush2.bf16.msra.mxu0 0
  %672 = vmatprep.subr.bf16.mxu0 0
  %673 = vmatpush2.bf16.msra.mxu0 0
  %674 = vmatprep.subr.bf16.mxu0 0
  %675 = vmatpush2.bf16.msra.mxu0 0
  %676 = vmatprep.subr.bf16.mxu0 0
  %677 = vmatpush2.bf16.msra.mxu0 0
  %678 = vmatprep.mubr.bf16.mxu0 0
  %679 = vmatmul.mubr.bf16.gmra.mxu0 %v644
  %v680 = vpop.f32.mrf.mxu0
  %v681 = vadd.f32 0.0, %v680
  %v682 = vpop.f32.mrf.mxu0
  %v683 = vpop.f32.mrf.mxu0
  %v684 = vadd.f32 0.0, %v683
  %v685 = vpop.f32.mrf.mxu0
  %686 = vdwg.mxu0
  %v687 = vadd.f32 %v607, %v681
  %v688 = vadd.f32 %v608, %v684
  %v689 = vld [vmem:[%s0 + $0x14] sm:$0xf]
  %v690 = vld [vmem:[%s0 + $0x34] sm:$0xf]
  %v691 = vld [vmem:[%s1 + $0x100] sm:$0xf]
  %v692 = vld [vmem:[%s1 + $0x104] sm:$0xf]
  %v693 = vld [vmem:[%s1 + $0x108] sm:$0xf]
  %v694 = vld [vmem:[%s1 + $0x10c] sm:$0xf]
  %v695 = vld [vmem:[%s1 + $0x110] sm:$0xf]
  %v696 = vld [vmem:[%s1 + $0x114] sm:$0xf]
  %v697 = vld [vmem:[%s1 + $0x118] sm:$0xf]
  %v698 = vld [vmem:[%s1 + $0x11c] sm:$0xf]
  %v701 = vunpack.c.l.b16 %v689
  %v702 = vunpack.c.l.b16 %v690
  %v703 = vpack.c.b16 %v702, %v701
  %v712 = vunpack.c.l.b16 %v691
  %v713 = vunpack.c.l.b16 %v692
  %v714 = vunpack.c.l.b16 %v693
  %v715 = vunpack.c.l.b16 %v694
  %v716 = vunpack.c.l.b16 %v695
  %v717 = vunpack.c.l.b16 %v696
  %v718 = vunpack.c.l.b16 %v697
  %v719 = vunpack.c.l.b16 %v698
  %v720 = vpack.c.b16 %v713, %v712
  %v721 = vpack.c.b16 %v715, %v714
  %v722 = vpack.c.b16 %v717, %v716
  %v723 = vpack.c.b16 %v719, %v718
  %v729 = vsel %vm76, %v703, 0
  %731 = vmatprep.subr.bf16.mxu0 0
  %732 = vmatpush1.bf16.msra.mxu0 0
  %733 = vmatprep.subr.bf16.mxu0 0
  %734 = vmatpush1.bf16.msra.mxu0 0
  %735 = vmatprep.subr.bf16.mxu0 0
  %736 = vmatpush1.bf16.msra.mxu0 0
  %737 = vmatprep.subr.bf16.mxu0 0
  %738 = vmatpush1.bf16.msra.mxu0 0
  %739 = vmatprep.subr.bf16.mxu0 0
  %740 = vmatpush1.bf16.msra.mxu0 %v723
  %741 = vmatprep.subr.bf16.mxu0 0
  %742 = vmatpush1.bf16.msra.mxu0 %v722
  %743 = vmatprep.subr.bf16.mxu0 0
  %744 = vmatpush1.bf16.msra.mxu0 %v721
  %745 = vmatprep.subr.bf16.mxu0 0
  %746 = vmatpush1.bf16.msra.mxu0 %v720
  %747 = vmatprep.subr.bf16.mxu0 0
  %748 = vmatpush2.bf16.msra.mxu0 0
  %749 = vmatprep.subr.bf16.mxu0 0
  %750 = vmatpush2.bf16.msra.mxu0 0
  %751 = vmatprep.subr.bf16.mxu0 0
  %752 = vmatpush2.bf16.msra.mxu0 0
  %753 = vmatprep.subr.bf16.mxu0 0
  %754 = vmatpush2.bf16.msra.mxu0 0
  %755 = vmatprep.subr.bf16.mxu0 0
  %756 = vmatpush2.bf16.msra.mxu0 0
  %757 = vmatprep.subr.bf16.mxu0 0
  %758 = vmatpush2.bf16.msra.mxu0 0
  %759 = vmatprep.subr.bf16.mxu0 0
  %760 = vmatpush2.bf16.msra.mxu0 0
  %761 = vmatprep.subr.bf16.mxu0 0
  %762 = vmatpush2.bf16.msra.mxu0 0
  %763 = vmatprep.mubr.bf16.mxu0 0
  %764 = vmatmul.mubr.bf16.gmra.mxu0 %v729
  %v765 = vpop.f32.mrf.mxu0
  %v766 = vadd.f32 0.0, %v765
  %v767 = vpop.f32.mrf.mxu0
  %v768 = vpop.f32.mrf.mxu0
  %v769 = vadd.f32 0.0, %v768
  %v770 = vpop.f32.mrf.mxu0
  %771 = vdwg.mxu0
  %v772 = vadd.f32 %v687, %v766
  %v773 = vadd.f32 %v688, %v769
  %v774 = vld [vmem:[%s2] sm:$0x1]
  %v776 = vlaneseq
  %v777 = vshrl.u32 %v776, 7
  %v778 = vsub.s32 0, %v777
  %v779 = vrot.slane %v774, %v778
  %v781 = vadd.f32 %v772, %v779
  %v782 = vadd.f32 %v773, %v779
  %v783 = vmax.f32 %v781, 0.0
  %v784 = vmax.f32 %v782, 0.0
  %v785 = vpack.c.bf16 %v784, %v783
  %v786 = vld [vmem:[%s3] sm:$0xff]
  %v787 = vld [vmem:[%s3 + $0x8] sm:$0xff]
  %v788 = vld [vmem:[%s3 + $0x10] sm:$0xff]
  %v789 = vld [vmem:[%s3 + $0x18] sm:$0xff]
  %v790 = vld [vmem:[%s3 + $0x20] sm:$0xff]
  %v791 = vld [vmem:[%s3 + $0x28] sm:$0xff]
  %v792 = vld [vmem:[%s3 + $0x30] sm:$0xff]
  %v793 = vld [vmem:[%s3 + $0x38] sm:$0xff]
  %v794 = vld [vmem:[%s3 + $0x40] sm:$0xff]
  %v795 = vld [vmem:[%s3 + $0x48] sm:$0xff]
  %v796 = vld [vmem:[%s3 + $0x50] sm:$0xff]
  %v797 = vld [vmem:[%s3 + $0x58] sm:$0xff]
  %v798 = vld [vmem:[%s3 + $0x60] sm:$0xff]
  %v799 = vld [vmem:[%s3 + $0x68] sm:$0xff]
  %v800 = vld [vmem:[%s3 + $0x70] sm:$0xff]
  %v801 = vld [vmem:[%s3 + $0x78] sm:$0xff]
  %802 = vmatprep.subr.bf16.mxu0 0
  %803 = vmatpush1.bf16.msra.mxu0 0
  %804 = vmatprep.subr.bf16.mxu0 0
  %805 = vmatpush1.bf16.msra.mxu0 0
  %806 = vmatprep.subr.bf16.mxu0 0
  %807 = vmatpush1.bf16.msra.mxu0 0
  %808 = vmatprep.subr.bf16.mxu0 0
  %809 = vmatpush1.bf16.msra.mxu0 0
  %810 = vmatprep.subr.bf16.mxu0 0
  %811 = vmatpush1.bf16.msra.mxu0 %v71
  %812 = vmatprep.subr.bf16.mxu0 0
  %813 = vmatpush1.bf16.msra.mxu0 %v70
  %814 = vmatprep.subr.bf16.mxu0 0
  %815 = vmatpush1.bf16.msra.mxu0 %v69
  %816 = vmatprep.subr.bf16.mxu0 0
  %817 = vmatpush1.bf16.msra.mxu0 %v68
  %818 = vmatprep.subr.bf16.mxu0 0
  %819 = vmatpush2.bf16.msra.mxu0 0
  %820 = vmatprep.subr.bf16.mxu0 0
  %821 = vmatpush2.bf16.msra.mxu0 0
  %822 = vmatprep.subr.bf16.mxu0 0
  %823 = vmatpush2.bf16.msra.mxu0 0
  %824 = vmatprep.subr.bf16.mxu0 0
  %825 = vmatpush2.bf16.msra.mxu0 0
  %826 = vmatprep.subr.bf16.mxu0 0
  %827 = vmatpush2.bf16.msra.mxu0 0
  %828 = vmatprep.subr.bf16.mxu0 0
  %829 = vmatpush2.bf16.msra.mxu0 0
  %830 = vmatprep.subr.bf16.mxu0 0
  %831 = vmatpush2.bf16.msra.mxu0 0
  %832 = vmatprep.subr.bf16.mxu0 0
  %833 = vmatpush2.bf16.msra.mxu0 0
  %834 = vmatprep.mubr.bf16.mxu0 0
  %835 = vmatmul.mubr.bf16.gmra.mxu0 %v229
  %v836 = vpop.f32.mrf.mxu0
  %v837 = vadd.f32 0.0, %v836
  %v838 = vpop.f32.mrf.mxu0
  %v839 = vpop.f32.mrf.mxu0
  %v840 = vadd.f32 0.0, %v839
  %v841 = vpop.f32.mrf.mxu0
  %842 = vdwg.mxu0
  %843 = vmatprep.subr.bf16.mxu0 0
  %844 = vmatpush1.bf16.msra.mxu0 0
  %845 = vmatprep.subr.bf16.mxu0 0
  %846 = vmatpush1.bf16.msra.mxu0 0
  %847 = vmatprep.subr.bf16.mxu0 0
  %848 = vmatpush1.bf16.msra.mxu0 0
  %849 = vmatprep.subr.bf16.mxu0 0
  %850 = vmatpush1.bf16.msra.mxu0 0
  %851 = vmatprep.subr.bf16.mxu0 0
  %852 = vmatpush1.bf16.msra.mxu0 %v140
  %853 = vmatprep.subr.bf16.mxu0 0
  %854 = vmatpush1.bf16.msra.mxu0 %v139
  %855 = vmatprep.subr.bf16.mxu0 0
  %856 = vmatpush1.bf16.msra.mxu0 %v138
  %857 = vmatprep.subr.bf16.mxu0 0
  %858 = vmatpush1.bf16.msra.mxu0 %v137
  %859 = vmatprep.subr.bf16.mxu0 0
  %860 = vmatpush2.bf16.msra.mxu0 0
  %861 = vmatprep.subr.bf16.mxu0 0
  %862 = vmatpush2.bf16.msra.mxu0 0
  %863 = vmatprep.subr.bf16.mxu0 0
  %864 = vmatpush2.bf16.msra.mxu0 0
  %865 = vmatprep.subr.bf16.mxu0 0
  %866 = vmatpush2.bf16.msra.mxu0 0
  %867 = vmatprep.subr.bf16.mxu0 0
  %868 = vmatpush2.bf16.msra.mxu0 0
  %869 = vmatprep.subr.bf16.mxu0 0
  %870 = vmatpush2.bf16.msra.mxu0 0
  %871 = vmatprep.subr.bf16.mxu0 0
  %872 = vmatpush2.bf16.msra.mxu0 0
  %873 = vmatprep.subr.bf16.mxu0 0
  %874 = vmatpush2.bf16.msra.mxu0 0
  %875 = vmatprep.mubr.bf16.mxu0 0
  %876 = vmatmul.mubr.bf16.gmra.mxu0 %v78
  %v877 = vpop.f32.mrf.mxu0
  %v878 = vadd.f32 %v837, %v877
  %v879 = vpop.f32.mrf.mxu0
  %v880 = vpop.f32.mrf.mxu0
  %v881 = vadd.f32 %v840, %v880
  %v882 = vpop.f32.mrf.mxu0
  %883 = vdwg.mxu0
  %884 = vrot.lane.b32.xlu0 %v203, 64
  %v885 = vpop.permute.xlu0 %884
  %v887 = vsel %vm76, %v885, 0
  %889 = vmatprep.subr.bf16.mxu0 0
  %890 = vmatpush1.bf16.msra.mxu0 0
  %891 = vmatprep.subr.bf16.mxu0 0
  %892 = vmatpush1.bf16.msra.mxu0 0
  %893 = vmatprep.subr.bf16.mxu0 0
  %894 = vmatpush1.bf16.msra.mxu0 0
  %895 = vmatprep.subr.bf16.mxu0 0
  %896 = vmatpush1.bf16.msra.mxu0 0
  %897 = vmatprep.subr.bf16.mxu0 0
  %898 = vmatpush1.bf16.msra.mxu0 %v223
  %899 = vmatprep.subr.bf16.mxu0 0
  %900 = vmatpush1.bf16.msra.mxu0 %v222
  %901 = vmatprep.subr.bf16.mxu0 0
  %902 = vmatpush1.bf16.msra.mxu0 %v221
  %903 = vmatprep.subr.bf16.mxu0 0
  %904 = vmatpush1.bf16.msra.mxu0 %v220
  %905 = vmatprep.subr.bf16.mxu0 0
  %906 = vmatpush2.bf16.msra.mxu0 0
  %907 = vmatprep.subr.bf16.mxu0 0
  %908 = vmatpush2.bf16.msra.mxu0 0
  %909 = vmatprep.subr.bf16.mxu0 0
  %910 = vmatpush2.bf16.msra.mxu0 0
  %911 = vmatprep.subr.bf16.mxu0 0
  %912 = vmatpush2.bf16.msra.mxu0 0
  %913 = vmatprep.subr.bf16.mxu0 0
  %914 = vmatpush2.bf16.msra.mxu0 0
  %915 = vmatprep.subr.bf16.mxu0 0
  %916 = vmatpush2.bf16.msra.mxu0 0
  %917 = vmatprep.subr.bf16.mxu0 0
  %918 = vmatpush2.bf16.msra.mxu0 0
  %919 = vmatprep.subr.bf16.mxu0 0
  %920 = vmatpush2.bf16.msra.mxu0 0
  %921 = vmatprep.mubr.bf16.mxu0 0
  %922 = vmatmul.mubr.bf16.gmra.mxu0 %v887
  %v923 = vpop.f32.mrf.mxu0
  %v924 = vadd.f32 0.0, %v923
  %v925 = vpop.f32.mrf.mxu0
  %v926 = vpop.f32.mrf.mxu0
  %v927 = vadd.f32 0.0, %v926
  %v928 = vpop.f32.mrf.mxu0
  %929 = vdwg.mxu0
  %v930 = vadd.f32 %v878, %v924
  %v931 = vadd.f32 %v881, %v927
  %932 = vmatprep.subr.bf16.mxu0 0
  %933 = vmatpush1.bf16.msra.mxu0 0
  %934 = vmatprep.subr.bf16.mxu0 0
  %935 = vmatpush1.bf16.msra.mxu0 0
  %936 = vmatprep.subr.bf16.mxu0 0
  %937 = vmatpush1.bf16.msra.mxu0 0
  %938 = vmatprep.subr.bf16.mxu0 0
  %939 = vmatpush1.bf16.msra.mxu0 0
  %940 = vmatprep.subr.bf16.mxu0 0
  %941 = vmatpush1.bf16.msra.mxu0 %v308
  %942 = vmatprep.subr.bf16.mxu0 0
  %943 = vmatpush1.bf16.msra.mxu0 %v307
  %944 = vmatprep.subr.bf16.mxu0 0
  %945 = vmatpush1.bf16.msra.mxu0 %v306
  %946 = vmatprep.subr.bf16.mxu0 0
  %947 = vmatpush1.bf16.msra.mxu0 %v305
  %948 = vmatprep.subr.bf16.mxu0 0
  %949 = vmatpush2.bf16.msra.mxu0 0
  %950 = vmatprep.subr.bf16.mxu0 0
  %951 = vmatpush2.bf16.msra.mxu0 0
  %952 = vmatprep.subr.bf16.mxu0 0
  %953 = vmatpush2.bf16.msra.mxu0 0
  %954 = vmatprep.subr.bf16.mxu0 0
  %955 = vmatpush2.bf16.msra.mxu0 0
  %956 = vmatprep.subr.bf16.mxu0 0
  %957 = vmatpush2.bf16.msra.mxu0 0
  %958 = vmatprep.subr.bf16.mxu0 0
  %959 = vmatpush2.bf16.msra.mxu0 0
  %960 = vmatprep.subr.bf16.mxu0 0
  %961 = vmatpush2.bf16.msra.mxu0 0
  %962 = vmatprep.subr.bf16.mxu0 0
  %963 = vmatpush2.bf16.msra.mxu0 0
  %964 = vmatprep.mubr.bf16.mxu0 0
  %965 = vmatmul.mubr.bf16.gmra.mxu0 %v394
  %v966 = vpop.f32.mrf.mxu0
  %v967 = vadd.f32 0.0, %v966
  %v968 = vpop.f32.mrf.mxu0
  %v969 = vpop.f32.mrf.mxu0
  %v970 = vadd.f32 0.0, %v969
  %v971 = vpop.f32.mrf.mxu0
  %972 = vdwg.mxu0
  %v973 = vadd.f32 %v930, %v967
  %v974 = vadd.f32 %v931, %v970
  %975 = vmatprep.subr.bf16.mxu0 0
  %976 = vmatpush1.bf16.msra.mxu0 0
  %977 = vmatprep.subr.bf16.mxu0 0
  %978 = vmatpush1.bf16.msra.mxu0 0
  %979 = vmatprep.subr.bf16.mxu0 0
  %980 = vmatpush1.bf16.msra.mxu0 0
  %981 = vmatprep.subr.bf16.mxu0 0
  %982 = vmatpush1.bf16.msra.mxu0 0
  %983 = vmatprep.subr.bf16.mxu0 0
  %984 = vmatpush1.bf16.msra.mxu0 %v388
  %985 = vmatprep.subr.bf16.mxu0 0
  %986 = vmatpush1.bf16.msra.mxu0 %v387
  %987 = vmatprep.subr.bf16.mxu0 0
  %988 = vmatpush1.bf16.msra.mxu0 %v386
  %989 = vmatprep.subr.bf16.mxu0 0
  %990 = vmatpush1.bf16.msra.mxu0 %v385
  %991 = vmatprep.subr.bf16.mxu0 0
  %992 = vmatpush2.bf16.msra.mxu0 0
  %993 = vmatprep.subr.bf16.mxu0 0
  %994 = vmatpush2.bf16.msra.mxu0 0
  %995 = vmatprep.subr.bf16.mxu0 0
  %996 = vmatpush2.bf16.msra.mxu0 0
  %997 = vmatprep.subr.bf16.mxu0 0
  %998 = vmatpush2.bf16.msra.mxu0 0
  %999 = vmatprep.subr.bf16.mxu0 0
  %1000 = vmatpush2.bf16.msra.mxu0 0
  %1001 = vmatprep.subr.bf16.mxu0 0
  %1002 = vmatpush2.bf16.msra.mxu0 0
  %1003 = vmatprep.subr.bf16.mxu0 0
  %1004 = vmatpush2.bf16.msra.mxu0 0
  %1005 = vmatprep.subr.bf16.mxu0 0
  %1006 = vmatpush2.bf16.msra.mxu0 0
  %1007 = vmatprep.mubr.bf16.mxu0 0
  %1008 = vmatmul.mubr.bf16.gmra.mxu0 %v479
  %v1009 = vpop.f32.mrf.mxu0
  %v1010 = vadd.f32 0.0, %v1009
  %v1011 = vpop.f32.mrf.mxu0
  %v1012 = vpop.f32.mrf.mxu0
  %v1013 = vadd.f32 0.0, %v1012
  %v1014 = vpop.f32.mrf.mxu0
  %1015 = vdwg.mxu0
  %v1016 = vadd.f32 %v973, %v1010
  %v1017 = vadd.f32 %v974, %v1013
  %1018 = vrot.lane.b32.xlu0 %v453, 64
  %v1019 = vpop.permute.xlu0 %1018
  %v1021 = vsel %vm76, %v1019, 0
  %1023 = vmatprep.subr.bf16.mxu0 0
  %1024 = vmatpush1.bf16.msra.mxu0 0
  %1025 = vmatprep.subr.bf16.mxu0 0
  %1026 = vmatpush1.bf16.msra.mxu0 0
  %1027 = vmatprep.subr.bf16.mxu0 0
  %1028 = vmatpush1.bf16.msra.mxu0 0
  %1029 = vmatprep.subr.bf16.mxu0 0
  %1030 = vmatpush1.bf16.msra.mxu0 0
  %1031 = vmatprep.subr.bf16.mxu0 0
  %1032 = vmatpush1.bf16.msra.mxu0 %v473
  %1033 = vmatprep.subr.bf16.mxu0 0
  %1034 = vmatpush1.bf16.msra.mxu0 %v472
  %1035 = vmatprep.subr.bf16.mxu0 0
  %1036 = vmatpush1.bf16.msra.mxu0 %v471
  %1037 = vmatprep.subr.bf16.mxu0 0
  %1038 = vmatpush1.bf16.msra.mxu0 %v470
  %1039 = vmatprep.subr.bf16.mxu0 0
  %1040 = vmatpush2.bf16.msra.mxu0 0
  %1041 = vmatprep.subr.bf16.mxu0 0
  %1042 = vmatpush2.bf16.msra.mxu0 0
  %1043 = vmatprep.subr.bf16.mxu0 0
  %1044 = vmatpush2.bf16.msra.mxu0 0
  %1045 = vmatprep.subr.bf16.mxu0 0
  %1046 = vmatpush2.bf16.msra.mxu0 0
  %1047 = vmatprep.subr.bf16.mxu0 0
  %1048 = vmatpush2.bf16.msra.mxu0 0
  %1049 = vmatprep.subr.bf16.mxu0 0
  %1050 = vmatpush2.bf16.msra.mxu0 0
  %1051 = vmatprep.subr.bf16.mxu0 0
  %1052 = vmatpush2.bf16.msra.mxu0 0
  %1053 = vmatprep.subr.bf16.mxu0 0
  %1054 = vmatpush2.bf16.msra.mxu0 0
  %1055 = vmatprep.mubr.bf16.mxu0 0
  %1056 = vmatmul.mubr.bf16.gmra.mxu0 %v1021
  %v1057 = vpop.f32.mrf.mxu0
  %v1058 = vadd.f32 0.0, %v1057
  %v1059 = vpop.f32.mrf.mxu0
  %v1060 = vpop.f32.mrf.mxu0
  %v1061 = vadd.f32 0.0, %v1060
  %v1062 = vpop.f32.mrf.mxu0
  %1063 = vdwg.mxu0
  %v1064 = vadd.f32 %v1016, %v1058
  %v1065 = vadd.f32 %v1017, %v1061
  %1066 = vmatprep.subr.bf16.mxu0 0
  %1067 = vmatpush1.bf16.msra.mxu0 0
  %1068 = vmatprep.subr.bf16.mxu0 0
  %1069 = vmatpush1.bf16.msra.mxu0 0
  %1070 = vmatprep.subr.bf16.mxu0 0
  %1071 = vmatpush1.bf16.msra.mxu0 0
  %1072 = vmatprep.subr.bf16.mxu0 0
  %1073 = vmatpush1.bf16.msra.mxu0 0
  %1074 = vmatprep.subr.bf16.mxu0 0
  %1075 = vmatpush1.bf16.msra.mxu0 %v558
  %1076 = vmatprep.subr.bf16.mxu0 0
  %1077 = vmatpush1.bf16.msra.mxu0 %v557
  %1078 = vmatprep.subr.bf16.mxu0 0
  %1079 = vmatpush1.bf16.msra.mxu0 %v556
  %1080 = vmatprep.subr.bf16.mxu0 0
  %1081 = vmatpush1.bf16.msra.mxu0 %v555
  %1082 = vmatprep.subr.bf16.mxu0 0
  %1083 = vmatpush2.bf16.msra.mxu0 0
  %1084 = vmatprep.subr.bf16.mxu0 0
  %1085 = vmatpush2.bf16.msra.mxu0 0
  %1086 = vmatprep.subr.bf16.mxu0 0
  %1087 = vmatpush2.bf16.msra.mxu0 0
  %1088 = vmatprep.subr.bf16.mxu0 0
  %1089 = vmatpush2.bf16.msra.mxu0 0
  %1090 = vmatprep.subr.bf16.mxu0 0
  %1091 = vmatpush2.bf16.msra.mxu0 0
  %1092 = vmatprep.subr.bf16.mxu0 0
  %1093 = vmatpush2.bf16.msra.mxu0 0
  %1094 = vmatprep.subr.bf16.mxu0 0
  %1095 = vmatpush2.bf16.msra.mxu0 0
  %1096 = vmatprep.subr.bf16.mxu0 0
  %1097 = vmatpush2.bf16.msra.mxu0 0
  %1098 = vmatprep.mubr.bf16.mxu0 0
  %1099 = vmatmul.mubr.bf16.gmra.mxu0 %v644
  %v1100 = vpop.f32.mrf.mxu0
  %v1101 = vadd.f32 0.0, %v1100
  %v1102 = vpop.f32.mrf.mxu0
  %v1103 = vpop.f32.mrf.mxu0
  %v1104 = vadd.f32 0.0, %v1103
  %v1105 = vpop.f32.mrf.mxu0
  %1106 = vdwg.mxu0
  %v1107 = vadd.f32 %v1064, %v1101
  %v1108 = vadd.f32 %v1065, %v1104
  %1109 = vmatprep.subr.bf16.mxu0 0
  %1110 = vmatpush1.bf16.msra.mxu0 0
  %1111 = vmatprep.subr.bf16.mxu0 0
  %1112 = vmatpush1.bf16.msra.mxu0 0
  %1113 = vmatprep.subr.bf16.mxu0 0
  %1114 = vmatpush1.bf16.msra.mxu0 0
  %1115 = vmatprep.subr.bf16.mxu0 0
  %1116 = vmatpush1.bf16.msra.mxu0 0
  %1117 = vmatprep.subr.bf16.mxu0 0
  %1118 = vmatpush1.bf16.msra.mxu0 %v638
  %1119 = vmatprep.subr.bf16.mxu0 0
  %1120 = vmatpush1.bf16.msra.mxu0 %v637
  %1121 = vmatprep.subr.bf16.mxu0 0
  %1122 = vmatpush1.bf16.msra.mxu0 %v636
  %1123 = vmatprep.subr.bf16.mxu0 0
  %1124 = vmatpush1.bf16.msra.mxu0 %v635
  %1125 = vmatprep.subr.bf16.mxu0 0
  %1126 = vmatpush2.bf16.msra.mxu0 0
  %1127 = vmatprep.subr.bf16.mxu0 0
  %1128 = vmatpush2.bf16.msra.mxu0 0
  %1129 = vmatprep.subr.bf16.mxu0 0
  %1130 = vmatpush2.bf16.msra.mxu0 0
  %1131 = vmatprep.subr.bf16.mxu0 0
  %1132 = vmatpush2.bf16.msra.mxu0 0
  %1133 = vmatprep.subr.bf16.mxu0 0
  %1134 = vmatpush2.bf16.msra.mxu0 0
  %1135 = vmatprep.subr.bf16.mxu0 0
  %1136 = vmatpush2.bf16.msra.mxu0 0
  %1137 = vmatprep.subr.bf16.mxu0 0
  %1138 = vmatpush2.bf16.msra.mxu0 0
  %1139 = vmatprep.subr.bf16.mxu0 0
  %1140 = vmatpush2.bf16.msra.mxu0 0
  %1141 = vmatprep.mubr.bf16.mxu0 0
  %1142 = vmatmul.mubr.bf16.gmra.mxu0 %v729
  %v1143 = vpop.f32.mrf.mxu0
  %v1144 = vadd.f32 0.0, %v1143
  %v1145 = vpop.f32.mrf.mxu0
  %v1146 = vpop.f32.mrf.mxu0
  %v1147 = vadd.f32 0.0, %v1146
  %v1148 = vpop.f32.mrf.mxu0
  %1149 = vdwg.mxu0
  %v1150 = vadd.f32 %v1107, %v1144
  %v1151 = vadd.f32 %v1108, %v1147
  %1152 = vrot.lane.b32.xlu0 %v703, 64
  %v1153 = vpop.permute.xlu0 %1152
  %v1155 = vsel %vm76, %v1153, 0
  %1157 = vmatprep.subr.bf16.mxu0 0
  %1158 = vmatpush1.bf16.msra.mxu0 0
  %1159 = vmatprep.subr.bf16.mxu0 0
  %1160 = vmatpush1.bf16.msra.mxu0 0
  %1161 = vmatprep.subr.bf16.mxu0 0
  %1162 = vmatpush1.bf16.msra.mxu0 0
  %1163 = vmatprep.subr.bf16.mxu0 0
  %1164 = vmatpush1.bf16.msra.mxu0 0
  %1165 = vmatprep.subr.bf16.mxu0 0
  %1166 = vmatpush1.bf16.msra.mxu0 %v723
  %1167 = vmatprep.subr.bf16.mxu0 0
  %1168 = vmatpush1.bf16.msra.mxu0 %v722
  %1169 = vmatprep.subr.bf16.mxu0 0
  %1170 = vmatpush1.bf16.msra.mxu0 %v721
  %1171 = vmatprep.subr.bf16.mxu0 0
  %1172 = vmatpush1.bf16.msra.mxu0 %v720
  %1173 = vmatprep.subr.bf16.mxu0 0
  %1174 = vmatpush2.bf16.msra.mxu0 0
  %1175 = vmatprep.subr.bf16.mxu0 0
  %1176 = vmatpush2.bf16.msra.mxu0 0
  %1177 = vmatprep.subr.bf16.mxu0 0
  %1178 = vmatpush2.bf16.msra.mxu0 0
  %1179 = vmatprep.subr.bf16.mxu0 0
  %1180 = vmatpush2.bf16.msra.mxu0 0
  %1181 = vmatprep.subr.bf16.mxu0 0
  %1182 = vmatpush2.bf16.msra.mxu0 0
  %1183 = vmatprep.subr.bf16.mxu0 0
  %1184 = vmatpush2.bf16.msra.mxu0 0
  %1185 = vmatprep.subr.bf16.mxu0 0
  %1186 = vmatpush2.bf16.msra.mxu0 0
  %1187 = vmatprep.subr.bf16.mxu0 0
  %1188 = vmatpush2.bf16.msra.mxu0 0
  %1189 = vmatprep.mubr.bf16.mxu0 0
  %1190 = vmatmul.mubr.bf16.gmra.mxu0 %v1155
  %v1191 = vpop.f32.mrf.mxu0
  %v1192 = vadd.f32 0.0, %v1191
  %v1193 = vpop.f32.mrf.mxu0
  %v1194 = vpop.f32.mrf.mxu0
  %v1195 = vadd.f32 0.0, %v1194
  %v1196 = vpop.f32.mrf.mxu0
  %1197 = vdwg.mxu0
  %v1198 = vadd.f32 %v1150, %v1192
  %v1199 = vadd.f32 %v1151, %v1195
  %v1200 = vadd.f32 %v1198, %v779
  %v1201 = vadd.f32 %v1199, %v779
  %v1202 = vmax.f32 %v1200, 0.0
  %v1203 = vmax.f32 %v1201, 0.0
  %v1204 = vpack.c.bf16 %v1203, %v1202
  %v1205 = vld [vmem:[%s3 + $0x80] sm:$0xff]
  %v1206 = vld [vmem:[%s3 + $0x88] sm:$0xff]
  %v1207 = vld [vmem:[%s3 + $0x90] sm:$0xff]
  %v1208 = vld [vmem:[%s3 + $0x98] sm:$0xff]
  %v1209 = vld [vmem:[%s3 + $0xa0] sm:$0xff]
  %v1210 = vld [vmem:[%s3 + $0xa8] sm:$0xff]
  %v1211 = vld [vmem:[%s3 + $0xb0] sm:$0xff]
  %v1212 = vld [vmem:[%s3 + $0xb8] sm:$0xff]
  %v1213 = vld [vmem:[%s3 + $0xc0] sm:$0xff]
  %v1214 = vld [vmem:[%s3 + $0xc8] sm:$0xff]
  %v1215 = vld [vmem:[%s3 + $0xd0] sm:$0xff]
  %v1216 = vld [vmem:[%s3 + $0xd8] sm:$0xff]
  %v1217 = vld [vmem:[%s3 + $0xe0] sm:$0xff]
  %v1218 = vld [vmem:[%s3 + $0xe8] sm:$0xff]
  %v1219 = vld [vmem:[%s3 + $0xf0] sm:$0xff]
  %v1220 = vld [vmem:[%s3 + $0xf8] sm:$0xff]
  %v1237 = vunpack.c.l.b16 %v1205
  %v1238 = vunpack.c.h.b16 %v1205
  %v1239 = vunpack.c.l.b16 %v1206
  %v1240 = vunpack.c.h.b16 %v1206
  %v1241 = vunpack.c.l.b16 %v1207
  %v1242 = vunpack.c.h.b16 %v1207
  %v1243 = vunpack.c.l.b16 %v1208
  %v1244 = vunpack.c.h.b16 %v1208
  %v1245 = vunpack.c.l.b16 %v1209
  %v1246 = vunpack.c.h.b16 %v1209
  %v1247 = vunpack.c.l.b16 %v1210
  %v1248 = vunpack.c.h.b16 %v1210
  %v1249 = vunpack.c.l.b16 %v1211
  %v1250 = vunpack.c.h.b16 %v1211
  %v1251 = vunpack.c.l.b16 %v1212
  %v1252 = vunpack.c.h.b16 %v1212
  %v1253 = vunpack.c.l.b16 %v1213
  %v1254 = vunpack.c.h.b16 %v1213
  %v1255 = vunpack.c.l.b16 %v1214
  %v1256 = vunpack.c.h.b16 %v1214
  %v1257 = vunpack.c.l.b16 %v1215
  %v1258 = vunpack.c.h.b16 %v1215
  %v1259 = vunpack.c.l.b16 %v1216
  %v1260 = vunpack.c.h.b16 %v1216
  %v1261 = vunpack.c.l.b16 %v1217
  %v1262 = vunpack.c.h.b16 %v1217
  %v1263 = vunpack.c.l.b16 %v1218
  %v1264 = vunpack.c.h.b16 %v1218
  %v1265 = vunpack.c.l.b16 %v1219
  %v1266 = vunpack.c.h.b16 %v1219
  %v1267 = vunpack.c.l.b16 %v1220
  %v1268 = vunpack.c.h.b16 %v1220
  %v1269 = vpack.c.b16 %v1241, %v1237
  %v1270 = vpack.c.b16 %v1242, %v1238
  %v1271 = vpack.c.b16 %v1243, %v1239
  %v1272 = vpack.c.b16 %v1244, %v1240
  %v1273 = vpack.c.b16 %v1249, %v1245
  %v1274 = vpack.c.b16 %v1250, %v1246
  %v1275 = vpack.c.b16 %v1251, %v1247
  %v1276 = vpack.c.b16 %v1252, %v1248
  %v1277 = vpack.c.b16 %v1257, %v1253
  %v1278 = vpack.c.b16 %v1258, %v1254
  %v1279 = vpack.c.b16 %v1259, %v1255
  %v1280 = vpack.c.b16 %v1260, %v1256
  %v1281 = vpack.c.b16 %v1265, %v1261
  %v1282 = vpack.c.b16 %v1266, %v1262
  %v1283 = vpack.c.b16 %v1267, %v1263
  %v1284 = vpack.c.b16 %v1268, %v1264
  %v1302 = vsel %vm76, %v1204, 0
  %1304 = vmatprep.subr.bf16.mxu0 0
  %1305 = vmatpush1.bf16.msra.mxu0 0
  %1306 = vmatprep.subr.bf16.mxu0 0
  %1307 = vmatpush1.bf16.msra.mxu0 0
  %1308 = vmatprep.subr.bf16.mxu0 0
  %1309 = vmatpush1.bf16.msra.mxu0 0
  %1310 = vmatprep.subr.bf16.mxu0 0
  %1311 = vmatpush1.bf16.msra.mxu0 0
  %1312 = vmatprep.subr.bf16.mxu0 %v1282
  %1313 = vmatpush1.bf16.msra.mxu0 %v1281
  %1314 = vmatprep.subr.bf16.mxu0 %v1278
  %1315 = vmatpush1.bf16.msra.mxu0 %v1277
  %1316 = vmatprep.subr.bf16.mxu0 %v1274
  %1317 = vmatpush1.bf16.msra.mxu0 %v1273
  %1318 = vmatprep.subr.bf16.mxu0 %v1270
  %1319 = vmatpush1.bf16.msra.mxu0 %v1269
  %1320 = vmatprep.subr.bf16.mxu0 0
  %1321 = vmatpush2.bf16.msra.mxu0 0
  %1322 = vmatprep.subr.bf16.mxu0 0
  %1323 = vmatpush2.bf16.msra.mxu0 0
  %1324 = vmatprep.subr.bf16.mxu0 0
  %1325 = vmatpush2.bf16.msra.mxu0 0
  %1326 = vmatprep.subr.bf16.mxu0 0
  %1327 = vmatpush2.bf16.msra.mxu0 0
  %1328 = vmatprep.subr.bf16.mxu0 0
  %1329 = vmatpush2.bf16.msra.mxu0 0
  %1330 = vmatprep.subr.bf16.mxu0 0
  %1331 = vmatpush2.bf16.msra.mxu0 0
  %1332 = vmatprep.subr.bf16.mxu0 0
  %1333 = vmatpush2.bf16.msra.mxu0 0
  %1334 = vmatprep.subr.bf16.mxu0 0
  %1335 = vmatpush2.bf16.msra.mxu0 0
  %1336 = vmatprep.mubr.bf16.mxu0 0
  %1337 = vmatmul.mubr.bf16.gmra.mxu0 %v1302
  %v1338 = vpop.f32.mrf.mxu0
  %v1339 = vadd.f32 0.0, %v1338
  %v1340 = vpop.f32.mrf.mxu0
  %v1341 = vadd.f32 0.0, %v1340
  %v1342 = vpop.f32.mrf.mxu0
  %v1343 = vadd.f32 0.0, %v1342
  %v1344 = vpop.f32.mrf.mxu0
  %v1345 = vadd.f32 0.0, %v1344
  %1346 = vdwg.mxu0
  %1347 = vmatprep.subr.bf16.mxu0 0
  %1348 = vmatpush1.bf16.msra.mxu0 0
  %1349 = vmatprep.subr.bf16.mxu0 0
  %1350 = vmatpush1.bf16.msra.mxu0 0
  %1351 = vmatprep.subr.bf16.mxu0 0
  %1352 = vmatpush1.bf16.msra.mxu0 0
  %1353 = vmatprep.subr.bf16.mxu0 0
  %1354 = vmatpush1.bf16.msra.mxu0 0
  %1355 = vmatprep.subr.bf16.mxu0 %v1284
  %1356 = vmatpush1.bf16.msra.mxu0 %v1283
  %1357 = vmatprep.subr.bf16.mxu0 %v1280
  %1358 = vmatpush1.bf16.msra.mxu0 %v1279
  %1359 = vmatprep.subr.bf16.mxu0 %v1276
  %1360 = vmatpush1.bf16.msra.mxu0 %v1275
  %1361 = vmatprep.subr.bf16.mxu0 %v1272
  %1362 = vmatpush1.bf16.msra.mxu0 %v1271
  %1363 = vmatprep.subr.bf16.mxu0 0
  %1364 = vmatpush2.bf16.msra.mxu0 0
  %1365 = vmatprep.subr.bf16.mxu0 0
  %1366 = vmatpush2.bf16.msra.mxu0 0
  %1367 = vmatprep.subr.bf16.mxu0 0
  %1368 = vmatpush2.bf16.msra.mxu0 0
  %1369 = vmatprep.subr.bf16.mxu0 0
  %1370 = vmatpush2.bf16.msra.mxu0 0
  %1371 = vmatprep.subr.bf16.mxu0 0
  %1372 = vmatpush2.bf16.msra.mxu0 0
  %1373 = vmatprep.subr.bf16.mxu0 0
  %1374 = vmatpush2.bf16.msra.mxu0 0
  %1375 = vmatprep.subr.bf16.mxu0 0
  %1376 = vmatpush2.bf16.msra.mxu0 0
  %1377 = vmatprep.subr.bf16.mxu0 0
  %1378 = vmatpush2.bf16.msra.mxu0 0
  %1379 = vmatprep.mubr.bf16.mxu0 0
  %1380 = vmatmul.mubr.bf16.gmra.mxu0 %v1302
  %v1381 = vpop.f32.mrf.mxu0
  %v1382 = vadd.f32 0.0, %v1381
  %v1383 = vpop.f32.mrf.mxu0
  %v1384 = vadd.f32 0.0, %v1383
  %v1385 = vpop.f32.mrf.mxu0
  %v1386 = vadd.f32 0.0, %v1385
  %v1387 = vpop.f32.mrf.mxu0
  %v1388 = vadd.f32 0.0, %v1387
  %1389 = vdwg.mxu0
  %v1406 = vunpack.c.l.b16 %v786
  %v1407 = vunpack.c.h.b16 %v786
  %v1408 = vunpack.c.l.b16 %v787
  %v1409 = vunpack.c.h.b16 %v787
  %v1410 = vunpack.c.l.b16 %v788
  %v1411 = vunpack.c.h.b16 %v788
  %v1412 = vunpack.c.l.b16 %v789
  %v1413 = vunpack.c.h.b16 %v789
  %v1414 = vunpack.c.l.b16 %v790
  %v1415 = vunpack.c.h.b16 %v790
  %v1416 = vunpack.c.l.b16 %v791
  %v1417 = vunpack.c.h.b16 %v791
  %v1418 = vunpack.c.l.b16 %v792
  %v1419 = vunpack.c.h.b16 %v792
  %v1420 = vunpack.c.l.b16 %v793
  %v1421 = vunpack.c.h.b16 %v793
  %v1422 = vunpack.c.l.b16 %v794
  %v1423 = vunpack.c.h.b16 %v794
  %v1424 = vunpack.c.l.b16 %v795
  %v1425 = vunpack.c.h.b16 %v795
  %v1426 = vunpack.c.l.b16 %v796
  %v1427 = vunpack.c.h.b16 %v796
  %v1428 = vunpack.c.l.b16 %v797
  %v1429 = vunpack.c.h.b16 %v797
  %v1430 = vunpack.c.l.b16 %v798
  %v1431 = vunpack.c.h.b16 %v798
  %v1432 = vunpack.c.l.b16 %v799
  %v1433 = vunpack.c.h.b16 %v799
  %v1434 = vunpack.c.l.b16 %v800
  %v1435 = vunpack.c.h.b16 %v800
  %v1436 = vunpack.c.l.b16 %v801
  %v1437 = vunpack.c.h.b16 %v801
  %v1438 = vpack.c.b16 %v1410, %v1406
  %v1439 = vpack.c.b16 %v1411, %v1407
  %v1440 = vpack.c.b16 %v1412, %v1408
  %v1441 = vpack.c.b16 %v1413, %v1409
  %v1442 = vpack.c.b16 %v1418, %v1414
  %v1443 = vpack.c.b16 %v1419, %v1415
  %v1444 = vpack.c.b16 %v1420, %v1416
  %v1445 = vpack.c.b16 %v1421, %v1417
  %v1446 = vpack.c.b16 %v1426, %v1422
  %v1447 = vpack.c.b16 %v1427, %v1423
  %v1448 = vpack.c.b16 %v1428, %v1424
  %v1449 = vpack.c.b16 %v1429, %v1425
  %v1450 = vpack.c.b16 %v1434, %v1430
  %v1451 = vpack.c.b16 %v1435, %v1431
  %v1452 = vpack.c.b16 %v1436, %v1432
  %v1453 = vpack.c.b16 %v1437, %v1433
  %v1471 = vsel %vm76, %v785, 0
  %1473 = vmatprep.subr.bf16.mxu0 0
  %1474 = vmatpush1.bf16.msra.mxu0 0
  %1475 = vmatprep.subr.bf16.mxu0 0
  %1476 = vmatpush1.bf16.msra.mxu0 0
  %1477 = vmatprep.subr.bf16.mxu0 0
  %1478 = vmatpush1.bf16.msra.mxu0 0
  %1479 = vmatprep.subr.bf16.mxu0 0
  %1480 = vmatpush1.bf16.msra.mxu0 0
  %1481 = vmatprep.subr.bf16.mxu0 %v1451
  %1482 = vmatpush1.bf16.msra.mxu0 %v1450
  %1483 = vmatprep.subr.bf16.mxu0 %v1447
  %1484 = vmatpush1.bf16.msra.mxu0 %v1446
  %1485 = vmatprep.subr.bf16.mxu0 %v1443
  %1486 = vmatpush1.bf16.msra.mxu0 %v1442
  %1487 = vmatprep.subr.bf16.mxu0 %v1439
  %1488 = vmatpush1.bf16.msra.mxu0 %v1438
  %1489 = vmatprep.subr.bf16.mxu0 0
  %1490 = vmatpush2.bf16.msra.mxu0 0
  %1491 = vmatprep.subr.bf16.mxu0 0
  %1492 = vmatpush2.bf16.msra.mxu0 0
  %1493 = vmatprep.subr.bf16.mxu0 0
  %1494 = vmatpush2.bf16.msra.mxu0 0
  %1495 = vmatprep.subr.bf16.mxu0 0
  %1496 = vmatpush2.bf16.msra.mxu0 0
  %1497 = vmatprep.subr.bf16.mxu0 0
  %1498 = vmatpush2.bf16.msra.mxu0 0
  %1499 = vmatprep.subr.bf16.mxu0 0
  %1500 = vmatpush2.bf16.msra.mxu0 0
  %1501 = vmatprep.subr.bf16.mxu0 0
  %1502 = vmatpush2.bf16.msra.mxu0 0
  %1503 = vmatprep.subr.bf16.mxu0 0
  %1504 = vmatpush2.bf16.msra.mxu0 0
  %1505 = vmatprep.mubr.bf16.mxu0 0
  %1506 = vmatmul.mubr.bf16.gmra.mxu0 %v1471
  %v1507 = vpop.f32.mrf.mxu0
  %v1508 = vadd.f32 %v1339, %v1507
  %v1509 = vpop.f32.mrf.mxu0
  %v1510 = vadd.f32 %v1341, %v1509
  %v1511 = vpop.f32.mrf.mxu0
  %v1512 = vadd.f32 %v1343, %v1511
  %v1513 = vpop.f32.mrf.mxu0
  %v1514 = vadd.f32 %v1345, %v1513
  %1515 = vdwg.mxu0
  %1516 = vmatprep.subr.bf16.mxu0 0
  %1517 = vmatpush1.bf16.msra.mxu0 0
  %1518 = vmatprep.subr.bf16.mxu0 0
  %1519 = vmatpush1.bf16.msra.mxu0 0
  %1520 = vmatprep.subr.bf16.mxu0 0
  %1521 = vmatpush1.bf16.msra.mxu0 0
  %1522 = vmatprep.subr.bf16.mxu0 0
  %1523 = vmatpush1.bf16.msra.mxu0 0
  %1524 = vmatprep.subr.bf16.mxu0 %v1453
  %1525 = vmatpush1.bf16.msra.mxu0 %v1452
  %1526 = vmatprep.subr.bf16.mxu0 %v1449
  %1527 = vmatpush1.bf16.msra.mxu0 %v1448
  %1528 = vmatprep.subr.bf16.mxu0 %v1445
  %1529 = vmatpush1.bf16.msra.mxu0 %v1444
  %1530 = vmatprep.subr.bf16.mxu0 %v1441
  %1531 = vmatpush1.bf16.msra.mxu0 %v1440
  %1532 = vmatprep.subr.bf16.mxu0 0
  %1533 = vmatpush2.bf16.msra.mxu0 0
  %1534 = vmatprep.subr.bf16.mxu0 0
  %1535 = vmatpush2.bf16.msra.mxu0 0
  %1536 = vmatprep.subr.bf16.mxu0 0
  %1537 = vmatpush2.bf16.msra.mxu0 0
  %1538 = vmatprep.subr.bf16.mxu0 0
  %1539 = vmatpush2.bf16.msra.mxu0 0
  %1540 = vmatprep.subr.bf16.mxu0 0
  %1541 = vmatpush2.bf16.msra.mxu0 0
  %1542 = vmatprep.subr.bf16.mxu0 0
  %1543 = vmatpush2.bf16.msra.mxu0 0
  %1544 = vmatprep.subr.bf16.mxu0 0
  %1545 = vmatpush2.bf16.msra.mxu0 0
  %1546 = vmatprep.subr.bf16.mxu0 0
  %1547 = vmatpush2.bf16.msra.mxu0 0
  %1548 = vmatprep.mubr.bf16.mxu0 0
  %1549 = vmatmul.mubr.bf16.gmra.mxu0 %v1471
  %v1550 = vpop.f32.mrf.mxu0
  %v1551 = vadd.f32 %v1382, %v1550
  %v1552 = vpop.f32.mrf.mxu0
  %v1553 = vadd.f32 %v1384, %v1552
  %v1554 = vpop.f32.mrf.mxu0
  %v1555 = vadd.f32 %v1386, %v1554
  %v1556 = vpop.f32.mrf.mxu0
  %v1557 = vadd.f32 %v1388, %v1556
  %1558 = vdwg.mxu0
  %1559 = vmatprep.subr.bf16.mxu0 0
  %1560 = vmatpush1.bf16.msra.mxu0 0
  %1561 = vmatprep.subr.bf16.mxu0 0
  %1562 = vmatpush1.bf16.msra.mxu0 0
  %1563 = vmatprep.subr.bf16.mxu0 0
  %1564 = vmatpush1.bf16.msra.mxu0 0
  %1565 = vmatprep.subr.bf16.mxu0 0
  %1566 = vmatpush1.bf16.msra.mxu0 0
  %1567 = vmatprep.subr.bf16.mxu0 0
  %1568 = vmatpush1.bf16.msra.mxu0 %v71
  %1569 = vmatprep.subr.bf16.mxu0 0
  %1570 = vmatpush1.bf16.msra.mxu0 %v70
  %1571 = vmatprep.subr.bf16.mxu0 0
  %1572 = vmatpush1.bf16.msra.mxu0 %v69
  %1573 = vmatprep.subr.bf16.mxu0 0
  %1574 = vmatpush1.bf16.msra.mxu0 %v68
  %1575 = vmatprep.subr.bf16.mxu0 0
  %1576 = vmatpush2.bf16.msra.mxu0 0
  %1577 = vmatprep.subr.bf16.mxu0 0
  %1578 = vmatpush2.bf16.msra.mxu0 0
  %1579 = vmatprep.subr.bf16.mxu0 0
  %1580 = vmatpush2.bf16.msra.mxu0 0
  %1581 = vmatprep.subr.bf16.mxu0 0
  %1582 = vmatpush2.bf16.msra.mxu0 0
  %1583 = vmatprep.subr.bf16.mxu0 0
  %1584 = vmatpush2.bf16.msra.mxu0 0
  %1585 = vmatprep.subr.bf16.mxu0 0
  %1586 = vmatpush2.bf16.msra.mxu0 0
  %1587 = vmatprep.subr.bf16.mxu0 0
  %1588 = vmatpush2.bf16.msra.mxu0 0
  %1589 = vmatprep.subr.bf16.mxu0 0
  %1590 = vmatpush2.bf16.msra.mxu0 0
  %1591 = vmatprep.mubr.bf16.mxu0 0
  %1592 = vmatmul.mubr.bf16.gmra.mxu0 %v394
  %v1593 = vpop.f32.mrf.mxu0
  %v1594 = vadd.f32 0.0, %v1593
  %v1595 = vpop.f32.mrf.mxu0
  %v1596 = vpop.f32.mrf.mxu0
  %v1597 = vadd.f32 0.0, %v1596
  %v1598 = vpop.f32.mrf.mxu0
  %1599 = vdwg.mxu0
  %1600 = vmatprep.subr.bf16.mxu0 0
  %1601 = vmatpush1.bf16.msra.mxu0 0
  %1602 = vmatprep.subr.bf16.mxu0 0
  %1603 = vmatpush1.bf16.msra.mxu0 0
  %1604 = vmatprep.subr.bf16.mxu0 0
  %1605 = vmatpush1.bf16.msra.mxu0 0
  %1606 = vmatprep.subr.bf16.mxu0 0
  %1607 = vmatpush1.bf16.msra.mxu0 0
  %1608 = vmatprep.subr.bf16.mxu0 0
  %1609 = vmatpush1.bf16.msra.mxu0 %v140
  %1610 = vmatprep.subr.bf16.mxu0 0
  %1611 = vmatpush1.bf16.msra.mxu0 %v139
  %1612 = vmatprep.subr.bf16.mxu0 0
  %1613 = vmatpush1.bf16.msra.mxu0 %v138
  %1614 = vmatprep.subr.bf16.mxu0 0
  %1615 = vmatpush1.bf16.msra.mxu0 %v137
  %1616 = vmatprep.subr.bf16.mxu0 0
  %1617 = vmatpush2.bf16.msra.mxu0 0
  %1618 = vmatprep.subr.bf16.mxu0 0
  %1619 = vmatpush2.bf16.msra.mxu0 0
  %1620 = vmatprep.subr.bf16.mxu0 0
  %1621 = vmatpush2.bf16.msra.mxu0 0
  %1622 = vmatprep.subr.bf16.mxu0 0
  %1623 = vmatpush2.bf16.msra.mxu0 0
  %1624 = vmatprep.subr.bf16.mxu0 0
  %1625 = vmatpush2.bf16.msra.mxu0 0
  %1626 = vmatprep.subr.bf16.mxu0 0
  %1627 = vmatpush2.bf16.msra.mxu0 0
  %1628 = vmatprep.subr.bf16.mxu0 0
  %1629 = vmatpush2.bf16.msra.mxu0 0
  %1630 = vmatprep.subr.bf16.mxu0 0
  %1631 = vmatpush2.bf16.msra.mxu0 0
  %1632 = vmatprep.mubr.bf16.mxu0 0
  %1633 = vmatmul.mubr.bf16.gmra.mxu0 %v314
  %v1634 = vpop.f32.mrf.mxu0
  %v1635 = vadd.f32 %v1594, %v1634
  %v1636 = vpop.f32.mrf.mxu0
  %v1637 = vpop.f32.mrf.mxu0
  %v1638 = vadd.f32 %v1597, %v1637
  %v1639 = vpop.f32.mrf.mxu0
  %1640 = vdwg.mxu0
  %1641 = vmatprep.subr.bf16.mxu0 0
  %1642 = vmatpush1.bf16.msra.mxu0 0
  %1643 = vmatprep.subr.bf16.mxu0 0
  %1644 = vmatpush1.bf16.msra.mxu0 0
  %1645 = vmatprep.subr.bf16.mxu0 0
  %1646 = vmatpush1.bf16.msra.mxu0 0
  %1647 = vmatprep.subr.bf16.mxu0 0
  %1648 = vmatpush1.bf16.msra.mxu0 0
  %1649 = vmatprep.subr.bf16.mxu0 0
  %1650 = vmatpush1.bf16.msra.mxu0 %v223
  %1651 = vmatprep.subr.bf16.mxu0 0
  %1652 = vmatpush1.bf16.msra.mxu0 %v222
  %1653 = vmatprep.subr.bf16.mxu0 0
  %1654 = vmatpush1.bf16.msra.mxu0 %v221
  %1655 = vmatprep.subr.bf16.mxu0 0
  %1656 = vmatpush1.bf16.msra.mxu0 %v220
  %1657 = vmatprep.subr.bf16.mxu0 0
  %1658 = vmatpush2.bf16.msra.mxu0 0
  %1659 = vmatprep.subr.bf16.mxu0 0
  %1660 = vmatpush2.bf16.msra.mxu0 0
  %1661 = vmatprep.subr.bf16.mxu0 0
  %1662 = vmatpush2.bf16.msra.mxu0 0
  %1663 = vmatprep.subr.bf16.mxu0 0
  %1664 = vmatpush2.bf16.msra.mxu0 0
  %1665 = vmatprep.subr.bf16.mxu0 0
  %1666 = vmatpush2.bf16.msra.mxu0 0
  %1667 = vmatprep.subr.bf16.mxu0 0
  %1668 = vmatpush2.bf16.msra.mxu0 0
  %1669 = vmatprep.subr.bf16.mxu0 0
  %1670 = vmatpush2.bf16.msra.mxu0 0
  %1671 = vmatprep.subr.bf16.mxu0 0
  %1672 = vmatpush2.bf16.msra.mxu0 0
  %1673 = vmatprep.mubr.bf16.mxu0 0
  %1674 = vmatmul.mubr.bf16.gmra.mxu0 %v479
  %v1675 = vpop.f32.mrf.mxu0
  %v1676 = vadd.f32 0.0, %v1675
  %v1677 = vpop.f32.mrf.mxu0
  %v1678 = vpop.f32.mrf.mxu0
  %v1679 = vadd.f32 0.0, %v1678
  %v1680 = vpop.f32.mrf.mxu0
  %1681 = vdwg.mxu0
  %v1682 = vadd.f32 %v1635, %v1676
  %v1683 = vadd.f32 %v1638, %v1679
  %1684 = vmatprep.subr.bf16.mxu0 0
  %1685 = vmatpush1.bf16.msra.mxu0 0
  %1686 = vmatprep.subr.bf16.mxu0 0
  %1687 = vmatpush1.bf16.msra.mxu0 0
  %1688 = vmatprep.subr.bf16.mxu0 0
  %1689 = vmatpush1.bf16.msra.mxu0 0
  %1690 = vmatprep.subr.bf16.mxu0 0
  %1691 = vmatpush1.bf16.msra.mxu0 0
  %1692 = vmatprep.subr.bf16.mxu0 0
  %1693 = vmatpush1.bf16.msra.mxu0 %v308
  %1694 = vmatprep.subr.bf16.mxu0 0
  %1695 = vmatpush1.bf16.msra.mxu0 %v307
  %1696 = vmatprep.subr.bf16.mxu0 0
  %1697 = vmatpush1.bf16.msra.mxu0 %v306
  %1698 = vmatprep.subr.bf16.mxu0 0
  %1699 = vmatpush1.bf16.msra.mxu0 %v305
  %1700 = vmatprep.subr.bf16.mxu0 0
  %1701 = vmatpush2.bf16.msra.mxu0 0
  %1702 = vmatprep.subr.bf16.mxu0 0
  %1703 = vmatpush2.bf16.msra.mxu0 0
  %1704 = vmatprep.subr.bf16.mxu0 0
  %1705 = vmatpush2.bf16.msra.mxu0 0
  %1706 = vmatprep.subr.bf16.mxu0 0
  %1707 = vmatpush2.bf16.msra.mxu0 0
  %1708 = vmatprep.subr.bf16.mxu0 0
  %1709 = vmatpush2.bf16.msra.mxu0 0
  %1710 = vmatprep.subr.bf16.mxu0 0
  %1711 = vmatpush2.bf16.msra.mxu0 0
  %1712 = vmatprep.subr.bf16.mxu0 0
  %1713 = vmatpush2.bf16.msra.mxu0 0
  %1714 = vmatprep.subr.bf16.mxu0 0
  %1715 = vmatpush2.bf16.msra.mxu0 0
  %1716 = vmatprep.mubr.bf16.mxu0 0
  %1717 = vmatmul.mubr.bf16.gmra.mxu0 %v564
  %v1718 = vpop.f32.mrf.mxu0
  %v1719 = vadd.f32 0.0, %v1718
  %v1720 = vpop.f32.mrf.mxu0
  %v1721 = vpop.f32.mrf.mxu0
  %v1722 = vadd.f32 0.0, %v1721
  %v1723 = vpop.f32.mrf.mxu0
  %1724 = vdwg.mxu0
  %v1725 = vadd.f32 %v1682, %v1719
  %v1726 = vadd.f32 %v1683, %v1722
  %1727 = vmatprep.subr.bf16.mxu0 0
  %1728 = vmatpush1.bf16.msra.mxu0 0
  %1729 = vmatprep.subr.bf16.mxu0 0
  %1730 = vmatpush1.bf16.msra.mxu0 0
  %1731 = vmatprep.subr.bf16.mxu0 0
  %1732 = vmatpush1.bf16.msra.mxu0 0
  %1733 = vmatprep.subr.bf16.mxu0 0
  %1734 = vmatpush1.bf16.msra.mxu0 0
  %1735 = vmatprep.subr.bf16.mxu0 0
  %1736 = vmatpush1.bf16.msra.mxu0 %v388
  %1737 = vmatprep.subr.bf16.mxu0 0
  %1738 = vmatpush1.bf16.msra.mxu0 %v387
  %1739 = vmatprep.subr.bf16.mxu0 0
  %1740 = vmatpush1.bf16.msra.mxu0 %v386
  %1741 = vmatprep.subr.bf16.mxu0 0
  %1742 = vmatpush1.bf16.msra.mxu0 %v385
  %1743 = vmatprep.subr.bf16.mxu0 0
  %1744 = vmatpush2.bf16.msra.mxu0 0
  %1745 = vmatprep.subr.bf16.mxu0 0
  %1746 = vmatpush2.bf16.msra.mxu0 0
  %1747 = vmatprep.subr.bf16.mxu0 0
  %1748 = vmatpush2.bf16.msra.mxu0 0
  %1749 = vmatprep.subr.bf16.mxu0 0
  %1750 = vmatpush2.bf16.msra.mxu0 0
  %1751 = vmatprep.subr.bf16.mxu0 0
  %1752 = vmatpush2.bf16.msra.mxu0 0
  %1753 = vmatprep.subr.bf16.mxu0 0
  %1754 = vmatpush2.bf16.msra.mxu0 0
  %1755 = vmatprep.subr.bf16.mxu0 0
  %1756 = vmatpush2.bf16.msra.mxu0 0
  %1757 = vmatprep.subr.bf16.mxu0 0
  %1758 = vmatpush2.bf16.msra.mxu0 0
  %1759 = vmatprep.mubr.bf16.mxu0 0
  %1760 = vmatmul.mubr.bf16.gmra.mxu0 %v644
  %v1761 = vpop.f32.mrf.mxu0
  %v1762 = vadd.f32 0.0, %v1761
  %v1763 = vpop.f32.mrf.mxu0
  %v1764 = vpop.f32.mrf.mxu0
  %v1765 = vadd.f32 0.0, %v1764
  %v1766 = vpop.f32.mrf.mxu0
  %1767 = vdwg.mxu0
  %v1768 = vadd.f32 %v1725, %v1762
  %v1769 = vadd.f32 %v1726, %v1765
  %1770 = vmatprep.subr.bf16.mxu0 0
  %1771 = vmatpush1.bf16.msra.mxu0 0
  %1772 = vmatprep.subr.bf16.mxu0 0
  %1773 = vmatpush1.bf16.msra.mxu0 0
  %1774 = vmatprep.subr.bf16.mxu0 0
  %1775 = vmatpush1.bf16.msra.mxu0 0
  %1776 = vmatprep.subr.bf16.mxu0 0
  %1777 = vmatpush1.bf16.msra.mxu0 0
  %1778 = vmatprep.subr.bf16.mxu0 0
  %1779 = vmatpush1.bf16.msra.mxu0 %v473
  %1780 = vmatprep.subr.bf16.mxu0 0
  %1781 = vmatpush1.bf16.msra.mxu0 %v472
  %1782 = vmatprep.subr.bf16.mxu0 0
  %1783 = vmatpush1.bf16.msra.mxu0 %v471
  %1784 = vmatprep.subr.bf16.mxu0 0
  %1785 = vmatpush1.bf16.msra.mxu0 %v470
  %1786 = vmatprep.subr.bf16.mxu0 0
  %1787 = vmatpush2.bf16.msra.mxu0 0
  %1788 = vmatprep.subr.bf16.mxu0 0
  %1789 = vmatpush2.bf16.msra.mxu0 0
  %1790 = vmatprep.subr.bf16.mxu0 0
  %1791 = vmatpush2.bf16.msra.mxu0 0
  %1792 = vmatprep.subr.bf16.mxu0 0
  %1793 = vmatpush2.bf16.msra.mxu0 0
  %1794 = vmatprep.subr.bf16.mxu0 0
  %1795 = vmatpush2.bf16.msra.mxu0 0
  %1796 = vmatprep.subr.bf16.mxu0 0
  %1797 = vmatpush2.bf16.msra.mxu0 0
  %1798 = vmatprep.subr.bf16.mxu0 0
  %1799 = vmatpush2.bf16.msra.mxu0 0
  %1800 = vmatprep.subr.bf16.mxu0 0
  %1801 = vmatpush2.bf16.msra.mxu0 0
  %1802 = vmatprep.mubr.bf16.mxu0 0
  %1803 = vmatmul.mubr.bf16.gmra.mxu0 %v729
  %v1804 = vpop.f32.mrf.mxu0
  %v1805 = vadd.f32 0.0, %v1804
  %v1806 = vpop.f32.mrf.mxu0
  %v1807 = vpop.f32.mrf.mxu0
  %v1808 = vadd.f32 0.0, %v1807
  %v1809 = vpop.f32.mrf.mxu0
  %1810 = vdwg.mxu0
  %v1811 = vadd.f32 %v1768, %v1805
  %v1812 = vadd.f32 %v1769, %v1808
  %v1813 = vld [vmem:[%s0 + $0x18] sm:$0xf]
  %v1814 = vld [vmem:[%s0 + $0x38] sm:$0xf]
  %v1817 = vunpack.c.l.b16 %v1813
  %v1818 = vunpack.c.l.b16 %v1814
  %v1819 = vpack.c.b16 %v1818, %v1817
  %v1821 = vsel %vm76, %v1819, 0
  %1823 = vmatprep.subr.bf16.mxu0 0
  %1824 = vmatpush1.bf16.msra.mxu0 0
  %1825 = vmatprep.subr.bf16.mxu0 0
  %1826 = vmatpush1.bf16.msra.mxu0 0
  %1827 = vmatprep.subr.bf16.mxu0 0
  %1828 = vmatpush1.bf16.msra.mxu0 0
  %1829 = vmatprep.subr.bf16.mxu0 0
  %1830 = vmatpush1.bf16.msra.mxu0 0
  %1831 = vmatprep.subr.bf16.mxu0 0
  %1832 = vmatpush1.bf16.msra.mxu0 %v558
  %1833 = vmatprep.subr.bf16.mxu0 0
  %1834 = vmatpush1.bf16.msra.mxu0 %v557
  %1835 = vmatprep.subr.bf16.mxu0 0
  %1836 = vmatpush1.bf16.msra.mxu0 %v556
  %1837 = vmatprep.subr.bf16.mxu0 0
  %1838 = vmatpush1.bf16.msra.mxu0 %v555
  %1839 = vmatprep.subr.bf16.mxu0 0
  %1840 = vmatpush2.bf16.msra.mxu0 0
  %1841 = vmatprep.subr.bf16.mxu0 0
  %1842 = vmatpush2.bf16.msra.mxu0 0
  %1843 = vmatprep.subr.bf16.mxu0 0
  %1844 = vmatpush2.bf16.msra.mxu0 0
  %1845 = vmatprep.subr.bf16.mxu0 0
  %1846 = vmatpush2.bf16.msra.mxu0 0
  %1847 = vmatprep.subr.bf16.mxu0 0
  %1848 = vmatpush2.bf16.msra.mxu0 0
  %1849 = vmatprep.subr.bf16.mxu0 0
  %1850 = vmatpush2.bf16.msra.mxu0 0
  %1851 = vmatprep.subr.bf16.mxu0 0
  %1852 = vmatpush2.bf16.msra.mxu0 0
  %1853 = vmatprep.subr.bf16.mxu0 0
  %1854 = vmatpush2.bf16.msra.mxu0 0
  %1855 = vmatprep.mubr.bf16.mxu0 0
  %1856 = vmatmul.mubr.bf16.gmra.mxu0 %v1821
  %v1857 = vpop.f32.mrf.mxu0
  %v1858 = vadd.f32 0.0, %v1857
  %v1859 = vpop.f32.mrf.mxu0
  %v1860 = vpop.f32.mrf.mxu0
  %v1861 = vadd.f32 0.0, %v1860
  %v1862 = vpop.f32.mrf.mxu0
  %1863 = vdwg.mxu0
  %v1864 = vadd.f32 %v1811, %v1858
  %v1865 = vadd.f32 %v1812, %v1861
  %1866 = vrot.lane.b32.xlu0 %v1819, 64
  %v1867 = vpop.permute.xlu0 %1866
  %v1869 = vsel %vm76, %v1867, 0
  %1871 = vmatprep.subr.bf16.mxu0 0
  %1872 = vmatpush1.bf16.msra.mxu0 0
  %1873 = vmatprep.subr.bf16.mxu0 0
  %1874 = vmatpush1.bf16.msra.mxu0 0
  %1875 = vmatprep.subr.bf16.mxu0 0
  %1876 = vmatpush1.bf16.msra.mxu0 0
  %1877 = vmatprep.subr.bf16.mxu0 0
  %1878 = vmatpush1.bf16.msra.mxu0 0
  %1879 = vmatprep.subr.bf16.mxu0 0
  %1880 = vmatpush1.bf16.msra.mxu0 %v638
  %1881 = vmatprep.subr.bf16.mxu0 0
  %1882 = vmatpush1.bf16.msra.mxu0 %v637
  %1883 = vmatprep.subr.bf16.mxu0 0
  %1884 = vmatpush1.bf16.msra.mxu0 %v636
  %1885 = vmatprep.subr.bf16.mxu0 0
  %1886 = vmatpush1.bf16.msra.mxu0 %v635
  %1887 = vmatprep.subr.bf16.mxu0 0
  %1888 = vmatpush2.bf16.msra.mxu0 0
  %1889 = vmatprep.subr.bf16.mxu0 0
  %1890 = vmatpush2.bf16.msra.mxu0 0
  %1891 = vmatprep.subr.bf16.mxu0 0
  %1892 = vmatpush2.bf16.msra.mxu0 0
  %1893 = vmatprep.subr.bf16.mxu0 0
  %1894 = vmatpush2.bf16.msra.mxu0 0
  %1895 = vmatprep.subr.bf16.mxu0 0
  %1896 = vmatpush2.bf16.msra.mxu0 0
  %1897 = vmatprep.subr.bf16.mxu0 0
  %1898 = vmatpush2.bf16.msra.mxu0 0
  %1899 = vmatprep.subr.bf16.mxu0 0
  %1900 = vmatpush2.bf16.msra.mxu0 0
  %1901 = vmatprep.subr.bf16.mxu0 0
  %1902 = vmatpush2.bf16.msra.mxu0 0
  %1903 = vmatprep.mubr.bf16.mxu0 0
  %1904 = vmatmul.mubr.bf16.gmra.mxu0 %v1869
  %v1905 = vpop.f32.mrf.mxu0
  %v1906 = vadd.f32 0.0, %v1905
  %v1907 = vpop.f32.mrf.mxu0
  %v1908 = vpop.f32.mrf.mxu0
  %v1909 = vadd.f32 0.0, %v1908
  %v1910 = vpop.f32.mrf.mxu0
  %1911 = vdwg.mxu0
  %v1912 = vadd.f32 %v1864, %v1906
  %v1913 = vadd.f32 %v1865, %v1909
  %v1914 = vld [vmem:[%s0 + $0x1c] sm:$0xf]
  %v1915 = vld [vmem:[%s0 + $0x3c] sm:$0xf]
  %v1918 = vunpack.c.l.b16 %v1914
  %v1919 = vunpack.c.l.b16 %v1915
  %v1920 = vpack.c.b16 %v1919, %v1918
  %v1922 = vsel %vm76, %v1920, 0
  %1924 = vmatprep.subr.bf16.mxu0 0
  %1925 = vmatpush1.bf16.msra.mxu0 0
  %1926 = vmatprep.subr.bf16.mxu0 0
  %1927 = vmatpush1.bf16.msra.mxu0 0
  %1928 = vmatprep.subr.bf16.mxu0 0
  %1929 = vmatpush1.bf16.msra.mxu0 0
  %1930 = vmatprep.subr.bf16.mxu0 0
  %1931 = vmatpush1.bf16.msra.mxu0 0
  %1932 = vmatprep.subr.bf16.mxu0 0
  %1933 = vmatpush1.bf16.msra.mxu0 %v723
  %1934 = vmatprep.subr.bf16.mxu0 0
  %1935 = vmatpush1.bf16.msra.mxu0 %v722
  %1936 = vmatprep.subr.bf16.mxu0 0
  %1937 = vmatpush1.bf16.msra.mxu0 %v721
  %1938 = vmatprep.subr.bf16.mxu0 0
  %1939 = vmatpush1.bf16.msra.mxu0 %v720
  %1940 = vmatprep.subr.bf16.mxu0 0
  %1941 = vmatpush2.bf16.msra.mxu0 0
  %1942 = vmatprep.subr.bf16.mxu0 0
  %1943 = vmatpush2.bf16.msra.mxu0 0
  %1944 = vmatprep.subr.bf16.mxu0 0
  %1945 = vmatpush2.bf16.msra.mxu0 0
  %1946 = vmatprep.subr.bf16.mxu0 0
  %1947 = vmatpush2.bf16.msra.mxu0 0
  %1948 = vmatprep.subr.bf16.mxu0 0
  %1949 = vmatpush2.bf16.msra.mxu0 0
  %1950 = vmatprep.subr.bf16.mxu0 0
  %1951 = vmatpush2.bf16.msra.mxu0 0
  %1952 = vmatprep.subr.bf16.mxu0 0
  %1953 = vmatpush2.bf16.msra.mxu0 0
  %1954 = vmatprep.subr.bf16.mxu0 0
  %1955 = vmatpush2.bf16.msra.mxu0 0
  %1956 = vmatprep.mubr.bf16.mxu0 0
  %1957 = vmatmul.mubr.bf16.gmra.mxu0 %v1922
  %v1958 = vpop.f32.mrf.mxu0
  %v1959 = vadd.f32 0.0, %v1958
  %v1960 = vpop.f32.mrf.mxu0
  %v1961 = vpop.f32.mrf.mxu0
  %v1962 = vadd.f32 0.0, %v1961
  %v1963 = vpop.f32.mrf.mxu0
  %1964 = vdwg.mxu0
  %v1965 = vadd.f32 %v1912, %v1959
  %v1966 = vadd.f32 %v1913, %v1962
  %v1967 = vadd.f32 %v1965, %v779
  %v1968 = vadd.f32 %v1966, %v779
  %v1969 = vmax.f32 %v1967, 0.0
  %v1970 = vmax.f32 %v1968, 0.0
  %v1971 = vpack.c.bf16 %v1970, %v1969
  %v1972 = vld [vmem:[%s3 + $0x100] sm:$0xff]
  %v1973 = vld [vmem:[%s3 + $0x108] sm:$0xff]
  %v1974 = vld [vmem:[%s3 + $0x110] sm:$0xff]
  %v1975 = vld [vmem:[%s3 + $0x118] sm:$0xff]
  %v1976 = vld [vmem:[%s3 + $0x120] sm:$0xff]
  %v1977 = vld [vmem:[%s3 + $0x128] sm:$0xff]
  %v1978 = vld [vmem:[%s3 + $0x130] sm:$0xff]
  %v1979 = vld [vmem:[%s3 + $0x138] sm:$0xff]
  %v1980 = vld [vmem:[%s3 + $0x140] sm:$0xff]
  %v1981 = vld [vmem:[%s3 + $0x148] sm:$0xff]
  %v1982 = vld [vmem:[%s3 + $0x150] sm:$0xff]
  %v1983 = vld [vmem:[%s3 + $0x158] sm:$0xff]
  %v1984 = vld [vmem:[%s3 + $0x160] sm:$0xff]
  %v1985 = vld [vmem:[%s3 + $0x168] sm:$0xff]
  %v1986 = vld [vmem:[%s3 + $0x170] sm:$0xff]
  %v1987 = vld [vmem:[%s3 + $0x178] sm:$0xff]
  %v2004 = vunpack.c.l.b16 %v1972
  %v2005 = vunpack.c.h.b16 %v1972
  %v2006 = vunpack.c.l.b16 %v1973
  %v2007 = vunpack.c.h.b16 %v1973
  %v2008 = vunpack.c.l.b16 %v1974
  %v2009 = vunpack.c.h.b16 %v1974
  %v2010 = vunpack.c.l.b16 %v1975
  %v2011 = vunpack.c.h.b16 %v1975
  %v2012 = vunpack.c.l.b16 %v1976
  %v2013 = vunpack.c.h.b16 %v1976
  %v2014 = vunpack.c.l.b16 %v1977
  %v2015 = vunpack.c.h.b16 %v1977
  %v2016 = vunpack.c.l.b16 %v1978
  %v2017 = vunpack.c.h.b16 %v1978
  %v2018 = vunpack.c.l.b16 %v1979
  %v2019 = vunpack.c.h.b16 %v1979
  %v2020 = vunpack.c.l.b16 %v1980
  %v2021 = vunpack.c.h.b16 %v1980
  %v2022 = vunpack.c.l.b16 %v1981
  %v2023 = vunpack.c.h.b16 %v1981
  %v2024 = vunpack.c.l.b16 %v1982
  %v2025 = vunpack.c.h.b16 %v1982
  %v2026 = vunpack.c.l.b16 %v1983
  %v2027 = vunpack.c.h.b16 %v1983
  %v2028 = vunpack.c.l.b16 %v1984
  %v2029 = vunpack.c.h.b16 %v1984
  %v2030 = vunpack.c.l.b16 %v1985
  %v2031 = vunpack.c.h.b16 %v1985
  %v2032 = vunpack.c.l.b16 %v1986
  %v2033 = vunpack.c.h.b16 %v1986
  %v2034 = vunpack.c.l.b16 %v1987
  %v2035 = vunpack.c.h.b16 %v1987
  %v2036 = vpack.c.b16 %v2008, %v2004
  %v2037 = vpack.c.b16 %v2009, %v2005
  %v2038 = vpack.c.b16 %v2010, %v2006
  %v2039 = vpack.c.b16 %v2011, %v2007
  %v2040 = vpack.c.b16 %v2016, %v2012
  %v2041 = vpack.c.b16 %v2017, %v2013
  %v2042 = vpack.c.b16 %v2018, %v2014
  %v2043 = vpack.c.b16 %v2019, %v2015
  %v2044 = vpack.c.b16 %v2024, %v2020
  %v2045 = vpack.c.b16 %v2025, %v2021
  %v2046 = vpack.c.b16 %v2026, %v2022
  %v2047 = vpack.c.b16 %v2027, %v2023
  %v2048 = vpack.c.b16 %v2032, %v2028
  %v2049 = vpack.c.b16 %v2033, %v2029
  %v2050 = vpack.c.b16 %v2034, %v2030
  %v2051 = vpack.c.b16 %v2035, %v2031
  %v2069 = vsel %vm76, %v1971, 0
  %2071 = vmatprep.subr.bf16.mxu0 0
  %2072 = vmatpush1.bf16.msra.mxu0 0
  %2073 = vmatprep.subr.bf16.mxu0 0
  %2074 = vmatpush1.bf16.msra.mxu0 0
  %2075 = vmatprep.subr.bf16.mxu0 0
  %2076 = vmatpush1.bf16.msra.mxu0 0
  %2077 = vmatprep.subr.bf16.mxu0 0
  %2078 = vmatpush1.bf16.msra.mxu0 0
  %2079 = vmatprep.subr.bf16.mxu0 %v2049
  %2080 = vmatpush1.bf16.msra.mxu0 %v2048
  %2081 = vmatprep.subr.bf16.mxu0 %v2045
  %2082 = vmatpush1.bf16.msra.mxu0 %v2044
  %2083 = vmatprep.subr.bf16.mxu0 %v2041
  %2084 = vmatpush1.bf16.msra.mxu0 %v2040
  %2085 = vmatprep.subr.bf16.mxu0 %v2037
  %2086 = vmatpush1.bf16.msra.mxu0 %v2036
  %2087 = vmatprep.subr.bf16.mxu0 0
  %2088 = vmatpush2.bf16.msra.mxu0 0
  %2089 = vmatprep.subr.bf16.mxu0 0
  %2090 = vmatpush2.bf16.msra.mxu0 0
  %2091 = vmatprep.subr.bf16.mxu0 0
  %2092 = vmatpush2.bf16.msra.mxu0 0
  %2093 = vmatprep.subr.bf16.mxu0 0
  %2094 = vmatpush2.bf16.msra.mxu0 0
  %2095 = vmatprep.subr.bf16.mxu0 0
  %2096 = vmatpush2.bf16.msra.mxu0 0
  %2097 = vmatprep.subr.bf16.mxu0 0
  %2098 = vmatpush2.bf16.msra.mxu0 0
  %2099 = vmatprep.subr.bf16.mxu0 0
  %2100 = vmatpush2.bf16.msra.mxu0 0
  %2101 = vmatprep.subr.bf16.mxu0 0
  %2102 = vmatpush2.bf16.msra.mxu0 0
  %2103 = vmatprep.mubr.bf16.mxu0 0
  %2104 = vmatmul.mubr.bf16.gmra.mxu0 %v2069
  %v2105 = vpop.f32.mrf.mxu0
  %v2106 = vadd.f32 0.0, %v2105
  %v2107 = vpop.f32.mrf.mxu0
  %v2108 = vadd.f32 0.0, %v2107
  %v2109 = vpop.f32.mrf.mxu0
  %v2110 = vadd.f32 0.0, %v2109
  %v2111 = vpop.f32.mrf.mxu0
  %v2112 = vadd.f32 0.0, %v2111
  %2113 = vdwg.mxu0
  %2114 = vmatprep.subr.bf16.mxu0 0
  %2115 = vmatpush1.bf16.msra.mxu0 0
  %2116 = vmatprep.subr.bf16.mxu0 0
  %2117 = vmatpush1.bf16.msra.mxu0 0
  %2118 = vmatprep.subr.bf16.mxu0 0
  %2119 = vmatpush1.bf16.msra.mxu0 0
  %2120 = vmatprep.subr.bf16.mxu0 0
  %2121 = vmatpush1.bf16.msra.mxu0 0
  %2122 = vmatprep.subr.bf16.mxu0 %v2051
  %2123 = vmatpush1.bf16.msra.mxu0 %v2050
  %2124 = vmatprep.subr.bf16.mxu0 %v2047
  %2125 = vmatpush1.bf16.msra.mxu0 %v2046
  %2126 = vmatprep.subr.bf16.mxu0 %v2043
  %2127 = vmatpush1.bf16.msra.mxu0 %v2042
  %2128 = vmatprep.subr.bf16.mxu0 %v2039
  %2129 = vmatpush1.bf16.msra.mxu0 %v2038
  %2130 = vmatprep.subr.bf16.mxu0 0
  %2131 = vmatpush2.bf16.msra.mxu0 0
  %2132 = vmatprep.subr.bf16.mxu0 0
  %2133 = vmatpush2.bf16.msra.mxu0 0
  %2134 = vmatprep.subr.bf16.mxu0 0
  %2135 = vmatpush2.bf16.msra.mxu0 0
  %2136 = vmatprep.subr.bf16.mxu0 0
  %2137 = vmatpush2.bf16.msra.mxu0 0
  %2138 = vmatprep.subr.bf16.mxu0 0
  %2139 = vmatpush2.bf16.msra.mxu0 0
  %2140 = vmatprep.subr.bf16.mxu0 0
  %2141 = vmatpush2.bf16.msra.mxu0 0
  %2142 = vmatprep.subr.bf16.mxu0 0
  %2143 = vmatpush2.bf16.msra.mxu0 0
  %2144 = vmatprep.subr.bf16.mxu0 0
  %2145 = vmatpush2.bf16.msra.mxu0 0
  %2146 = vmatprep.mubr.bf16.mxu0 0
  %2147 = vmatmul.mubr.bf16.gmra.mxu0 %v2069
  %v2148 = vpop.f32.mrf.mxu0
  %v2149 = vadd.f32 0.0, %v2148
  %v2150 = vpop.f32.mrf.mxu0
  %v2151 = vadd.f32 0.0, %v2150
  %v2152 = vpop.f32.mrf.mxu0
  %v2153 = vadd.f32 0.0, %v2152
  %v2154 = vpop.f32.mrf.mxu0
  %v2155 = vadd.f32 0.0, %v2154
  %2156 = vdwg.mxu0
  %v2157 = vadd.f32 %v1508, %v2106
  %v2158 = vadd.f32 %v1510, %v2108
  %v2159 = vadd.f32 %v1551, %v2149
  %v2160 = vadd.f32 %v1553, %v2151
  %v2161 = vadd.f32 %v1512, %v2110
  %v2162 = vadd.f32 %v1514, %v2112
  %v2163 = vadd.f32 %v1555, %v2153
  %v2164 = vadd.f32 %v1557, %v2155
  %2165 = vmatprep.subr.bf16.mxu0 0
  %2166 = vmatpush1.bf16.msra.mxu0 0
  %2167 = vmatprep.subr.bf16.mxu0 0
  %2168 = vmatpush1.bf16.msra.mxu0 0
  %2169 = vmatprep.subr.bf16.mxu0 0
  %2170 = vmatpush1.bf16.msra.mxu0 0
  %2171 = vmatprep.subr.bf16.mxu0 0
  %2172 = vmatpush1.bf16.msra.mxu0 0
  %2173 = vmatprep.subr.bf16.mxu0 0
  %2174 = vmatpush1.bf16.msra.mxu0 %v71
  %2175 = vmatprep.subr.bf16.mxu0 0
  %2176 = vmatpush1.bf16.msra.mxu0 %v70
  %2177 = vmatprep.subr.bf16.mxu0 0
  %2178 = vmatpush1.bf16.msra.mxu0 %v69
  %2179 = vmatprep.subr.bf16.mxu0 0
  %2180 = vmatpush1.bf16.msra.mxu0 %v68
  %2181 = vmatprep.subr.bf16.mxu0 0
  %2182 = vmatpush2.bf16.msra.mxu0 0
  %2183 = vmatprep.subr.bf16.mxu0 0
  %2184 = vmatpush2.bf16.msra.mxu0 0
  %2185 = vmatprep.subr.bf16.mxu0 0
  %2186 = vmatpush2.bf16.msra.mxu0 0
  %2187 = vmatprep.subr.bf16.mxu0 0
  %2188 = vmatpush2.bf16.msra.mxu0 0
  %2189 = vmatprep.subr.bf16.mxu0 0
  %2190 = vmatpush2.bf16.msra.mxu0 0
  %2191 = vmatprep.subr.bf16.mxu0 0
  %2192 = vmatpush2.bf16.msra.mxu0 0
  %2193 = vmatprep.subr.bf16.mxu0 0
  %2194 = vmatpush2.bf16.msra.mxu0 0
  %2195 = vmatprep.subr.bf16.mxu0 0
  %2196 = vmatpush2.bf16.msra.mxu0 0
  %2197 = vmatprep.mubr.bf16.mxu0 0
  %2198 = vmatmul.mubr.bf16.gmra.mxu0 %v479
  %v2199 = vpop.f32.mrf.mxu0
  %v2200 = vadd.f32 0.0, %v2199
  %v2201 = vpop.f32.mrf.mxu0
  %v2202 = vpop.f32.mrf.mxu0
  %v2203 = vadd.f32 0.0, %v2202
  %v2204 = vpop.f32.mrf.mxu0
  %2205 = vdwg.mxu0
  %2206 = vmatprep.subr.bf16.mxu0 0
  %2207 = vmatpush1.bf16.msra.mxu0 0
  %2208 = vmatprep.subr.bf16.mxu0 0
  %2209 = vmatpush1.bf16.msra.mxu0 0
  %2210 = vmatprep.subr.bf16.mxu0 0
  %2211 = vmatpush1.bf16.msra.mxu0 0
  %2212 = vmatprep.subr.bf16.mxu0 0
  %2213 = vmatpush1.bf16.msra.mxu0 0
  %2214 = vmatprep.subr.bf16.mxu0 0
  %2215 = vmatpush1.bf16.msra.mxu0 %v140
  %2216 = vmatprep.subr.bf16.mxu0 0
  %2217 = vmatpush1.bf16.msra.mxu0 %v139
  %2218 = vmatprep.subr.bf16.mxu0 0
  %2219 = vmatpush1.bf16.msra.mxu0 %v138
  %2220 = vmatprep.subr.bf16.mxu0 0
  %2221 = vmatpush1.bf16.msra.mxu0 %v137
  %2222 = vmatprep.subr.bf16.mxu0 0
  %2223 = vmatpush2.bf16.msra.mxu0 0
  %2224 = vmatprep.subr.bf16.mxu0 0
  %2225 = vmatpush2.bf16.msra.mxu0 0
  %2226 = vmatprep.subr.bf16.mxu0 0
  %2227 = vmatpush2.bf16.msra.mxu0 0
  %2228 = vmatprep.subr.bf16.mxu0 0
  %2229 = vmatpush2.bf16.msra.mxu0 0
  %2230 = vmatprep.subr.bf16.mxu0 0
  %2231 = vmatpush2.bf16.msra.mxu0 0
  %2232 = vmatprep.subr.bf16.mxu0 0
  %2233 = vmatpush2.bf16.msra.mxu0 0
  %2234 = vmatprep.subr.bf16.mxu0 0
  %2235 = vmatpush2.bf16.msra.mxu0 0
  %2236 = vmatprep.subr.bf16.mxu0 0
  %2237 = vmatpush2.bf16.msra.mxu0 0
  %2238 = vmatprep.mubr.bf16.mxu0 0
  %2239 = vmatmul.mubr.bf16.gmra.mxu0 %v394
  %v2240 = vpop.f32.mrf.mxu0
  %v2241 = vadd.f32 %v2200, %v2240
  %v2242 = vpop.f32.mrf.mxu0
  %v2243 = vpop.f32.mrf.mxu0
  %v2244 = vadd.f32 %v2203, %v2243
  %v2245 = vpop.f32.mrf.mxu0
  %2246 = vdwg.mxu0
  %2247 = vmatprep.subr.bf16.mxu0 0
  %2248 = vmatpush1.bf16.msra.mxu0 0
  %2249 = vmatprep.subr.bf16.mxu0 0
  %2250 = vmatpush1.bf16.msra.mxu0 0
  %2251 = vmatprep.subr.bf16.mxu0 0
  %2252 = vmatpush1.bf16.msra.mxu0 0
  %2253 = vmatprep.subr.bf16.mxu0 0
  %2254 = vmatpush1.bf16.msra.mxu0 0
  %2255 = vmatprep.subr.bf16.mxu0 0
  %2256 = vmatpush1.bf16.msra.mxu0 %v223
  %2257 = vmatprep.subr.bf16.mxu0 0
  %2258 = vmatpush1.bf16.msra.mxu0 %v222
  %2259 = vmatprep.subr.bf16.mxu0 0
  %2260 = vmatpush1.bf16.msra.mxu0 %v221
  %2261 = vmatprep.subr.bf16.mxu0 0
  %2262 = vmatpush1.bf16.msra.mxu0 %v220
  %2263 = vmatprep.subr.bf16.mxu0 0
  %2264 = vmatpush2.bf16.msra.mxu0 0
  %2265 = vmatprep.subr.bf16.mxu0 0
  %2266 = vmatpush2.bf16.msra.mxu0 0
  %2267 = vmatprep.subr.bf16.mxu0 0
  %2268 = vmatpush2.bf16.msra.mxu0 0
  %2269 = vmatprep.subr.bf16.mxu0 0
  %2270 = vmatpush2.bf16.msra.mxu0 0
  %2271 = vmatprep.subr.bf16.mxu0 0
  %2272 = vmatpush2.bf16.msra.mxu0 0
  %2273 = vmatprep.subr.bf16.mxu0 0
  %2274 = vmatpush2.bf16.msra.mxu0 0
  %2275 = vmatprep.subr.bf16.mxu0 0
  %2276 = vmatpush2.bf16.msra.mxu0 0
  %2277 = vmatprep.subr.bf16.mxu0 0
  %2278 = vmatpush2.bf16.msra.mxu0 0
  %2279 = vmatprep.mubr.bf16.mxu0 0
  %2280 = vmatmul.mubr.bf16.gmra.mxu0 %v1021
  %v2281 = vpop.f32.mrf.mxu0
  %v2282 = vadd.f32 0.0, %v2281
  %v2283 = vpop.f32.mrf.mxu0
  %v2284 = vpop.f32.mrf.mxu0
  %v2285 = vadd.f32 0.0, %v2284
  %v2286 = vpop.f32.mrf.mxu0
  %2287 = vdwg.mxu0
  %v2288 = vadd.f32 %v2241, %v2282
  %v2289 = vadd.f32 %v2244, %v2285
  %2290 = vmatprep.subr.bf16.mxu0 0
  %2291 = vmatpush1.bf16.msra.mxu0 0
  %2292 = vmatprep.subr.bf16.mxu0 0
  %2293 = vmatpush1.bf16.msra.mxu0 0
  %2294 = vmatprep.subr.bf16.mxu0 0
  %2295 = vmatpush1.bf16.msra.mxu0 0
  %2296 = vmatprep.subr.bf16.mxu0 0
  %2297 = vmatpush1.bf16.msra.mxu0 0
  %2298 = vmatprep.subr.bf16.mxu0 0
  %2299 = vmatpush1.bf16.msra.mxu0 %v308
  %2300 = vmatprep.subr.bf16.mxu0 0
  %2301 = vmatpush1.bf16.msra.mxu0 %v307
  %2302 = vmatprep.subr.bf16.mxu0 0
  %2303 = vmatpush1.bf16.msra.mxu0 %v306
  %2304 = vmatprep.subr.bf16.mxu0 0
  %2305 = vmatpush1.bf16.msra.mxu0 %v305
  %2306 = vmatprep.subr.bf16.mxu0 0
  %2307 = vmatpush2.bf16.msra.mxu0 0
  %2308 = vmatprep.subr.bf16.mxu0 0
  %2309 = vmatpush2.bf16.msra.mxu0 0
  %2310 = vmatprep.subr.bf16.mxu0 0
  %2311 = vmatpush2.bf16.msra.mxu0 0
  %2312 = vmatprep.subr.bf16.mxu0 0
  %2313 = vmatpush2.bf16.msra.mxu0 0
  %2314 = vmatprep.subr.bf16.mxu0 0
  %2315 = vmatpush2.bf16.msra.mxu0 0
  %2316 = vmatprep.subr.bf16.mxu0 0
  %2317 = vmatpush2.bf16.msra.mxu0 0
  %2318 = vmatprep.subr.bf16.mxu0 0
  %2319 = vmatpush2.bf16.msra.mxu0 0
  %2320 = vmatprep.subr.bf16.mxu0 0
  %2321 = vmatpush2.bf16.msra.mxu0 0
  %2322 = vmatprep.mubr.bf16.mxu0 0
  %2323 = vmatmul.mubr.bf16.gmra.mxu0 %v644
  %v2324 = vpop.f32.mrf.mxu0
  %v2325 = vadd.f32 0.0, %v2324
  %v2326 = vpop.f32.mrf.mxu0
  %v2327 = vpop.f32.mrf.mxu0
  %v2328 = vadd.f32 0.0, %v2327
  %v2329 = vpop.f32.mrf.mxu0
  %2330 = vdwg.mxu0
  %v2331 = vadd.f32 %v2288, %v2325
  %v2332 = vadd.f32 %v2289, %v2328
  %2333 = vmatprep.subr.bf16.mxu0 0
  %2334 = vmatpush1.bf16.msra.mxu0 0
  %2335 = vmatprep.subr.bf16.mxu0 0
  %2336 = vmatpush1.bf16.msra.mxu0 0
  %2337 = vmatprep.subr.bf16.mxu0 0
  %2338 = vmatpush1.bf16.msra.mxu0 0
  %2339 = vmatprep.subr.bf16.mxu0 0
  %2340 = vmatpush1.bf16.msra.mxu0 0
  %2341 = vmatprep.subr.bf16.mxu0 0
  %2342 = vmatpush1.bf16.msra.mxu0 %v388
  %2343 = vmatprep.subr.bf16.mxu0 0
  %2344 = vmatpush1.bf16.msra.mxu0 %v387
  %2345 = vmatprep.subr.bf16.mxu0 0
  %2346 = vmatpush1.bf16.msra.mxu0 %v386
  %2347 = vmatprep.subr.bf16.mxu0 0
  %2348 = vmatpush1.bf16.msra.mxu0 %v385
  %2349 = vmatprep.subr.bf16.mxu0 0
  %2350 = vmatpush2.bf16.msra.mxu0 0
  %2351 = vmatprep.subr.bf16.mxu0 0
  %2352 = vmatpush2.bf16.msra.mxu0 0
  %2353 = vmatprep.subr.bf16.mxu0 0
  %2354 = vmatpush2.bf16.msra.mxu0 0
  %2355 = vmatprep.subr.bf16.mxu0 0
  %2356 = vmatpush2.bf16.msra.mxu0 0
  %2357 = vmatprep.subr.bf16.mxu0 0
  %2358 = vmatpush2.bf16.msra.mxu0 0
  %2359 = vmatprep.subr.bf16.mxu0 0
  %2360 = vmatpush2.bf16.msra.mxu0 0
  %2361 = vmatprep.subr.bf16.mxu0 0
  %2362 = vmatpush2.bf16.msra.mxu0 0
  %2363 = vmatprep.subr.bf16.mxu0 0
  %2364 = vmatpush2.bf16.msra.mxu0 0
  %2365 = vmatprep.mubr.bf16.mxu0 0
  %2366 = vmatmul.mubr.bf16.gmra.mxu0 %v729
  %v2367 = vpop.f32.mrf.mxu0
  %v2368 = vadd.f32 0.0, %v2367
  %v2369 = vpop.f32.mrf.mxu0
  %v2370 = vpop.f32.mrf.mxu0
  %v2371 = vadd.f32 0.0, %v2370
  %v2372 = vpop.f32.mrf.mxu0
  %2373 = vdwg.mxu0
  %v2374 = vadd.f32 %v2331, %v2368
  %v2375 = vadd.f32 %v2332, %v2371
  %2376 = vmatprep.subr.bf16.mxu0 0
  %2377 = vmatpush1.bf16.msra.mxu0 0
  %2378 = vmatprep.subr.bf16.mxu0 0
  %2379 = vmatpush1.bf16.msra.mxu0 0
  %2380 = vmatprep.subr.bf16.mxu0 0
  %2381 = vmatpush1.bf16.msra.mxu0 0
  %2382 = vmatprep.subr.bf16.mxu0 0
  %2383 = vmatpush1.bf16.msra.mxu0 0
  %2384 = vmatprep.subr.bf16.mxu0 0
  %2385 = vmatpush1.bf16.msra.mxu0 %v473
  %2386 = vmatprep.subr.bf16.mxu0 0
  %2387 = vmatpush1.bf16.msra.mxu0 %v472
  %2388 = vmatprep.subr.bf16.mxu0 0
  %2389 = vmatpush1.bf16.msra.mxu0 %v471
  %2390 = vmatprep.subr.bf16.mxu0 0
  %2391 = vmatpush1.bf16.msra.mxu0 %v470
  %2392 = vmatprep.subr.bf16.mxu0 0
  %2393 = vmatpush2.bf16.msra.mxu0 0
  %2394 = vmatprep.subr.bf16.mxu0 0
  %2395 = vmatpush2.bf16.msra.mxu0 0
  %2396 = vmatprep.subr.bf16.mxu0 0
  %2397 = vmatpush2.bf16.msra.mxu0 0
  %2398 = vmatprep.subr.bf16.mxu0 0
  %2399 = vmatpush2.bf16.msra.mxu0 0
  %2400 = vmatprep.subr.bf16.mxu0 0
  %2401 = vmatpush2.bf16.msra.mxu0 0
  %2402 = vmatprep.subr.bf16.mxu0 0
  %2403 = vmatpush2.bf16.msra.mxu0 0
  %2404 = vmatprep.subr.bf16.mxu0 0
  %2405 = vmatpush2.bf16.msra.mxu0 0
  %2406 = vmatprep.subr.bf16.mxu0 0
  %2407 = vmatpush2.bf16.msra.mxu0 0
  %2408 = vmatprep.mubr.bf16.mxu0 0
  %2409 = vmatmul.mubr.bf16.gmra.mxu0 %v1155
  %v2410 = vpop.f32.mrf.mxu0
  %v2411 = vadd.f32 0.0, %v2410
  %v2412 = vpop.f32.mrf.mxu0
  %v2413 = vpop.f32.mrf.mxu0
  %v2414 = vadd.f32 0.0, %v2413
  %v2415 = vpop.f32.mrf.mxu0
  %2416 = vdwg.mxu0
  %v2417 = vadd.f32 %v2374, %v2411
  %v2418 = vadd.f32 %v2375, %v2414
  %2419 = vmatprep.subr.bf16.mxu0 0
  %2420 = vmatpush1.bf16.msra.mxu0 0
  %2421 = vmatprep.subr.bf16.mxu0 0
  %2422 = vmatpush1.bf16.msra.mxu0 0
  %2423 = vmatprep.subr.bf16.mxu0 0
  %2424 = vmatpush1.bf16.msra.mxu0 0
  %2425 = vmatprep.subr.bf16.mxu0 0
  %2426 = vmatpush1.bf16.msra.mxu0 0
  %2427 = vmatprep.subr.bf16.mxu0 0
  %2428 = vmatpush1.bf16.msra.mxu0 %v558
  %2429 = vmatprep.subr.bf16.mxu0 0
  %2430 = vmatpush1.bf16.msra.mxu0 %v557
  %2431 = vmatprep.subr.bf16.mxu0 0
  %2432 = vmatpush1.bf16.msra.mxu0 %v556
  %2433 = vmatprep.subr.bf16.mxu0 0
  %2434 = vmatpush1.bf16.msra.mxu0 %v555
  %2435 = vmatprep.subr.bf16.mxu0 0
  %2436 = vmatpush2.bf16.msra.mxu0 0
  %2437 = vmatprep.subr.bf16.mxu0 0
  %2438 = vmatpush2.bf16.msra.mxu0 0
  %2439 = vmatprep.subr.bf16.mxu0 0
  %2440 = vmatpush2.bf16.msra.mxu0 0
  %2441 = vmatprep.subr.bf16.mxu0 0
  %2442 = vmatpush2.bf16.msra.mxu0 0
  %2443 = vmatprep.subr.bf16.mxu0 0
  %2444 = vmatpush2.bf16.msra.mxu0 0
  %2445 = vmatprep.subr.bf16.mxu0 0
  %2446 = vmatpush2.bf16.msra.mxu0 0
  %2447 = vmatprep.subr.bf16.mxu0 0
  %2448 = vmatpush2.bf16.msra.mxu0 0
  %2449 = vmatprep.subr.bf16.mxu0 0
  %2450 = vmatpush2.bf16.msra.mxu0 0
  %2451 = vmatprep.mubr.bf16.mxu0 0
  %2452 = vmatmul.mubr.bf16.gmra.mxu0 %v1869
  %v2453 = vpop.f32.mrf.mxu0
  %v2454 = vadd.f32 0.0, %v2453
  %v2455 = vpop.f32.mrf.mxu0
  %v2456 = vpop.f32.mrf.mxu0
  %v2457 = vadd.f32 0.0, %v2456
  %v2458 = vpop.f32.mrf.mxu0
  %2459 = vdwg.mxu0
  %v2460 = vadd.f32 %v2417, %v2454
  %v2461 = vadd.f32 %v2418, %v2457
  %2462 = vmatprep.subr.bf16.mxu0 0
  %2463 = vmatpush1.bf16.msra.mxu0 0
  %2464 = vmatprep.subr.bf16.mxu0 0
  %2465 = vmatpush1.bf16.msra.mxu0 0
  %2466 = vmatprep.subr.bf16.mxu0 0
  %2467 = vmatpush1.bf16.msra.mxu0 0
  %2468 = vmatprep.subr.bf16.mxu0 0
  %2469 = vmatpush1.bf16.msra.mxu0 0
  %2470 = vmatprep.subr.bf16.mxu0 0
  %2471 = vmatpush1.bf16.msra.mxu0 %v638
  %2472 = vmatprep.subr.bf16.mxu0 0
  %2473 = vmatpush1.bf16.msra.mxu0 %v637
  %2474 = vmatprep.subr.bf16.mxu0 0
  %2475 = vmatpush1.bf16.msra.mxu0 %v636
  %2476 = vmatprep.subr.bf16.mxu0 0
  %2477 = vmatpush1.bf16.msra.mxu0 %v635
  %2478 = vmatprep.subr.bf16.mxu0 0
  %2479 = vmatpush2.bf16.msra.mxu0 0
  %2480 = vmatprep.subr.bf16.mxu0 0
  %2481 = vmatpush2.bf16.msra.mxu0 0
  %2482 = vmatprep.subr.bf16.mxu0 0
  %2483 = vmatpush2.bf16.msra.mxu0 0
  %2484 = vmatprep.subr.bf16.mxu0 0
  %2485 = vmatpush2.bf16.msra.mxu0 0
  %2486 = vmatprep.subr.bf16.mxu0 0
  %2487 = vmatpush2.bf16.msra.mxu0 0
  %2488 = vmatprep.subr.bf16.mxu0 0
  %2489 = vmatpush2.bf16.msra.mxu0 0
  %2490 = vmatprep.subr.bf16.mxu0 0
  %2491 = vmatpush2.bf16.msra.mxu0 0
  %2492 = vmatprep.subr.bf16.mxu0 0
  %2493 = vmatpush2.bf16.msra.mxu0 0
  %2494 = vmatprep.mubr.bf16.mxu0 0
  %2495 = vmatmul.mubr.bf16.gmra.mxu0 %v1922
  %v2496 = vpop.f32.mrf.mxu0
  %v2497 = vadd.f32 0.0, %v2496
  %v2498 = vpop.f32.mrf.mxu0
  %v2499 = vpop.f32.mrf.mxu0
  %v2500 = vadd.f32 0.0, %v2499
  %v2501 = vpop.f32.mrf.mxu0
  %2502 = vdwg.mxu0
  %v2503 = vadd.f32 %v2460, %v2497
  %v2504 = vadd.f32 %v2461, %v2500
  %2505 = vrot.lane.b32.xlu0 %v1920, 64
  %v2506 = vpop.permute.xlu0 %2505
  %v2508 = vsel %vm76, %v2506, 0
  %2510 = vmatprep.subr.bf16.mxu0 0
  %2511 = vmatpush1.bf16.msra.mxu0 0
  %2512 = vmatprep.subr.bf16.mxu0 0
  %2513 = vmatpush1.bf16.msra.mxu0 0
  %2514 = vmatprep.subr.bf16.mxu0 0
  %2515 = vmatpush1.bf16.msra.mxu0 0
  %2516 = vmatprep.subr.bf16.mxu0 0
  %2517 = vmatpush1.bf16.msra.mxu0 0
  %2518 = vmatprep.subr.bf16.mxu0 0
  %2519 = vmatpush1.bf16.msra.mxu0 %v723
  %2520 = vmatprep.subr.bf16.mxu0 0
  %2521 = vmatpush1.bf16.msra.mxu0 %v722
  %2522 = vmatprep.subr.bf16.mxu0 0
  %2523 = vmatpush1.bf16.msra.mxu0 %v721
  %2524 = vmatprep.subr.bf16.mxu0 0
  %2525 = vmatpush1.bf16.msra.mxu0 %v720
  %2526 = vmatprep.subr.bf16.mxu0 0
  %2527 = vmatpush2.bf16.msra.mxu0 0
  %2528 = vmatprep.subr.bf16.mxu0 0
  %2529 = vmatpush2.bf16.msra.mxu0 0
  %2530 = vmatprep.subr.bf16.mxu0 0
  %2531 = vmatpush2.bf16.msra.mxu0 0
  %2532 = vmatprep.subr.bf16.mxu0 0
  %2533 = vmatpush2.bf16.msra.mxu0 0
  %2534 = vmatprep.subr.bf16.mxu0 0
  %2535 = vmatpush2.bf16.msra.mxu0 0
  %2536 = vmatprep.subr.bf16.mxu0 0
  %2537 = vmatpush2.bf16.msra.mxu0 0
  %2538 = vmatprep.subr.bf16.mxu0 0
  %2539 = vmatpush2.bf16.msra.mxu0 0
  %2540 = vmatprep.subr.bf16.mxu0 0
  %2541 = vmatpush2.bf16.msra.mxu0 0
  %2542 = vmatprep.mubr.bf16.mxu0 0
  %2543 = vmatmul.mubr.bf16.gmra.mxu0 %v2508
  %v2544 = vpop.f32.mrf.mxu0
  %v2545 = vadd.f32 0.0, %v2544
  %v2546 = vpop.f32.mrf.mxu0
  %v2547 = vpop.f32.mrf.mxu0
  %v2548 = vadd.f32 0.0, %v2547
  %v2549 = vpop.f32.mrf.mxu0
  %2550 = vdwg.mxu0
  %v2551 = vadd.f32 %v2503, %v2545
  %v2552 = vadd.f32 %v2504, %v2548
  %v2553 = vadd.f32 %v2551, %v779
  %v2554 = vadd.f32 %v2552, %v779
  %v2555 = vmax.f32 %v2553, 0.0
  %v2556 = vmax.f32 %v2554, 0.0
  %v2557 = vpack.c.bf16 %v2556, %v2555
  %v2558 = vld [vmem:[%s3 + $0x180] sm:$0xff]
  %v2559 = vld [vmem:[%s3 + $0x188] sm:$0xff]
  %v2560 = vld [vmem:[%s3 + $0x190] sm:$0xff]
  %v2561 = vld [vmem:[%s3 + $0x198] sm:$0xff]
  %v2562 = vld [vmem:[%s3 + $0x1a0] sm:$0xff]
  %v2563 = vld [vmem:[%s3 + $0x1a8] sm:$0xff]
  %v2564 = vld [vmem:[%s3 + $0x1b0] sm:$0xff]
  %v2565 = vld [vmem:[%s3 + $0x1b8] sm:$0xff]
  %v2566 = vld [vmem:[%s3 + $0x1c0] sm:$0xff]
  %v2567 = vld [vmem:[%s3 + $0x1c8] sm:$0xff]
  %v2568 = vld [vmem:[%s3 + $0x1d0] sm:$0xff]
  %v2569 = vld [vmem:[%s3 + $0x1d8] sm:$0xff]
  %v2570 = vld [vmem:[%s3 + $0x1e0] sm:$0xff]
  %v2571 = vld [vmem:[%s3 + $0x1e8] sm:$0xff]
  %v2572 = vld [vmem:[%s3 + $0x1f0] sm:$0xff]
  %v2573 = vld [vmem:[%s3 + $0x1f8] sm:$0xff]
  %v2590 = vunpack.c.l.b16 %v2558
  %v2591 = vunpack.c.h.b16 %v2558
  %v2592 = vunpack.c.l.b16 %v2559
  %v2593 = vunpack.c.h.b16 %v2559
  %v2594 = vunpack.c.l.b16 %v2560
  %v2595 = vunpack.c.h.b16 %v2560
  %v2596 = vunpack.c.l.b16 %v2561
  %v2597 = vunpack.c.h.b16 %v2561
  %v2598 = vunpack.c.l.b16 %v2562
  %v2599 = vunpack.c.h.b16 %v2562
  %v2600 = vunpack.c.l.b16 %v2563
  %v2601 = vunpack.c.h.b16 %v2563
  %v2602 = vunpack.c.l.b16 %v2564
  %v2603 = vunpack.c.h.b16 %v2564
  %v2604 = vunpack.c.l.b16 %v2565
  %v2605 = vunpack.c.h.b16 %v2565
  %v2606 = vunpack.c.l.b16 %v2566
  %v2607 = vunpack.c.h.b16 %v2566
  %v2608 = vunpack.c.l.b16 %v2567
  %v2609 = vunpack.c.h.b16 %v2567
  %v2610 = vunpack.c.l.b16 %v2568
  %v2611 = vunpack.c.h.b16 %v2568
  %v2612 = vunpack.c.l.b16 %v2569
  %v2613 = vunpack.c.h.b16 %v2569
  %v2614 = vunpack.c.l.b16 %v2570
  %v2615 = vunpack.c.h.b16 %v2570
  %v2616 = vunpack.c.l.b16 %v2571
  %v2617 = vunpack.c.h.b16 %v2571
  %v2618 = vunpack.c.l.b16 %v2572
  %v2619 = vunpack.c.h.b16 %v2572
  %v2620 = vunpack.c.l.b16 %v2573
  %v2621 = vunpack.c.h.b16 %v2573
  %v2622 = vpack.c.b16 %v2594, %v2590
  %v2623 = vpack.c.b16 %v2595, %v2591
  %v2624 = vpack.c.b16 %v2596, %v2592
  %v2625 = vpack.c.b16 %v2597, %v2593
  %v2626 = vpack.c.b16 %v2602, %v2598
  %v2627 = vpack.c.b16 %v2603, %v2599
  %v2628 = vpack.c.b16 %v2604, %v2600
  %v2629 = vpack.c.b16 %v2605, %v2601
  %v2630 = vpack.c.b16 %v2610, %v2606
  %v2631 = vpack.c.b16 %v2611, %v2607
  %v2632 = vpack.c.b16 %v2612, %v2608
  %v2633 = vpack.c.b16 %v2613, %v2609
  %v2634 = vpack.c.b16 %v2618, %v2614
  %v2635 = vpack.c.b16 %v2619, %v2615
  %v2636 = vpack.c.b16 %v2620, %v2616
  %v2637 = vpack.c.b16 %v2621, %v2617
  %v2655 = vsel %vm76, %v2557, 0
  %2657 = vmatprep.subr.bf16.mxu0 0
  %2658 = vmatpush1.bf16.msra.mxu0 0
  %2659 = vmatprep.subr.bf16.mxu0 0
  %2660 = vmatpush1.bf16.msra.mxu0 0
  %2661 = vmatprep.subr.bf16.mxu0 0
  %2662 = vmatpush1.bf16.msra.mxu0 0
  %2663 = vmatprep.subr.bf16.mxu0 0
  %2664 = vmatpush1.bf16.msra.mxu0 0
  %2665 = vmatprep.subr.bf16.mxu0 %v2635
  %2666 = vmatpush1.bf16.msra.mxu0 %v2634
  %2667 = vmatprep.subr.bf16.mxu0 %v2631
  %2668 = vmatpush1.bf16.msra.mxu0 %v2630
  %2669 = vmatprep.subr.bf16.mxu0 %v2627
  %2670 = vmatpush1.bf16.msra.mxu0 %v2626
  %2671 = vmatprep.subr.bf16.mxu0 %v2623
  %2672 = vmatpush1.bf16.msra.mxu0 %v2622
  %2673 = vmatprep.subr.bf16.mxu0 0
  %2674 = vmatpush2.bf16.msra.mxu0 0
  %2675 = vmatprep.subr.bf16.mxu0 0
  %2676 = vmatpush2.bf16.msra.mxu0 0
  %2677 = vmatprep.subr.bf16.mxu0 0
  %2678 = vmatpush2.bf16.msra.mxu0 0
  %2679 = vmatprep.subr.bf16.mxu0 0
  %2680 = vmatpush2.bf16.msra.mxu0 0
  %2681 = vmatprep.subr.bf16.mxu0 0
  %2682 = vmatpush2.bf16.msra.mxu0 0
  %2683 = vmatprep.subr.bf16.mxu0 0
  %2684 = vmatpush2.bf16.msra.mxu0 0
  %2685 = vmatprep.subr.bf16.mxu0 0
  %2686 = vmatpush2.bf16.msra.mxu0 0
  %2687 = vmatprep.subr.bf16.mxu0 0
  %2688 = vmatpush2.bf16.msra.mxu0 0
  %2689 = vmatprep.mubr.bf16.mxu0 0
  %2690 = vmatmul.mubr.bf16.gmra.mxu0 %v2655
  %v2691 = vpop.f32.mrf.mxu0
  %v2692 = vadd.f32 0.0, %v2691
  %v2693 = vpop.f32.mrf.mxu0
  %v2694 = vadd.f32 0.0, %v2693
  %v2695 = vpop.f32.mrf.mxu0
  %v2696 = vadd.f32 0.0, %v2695
  %v2697 = vpop.f32.mrf.mxu0
  %v2698 = vadd.f32 0.0, %v2697
  %2699 = vdwg.mxu0
  %2700 = vmatprep.subr.bf16.mxu0 0
  %2701 = vmatpush1.bf16.msra.mxu0 0
  %2702 = vmatprep.subr.bf16.mxu0 0
  %2703 = vmatpush1.bf16.msra.mxu0 0
  %2704 = vmatprep.subr.bf16.mxu0 0
  %2705 = vmatpush1.bf16.msra.mxu0 0
  %2706 = vmatprep.subr.bf16.mxu0 0
  %2707 = vmatpush1.bf16.msra.mxu0 0
  %2708 = vmatprep.subr.bf16.mxu0 %v2637
  %2709 = vmatpush1.bf16.msra.mxu0 %v2636
  %2710 = vmatprep.subr.bf16.mxu0 %v2633
  %2711 = vmatpush1.bf16.msra.mxu0 %v2632
  %2712 = vmatprep.subr.bf16.mxu0 %v2629
  %2713 = vmatpush1.bf16.msra.mxu0 %v2628
  %2714 = vmatprep.subr.bf16.mxu0 %v2625
  %2715 = vmatpush1.bf16.msra.mxu0 %v2624
  %2716 = vmatprep.subr.bf16.mxu0 0
  %2717 = vmatpush2.bf16.msra.mxu0 0
  %2718 = vmatprep.subr.bf16.mxu0 0
  %2719 = vmatpush2.bf16.msra.mxu0 0
  %2720 = vmatprep.subr.bf16.mxu0 0
  %2721 = vmatpush2.bf16.msra.mxu0 0
  %2722 = vmatprep.subr.bf16.mxu0 0
  %2723 = vmatpush2.bf16.msra.mxu0 0
  %2724 = vmatprep.subr.bf16.mxu0 0
  %2725 = vmatpush2.bf16.msra.mxu0 0
  %2726 = vmatprep.subr.bf16.mxu0 0
  %2727 = vmatpush2.bf16.msra.mxu0 0
  %2728 = vmatprep.subr.bf16.mxu0 0
  %2729 = vmatpush2.bf16.msra.mxu0 0
  %2730 = vmatprep.subr.bf16.mxu0 0
  %2731 = vmatpush2.bf16.msra.mxu0 0
  %2732 = vmatprep.mubr.bf16.mxu0 0
  %2733 = vmatmul.mubr.bf16.gmra.mxu0 %v2655
  %v2734 = vpop.f32.mrf.mxu0
  %v2735 = vadd.f32 0.0, %v2734
  %v2736 = vpop.f32.mrf.mxu0
  %v2737 = vadd.f32 0.0, %v2736
  %v2738 = vpop.f32.mrf.mxu0
  %v2739 = vadd.f32 0.0, %v2738
  %v2740 = vpop.f32.mrf.mxu0
  %v2741 = vadd.f32 0.0, %v2740
  %2742 = vdwg.mxu0
  %v2743 = vadd.f32 %v2157, %v2692
  %v2744 = vadd.f32 %v2158, %v2694
  %v2745 = vadd.f32 %v2159, %v2735
  %v2746 = vadd.f32 %v2160, %v2737
  %v2747 = vadd.f32 %v2161, %v2696
  %v2748 = vadd.f32 %v2162, %v2698
  %v2749 = vadd.f32 %v2163, %v2739
  %v2750 = vadd.f32 %v2164, %v2741
  %v2751 = vld [vmem:[%s4] sm:$0xf]
  %v2753 = vlaneseq
  %v2754 = vshrl.u32 %v2753, 7
  %v2755 = vsub.s32 0, %v2754
  %v2756 = vrot.slane %v2751, %v2755
  %v2757 = vlaneseq
  %v2758 = vshrl.u32 %v2757, 7
  %v2759 = vsub.s32 1, %v2758
  %v2760 = vrot.slane %v2751, %v2759
  %v2761 = vlaneseq
  %v2762 = vshrl.u32 %v2761, 7
  %v2763 = vsub.s32 2, %v2762
  %v2764 = vrot.slane %v2751, %v2763
  %v2765 = vlaneseq
  %v2766 = vshrl.u32 %v2765, 7
  %v2767 = vsub.s32 3, %v2766
  %v2768 = vrot.slane %v2751, %v2767
  %v2773 = vadd.f32 %v2743, %v2756
  %v2774 = vadd.f32 %v2744, %v2760
  %v2775 = vadd.f32 %v2745, %v2764
  %v2776 = vadd.f32 %v2746, %v2768
  %v2777 = vadd.f32 %v2747, %v2756
  %v2778 = vadd.f32 %v2748, %v2760
  %v2779 = vadd.f32 %v2749, %v2764
  %v2780 = vadd.f32 %v2750, %v2768
  %v2781 = vmax.f32 %v2773, 0.0
  %v2782 = vmax.f32 %v2774, 0.0
  %v2783 = vmax.f32 %v2775, 0.0
  %v2784 = vmax.f32 %v2776, 0.0
  %v2785 = vmax.f32 %v2777, 0.0
  %v2786 = vmax.f32 %v2778, 0.0
  %v2787 = vmax.f32 %v2779, 0.0
  %v2788 = vmax.f32 %v2780, 0.0
  %v2789 = vpack.c.bf16 %v2785, %v2781
  %v2790 = vpack.c.bf16 %v2786, %v2782
  %v2791 = vpack.c.bf16 %v2787, %v2783
  %v2792 = vpack.c.bf16 %v2788, %v2784
  %v2793 = vld [vmem:[%s5] sm:$0xf]
  %v2794 = vld [vmem:[%s5 + $0x4] sm:$0xf]
  %v2795 = vld [vmem:[%s5 + $0x8] sm:$0xf]
  %v2796 = vld [vmem:[%s5 + $0xc] sm:$0xf]
  %v2797 = vld [vmem:[%s5 + $0x10] sm:$0xf]
  %v2798 = vld [vmem:[%s5 + $0x14] sm:$0xf]
  %v2799 = vld [vmem:[%s5 + $0x18] sm:$0xf]
  %v2800 = vld [vmem:[%s5 + $0x1c] sm:$0xf]
  %v2801 = vld [vmem:[%s5 + $0x20] sm:$0xf]
  %v2802 = vld [vmem:[%s5 + $0x24] sm:$0xf]
  %v2803 = vld [vmem:[%s5 + $0x28] sm:$0xf]
  %v2804 = vld [vmem:[%s5 + $0x2c] sm:$0xf]
  %v2805 = vld [vmem:[%s5 + $0x30] sm:$0xf]
  %v2806 = vld [vmem:[%s5 + $0x34] sm:$0xf]
  %v2807 = vld [vmem:[%s5 + $0x38] sm:$0xf]
  %v2808 = vld [vmem:[%s5 + $0x3c] sm:$0xf]
  %v2809 = vld [vmem:[%s5 + $0x40] sm:$0xf]
  %v2810 = vld [vmem:[%s5 + $0x44] sm:$0xf]
  %v2811 = vld [vmem:[%s5 + $0x48] sm:$0xf]
  %v2812 = vld [vmem:[%s5 + $0x4c] sm:$0xf]
  %v2813 = vld [vmem:[%s5 + $0x50] sm:$0xf]
  %v2814 = vld [vmem:[%s5 + $0x54] sm:$0xf]
  %v2815 = vld [vmem:[%s5 + $0x58] sm:$0xf]
  %v2816 = vld [vmem:[%s5 + $0x5c] sm:$0xf]
  %v2817 = vld [vmem:[%s5 + $0x60] sm:$0xf]
  %v2818 = vld [vmem:[%s5 + $0x64] sm:$0xf]
  %v2819 = vld [vmem:[%s5 + $0x68] sm:$0xf]
  %v2820 = vld [vmem:[%s5 + $0x6c] sm:$0xf]
  %v2821 = vld [vmem:[%s5 + $0x70] sm:$0xf]
  %v2822 = vld [vmem:[%s5 + $0x74] sm:$0xf]
  %v2823 = vld [vmem:[%s5 + $0x78] sm:$0xf]
  %v2824 = vld [vmem:[%s5 + $0x7c] sm:$0xf]
  %v2825 = vld [vmem:[%s5 + $0x80] sm:$0xf]
  %v2826 = vld [vmem:[%s5 + $0x84] sm:$0xf]
  %v2827 = vld [vmem:[%s5 + $0x88] sm:$0xf]
  %v2828 = vld [vmem:[%s5 + $0x8c] sm:$0xf]
  %v2829 = vld [vmem:[%s5 + $0x90] sm:$0xf]
  %v2830 = vld [vmem:[%s5 + $0x94] sm:$0xf]
  %v2831 = vld [vmem:[%s5 + $0x98] sm:$0xf]
  %v2832 = vld [vmem:[%s5 + $0x9c] sm:$0xf]
  %v2833 = vld [vmem:[%s5 + $0xa0] sm:$0xf]
  %v2834 = vld [vmem:[%s5 + $0xa4] sm:$0xf]
  %v2835 = vld [vmem:[%s5 + $0xa8] sm:$0xf]
  %v2836 = vld [vmem:[%s5 + $0xac] sm:$0xf]
  %v2837 = vld [vmem:[%s5 + $0xb0] sm:$0xf]
  %v2838 = vld [vmem:[%s5 + $0xb4] sm:$0xf]
  %v2839 = vld [vmem:[%s5 + $0xb8] sm:$0xf]
  %v2840 = vld [vmem:[%s5 + $0xbc] sm:$0xf]
  %v2841 = vld [vmem:[%s5 + $0xc0] sm:$0xf]
  %v2842 = vld [vmem:[%s5 + $0xc4] sm:$0xf]
  %v2843 = vld [vmem:[%s5 + $0xc8] sm:$0xf]
  %v2844 = vld [vmem:[%s5 + $0xcc] sm:$0xf]
  %v2845 = vld [vmem:[%s5 + $0xd0] sm:$0xf]
  %v2846 = vld [vmem:[%s5 + $0xd4] sm:$0xf]
  %v2847 = vld [vmem:[%s5 + $0xd8] sm:$0xf]
  %v2848 = vld [vmem:[%s5 + $0xdc] sm:$0xf]
  %v2849 = vld [vmem:[%s5 + $0xe0] sm:$0xf]
  %v2850 = vld [vmem:[%s5 + $0xe4] sm:$0xf]
  %v2851 = vld [vmem:[%s5 + $0xe8] sm:$0xf]
  %v2852 = vld [vmem:[%s5 + $0xec] sm:$0xf]
  %v2853 = vld [vmem:[%s5 + $0xf0] sm:$0xf]
  %v2854 = vld [vmem:[%s5 + $0xf4] sm:$0xf]
  %v2855 = vld [vmem:[%s5 + $0xf8] sm:$0xf]
  %v2856 = vld [vmem:[%s5 + $0xfc] sm:$0xf]
  %v2857 = vld [vmem:[%s6] sm:$0x1]
  %v2859 = vlaneseq
  %v2860 = vshrl.u32 %v2859, 7
  %v2861 = vsub.s32 0, %v2860
  %v2862 = vrot.slane %v2857, %v2861
  %v2928 = vunpack.c.l.b16 %v2793
  %v2929 = vunpack.c.l.b16 %v2794
  %v2930 = vunpack.c.l.b16 %v2795
  %v2931 = vunpack.c.l.b16 %v2796
  %v2932 = vunpack.c.l.b16 %v2797
  %v2933 = vunpack.c.l.b16 %v2798
  %v2934 = vunpack.c.l.b16 %v2799
  %v2935 = vunpack.c.l.b16 %v2800
  %v2936 = vunpack.c.l.b16 %v2801
  %v2937 = vunpack.c.l.b16 %v2802
  %v2938 = vunpack.c.l.b16 %v2803
  %v2939 = vunpack.c.l.b16 %v2804
  %v2940 = vunpack.c.l.b16 %v2805
  %v2941 = vunpack.c.l.b16 %v2806
  %v2942 = vunpack.c.l.b16 %v2807
  %v2943 = vunpack.c.l.b16 %v2808
  %v2944 = vunpack.c.l.b16 %v2809
  %v2945 = vunpack.c.l.b16 %v2810
  %v2946 = vunpack.c.l.b16 %v2811
  %v2947 = vunpack.c.l.b16 %v2812
  %v2948 = vunpack.c.l.b16 %v2813
  %v2949 = vunpack.c.l.b16 %v2814
  %v2950 = vunpack.c.l.b16 %v2815
  %v2951 = vunpack.c.l.b16 %v2816
  %v2952 = vunpack.c.l.b16 %v2817
  %v2953 = vunpack.c.l.b16 %v2818
  %v2954 = vunpack.c.l.b16 %v2819
  %v2955 = vunpack.c.l.b16 %v2820
  %v2956 = vunpack.c.l.b16 %v2821
  %v2957 = vunpack.c.l.b16 %v2822
  %v2958 = vunpack.c.l.b16 %v2823
  %v2959 = vunpack.c.l.b16 %v2824
  %v2960 = vunpack.c.l.b16 %v2825
  %v2961 = vunpack.c.l.b16 %v2826
  %v2962 = vunpack.c.l.b16 %v2827
  %v2963 = vunpack.c.l.b16 %v2828
  %v2964 = vunpack.c.l.b16 %v2829
  %v2965 = vunpack.c.l.b16 %v2830
  %v2966 = vunpack.c.l.b16 %v2831
  %v2967 = vunpack.c.l.b16 %v2832
  %v2968 = vunpack.c.l.b16 %v2833
  %v2969 = vunpack.c.l.b16 %v2834
  %v2970 = vunpack.c.l.b16 %v2835
  %v2971 = vunpack.c.l.b16 %v2836
  %v2972 = vunpack.c.l.b16 %v2837
  %v2973 = vunpack.c.l.b16 %v2838
  %v2974 = vunpack.c.l.b16 %v2839
  %v2975 = vunpack.c.l.b16 %v2840
  %v2976 = vunpack.c.l.b16 %v2841
  %v2977 = vunpack.c.l.b16 %v2842
  %v2978 = vunpack.c.l.b16 %v2843
  %v2979 = vunpack.c.l.b16 %v2844
  %v2980 = vunpack.c.l.b16 %v2845
  %v2981 = vunpack.c.l.b16 %v2846
  %v2982 = vunpack.c.l.b16 %v2847
  %v2983 = vunpack.c.l.b16 %v2848
  %v2984 = vunpack.c.l.b16 %v2849
  %v2985 = vunpack.c.l.b16 %v2850
  %v2986 = vunpack.c.l.b16 %v2851
  %v2987 = vunpack.c.l.b16 %v2852
  %v2988 = vunpack.c.l.b16 %v2853
  %v2989 = vunpack.c.l.b16 %v2854
  %v2990 = vunpack.c.l.b16 %v2855
  %v2991 = vunpack.c.l.b16 %v2856
  %v2992 = vpack.c.b16 %v2929, %v2928
  %v2993 = vpack.c.b16 %v2931, %v2930
  %v2994 = vpack.c.b16 %v2933, %v2932
  %v2995 = vpack.c.b16 %v2935, %v2934
  %v2996 = vpack.c.b16 %v2937, %v2936
  %v2997 = vpack.c.b16 %v2939, %v2938
  %v2998 = vpack.c.b16 %v2941, %v2940
  %v2999 = vpack.c.b16 %v2943, %v2942
  %v3000 = vpack.c.b16 %v2945, %v2944
  %v3001 = vpack.c.b16 %v2947, %v2946
  %v3002 = vpack.c.b16 %v2949, %v2948
  %v3003 = vpack.c.b16 %v2951, %v2950
  %v3004 = vpack.c.b16 %v2953, %v2952
  %v3005 = vpack.c.b16 %v2955, %v2954
  %v3006 = vpack.c.b16 %v2957, %v2956
  %v3007 = vpack.c.b16 %v2959, %v2958
  %v3008 = vpack.c.b16 %v2961, %v2960
  %v3009 = vpack.c.b16 %v2963, %v2962
  %v3010 = vpack.c.b16 %v2965, %v2964
  %v3011 = vpack.c.b16 %v2967, %v2966
  %v3012 = vpack.c.b16 %v2969, %v2968
  %v3013 = vpack.c.b16 %v2971, %v2970
  %v3014 = vpack.c.b16 %v2973, %v2972
  %v3015 = vpack.c.b16 %v2975, %v2974
  %v3016 = vpack.c.b16 %v2977, %v2976
  %v3017 = vpack.c.b16 %v2979, %v2978
  %v3018 = vpack.c.b16 %v2981, %v2980
  %v3019 = vpack.c.b16 %v2983, %v2982
  %v3020 = vpack.c.b16 %v2985, %v2984
  %v3021 = vpack.c.b16 %v2987, %v2986
  %v3022 = vpack.c.b16 %v2989, %v2988
  %v3023 = vpack.c.b16 %v2991, %v2990
  %3056 = vmatprep.subr.bf16.mxu0 0
  %3057 = vmatpush1.bf16.msra.mxu0 %v2999
  %3058 = vmatprep.subr.bf16.mxu0 0
  %3059 = vmatpush1.bf16.msra.mxu0 %v2998
  %3060 = vmatprep.subr.bf16.mxu0 0
  %3061 = vmatpush1.bf16.msra.mxu0 %v2997
  %3062 = vmatprep.subr.bf16.mxu0 0
  %3063 = vmatpush1.bf16.msra.mxu0 %v2996
  %3064 = vmatprep.subr.bf16.mxu0 0
  %3065 = vmatpush1.bf16.msra.mxu0 %v2995
  %3066 = vmatprep.subr.bf16.mxu0 0
  %3067 = vmatpush1.bf16.msra.mxu0 %v2994
  %3068 = vmatprep.subr.bf16.mxu0 0
  %3069 = vmatpush1.bf16.msra.mxu0 %v2993
  %3070 = vmatprep.subr.bf16.mxu0 0
  %3071 = vmatpush1.bf16.msra.mxu0 %v2992
  %3072 = vmatprep.subr.bf16.mxu0 0
  %3073 = vmatpush2.bf16.msra.mxu0 %v3007
  %3074 = vmatprep.subr.bf16.mxu0 0
  %3075 = vmatpush2.bf16.msra.mxu0 %v3006
  %3076 = vmatprep.subr.bf16.mxu0 0
  %3077 = vmatpush2.bf16.msra.mxu0 %v3005
  %3078 = vmatprep.subr.bf16.mxu0 0
  %3079 = vmatpush2.bf16.msra.mxu0 %v3004
  %3080 = vmatprep.subr.bf16.mxu0 0
  %3081 = vmatpush2.bf16.msra.mxu0 %v3003
  %3082 = vmatprep.subr.bf16.mxu0 0
  %3083 = vmatpush2.bf16.msra.mxu0 %v3002
  %3084 = vmatprep.subr.bf16.mxu0 0
  %3085 = vmatpush2.bf16.msra.mxu0 %v3001
  %3086 = vmatprep.subr.bf16.mxu0 0
  %3087 = vmatpush2.bf16.msra.mxu0 %v3000
  %3088 = vmatprep.mubr.bf16.mxu0 %v2790
  %3089 = vmatmul.mubr.bf16.gmra.mxu0 %v2789
  %v3090 = vpop.f32.mrf.mxu0
  %v3091 = vadd.f32 %v2862, %v3090
  %v3092 = vpop.f32.mrf.mxu0
  %v3093 = vpop.f32.mrf.mxu0
  %v3094 = vadd.f32 %v2862, %v3093
  %v3095 = vpop.f32.mrf.mxu0
  %3096 = vdwg.mxu0
  %3097 = vmatprep.subr.bf16.mxu0 0
  %3098 = vmatpush1.bf16.msra.mxu0 %v3015
  %3099 = vmatprep.subr.bf16.mxu0 0
  %3100 = vmatpush1.bf16.msra.mxu0 %v3014
  %3101 = vmatprep.subr.bf16.mxu0 0
  %3102 = vmatpush1.bf16.msra.mxu0 %v3013
  %3103 = vmatprep.subr.bf16.mxu0 0
  %3104 = vmatpush1.bf16.msra.mxu0 %v3012
  %3105 = vmatprep.subr.bf16.mxu0 0
  %3106 = vmatpush1.bf16.msra.mxu0 %v3011
  %3107 = vmatprep.subr.bf16.mxu0 0
  %3108 = vmatpush1.bf16.msra.mxu0 %v3010
  %3109 = vmatprep.subr.bf16.mxu0 0
  %3110 = vmatpush1.bf16.msra.mxu0 %v3009
  %3111 = vmatprep.subr.bf16.mxu0 0
  %3112 = vmatpush1.bf16.msra.mxu0 %v3008
  %3113 = vmatprep.subr.bf16.mxu0 0
  %3114 = vmatpush2.bf16.msra.mxu0 %v3023
  %3115 = vmatprep.subr.bf16.mxu0 0
  %3116 = vmatpush2.bf16.msra.mxu0 %v3022
  %3117 = vmatprep.subr.bf16.mxu0 0
  %3118 = vmatpush2.bf16.msra.mxu0 %v3021
  %3119 = vmatprep.subr.bf16.mxu0 0
  %3120 = vmatpush2.bf16.msra.mxu0 %v3020
  %3121 = vmatprep.subr.bf16.mxu0 0
  %3122 = vmatpush2.bf16.msra.mxu0 %v3019
  %3123 = vmatprep.subr.bf16.mxu0 0
  %3124 = vmatpush2.bf16.msra.mxu0 %v3018
  %3125 = vmatprep.subr.bf16.mxu0 0
  %3126 = vmatpush2.bf16.msra.mxu0 %v3017
  %3127 = vmatprep.subr.bf16.mxu0 0
  %3128 = vmatpush2.bf16.msra.mxu0 %v3016
  %3129 = vmatprep.mubr.bf16.mxu0 %v2792
  %3130 = vmatmul.mubr.bf16.gmra.mxu0 %v2791
  %v3131 = vpop.f32.mrf.mxu0
  %v3132 = vadd.f32 %v3091, %v3131
  %v3133 = vpop.f32.mrf.mxu0
  %v3134 = vpop.f32.mrf.mxu0
  %v3135 = vadd.f32 %v3094, %v3134
  %v3136 = vpop.f32.mrf.mxu0
  %3137 = vdwg.mxu0
  %3138 = vst [vmem:[%s7] sm:$0xff] %v3132
  %3139 = vst [vmem:[%s7 + $0x8] sm:$0xff] %v3135
  // Predicated region
  $region30: #{discrete_cnn_critic_forward.5} parent=0 // pred_check
    _
  $region31: #{discrete_cnn_critic_forward.5} parent=0 // pred_check_branch
    %3141 = sbr.rel (0) target = $region33
  $region32: #{discrete_cnn_critic_forward.5} parent=0 // pred_region
    _
  $region33: #{discrete_cnn_critic_forward.5} parent=0 // pred_fallthru
    _
  // Predicated region
  $region34: #{discrete_cnn_critic_forward.5} parent=0 // pred_check
    _
  $region35: #{discrete_cnn_critic_forward.5} parent=0 // pred_check_branch
    %3143 = sbr.rel (0) target = $region37
  $region36: #{discrete_cnn_critic_forward.5} parent=0 // pred_region
    _
  $region37: #{discrete_cnn_critic_forward.5} parent=0 // pred_fallthru
    _

</llo_original>
